<compile_context>
chip_gen: v5e
topology: v5e:2x2
jax: 0.10.0
libtpu: 0.0.40
codegen_flags: <defaults>
</compile_context>

<pallas_src>
import jax
import jax.numpy as jnp
from jax.experimental import pallas as pl
from jax.experimental.pallas import tpu as pltpu


# ----------------------------------------------------------------------------
# Kernel factory
# ----------------------------------------------------------------------------
def _make_kernel(C, thi, W, Wu, sh, active_dh):
    """Build the fused upsample+conv kernel for a fixed static configuration."""
    needed_dh = sorted({dh for dhs in active_dh for dh in dhs})

    def kernel(x_main_ref, x_top_ref, x_bot_ref,
               rwm_ref, rw0_ref, rwp_ref, wv_ref, b_ref, o_ref):
        i = pl.program_id(1)
        not_top = i > 0                                # image-top tile -> zero pad
        not_bot = i < pl.num_programs(1) - 1           # image-bottom tile -> zero pad

        # --- hoisted SMEM scalar reads (keeps sld traffic off the FMA bundles) ---
        wv = {}
        for ph in range(sh):
            for dh in active_dh[ph]:
                for co in range(C):
                    for ci in range(C):
                        for kw in range(3):
                            idx = (((ph * 3 + (dh + 1)) * C + co) * C + ci) * 3 + kw
                            wv[(ph, dh, co, ci, kw)] = wv_ref[idx]
        bias = [b_ref[co] for co in range(C)]

        rws = {-1: rwm_ref[...], 0: rw0_ref[...], 1: rwp_ref[...]}   # (W, Wu) each

        # --- per-channel operands -------------------------------------------
        # For each input channel: build halo-extended original-resolution rows
        # (boundary rows forced to zero with jnp.where), then one small MXU
        # matmul per column shift dw in {-1, 0, +1} produces the W-upsampled,
        # column-shifted, zero-padded rows.  The dh row-slices (vertical taps of
        # the phase-decomposed conv) are materialized exactly once and reused by
        # every (co, ph) accumulation, so the FMA loops below never slice.
        op = {}
        for ci in range(C):
            x_mid = x_main_ref[0, ci].astype(jnp.float32)                        # (thi, W)
            top = jnp.where(not_top, x_top_ref[0, ci][7:8, :].astype(jnp.float32), 0.0)
            bot = jnp.where(not_bot, x_bot_ref[0, ci][0:1, :].astype(jnp.float32), 0.0)
            ext = jnp.concatenate([top, x_mid, bot], axis=0)                     # (thi+2, W)
            for dw in (-1, 0, 1):
                cu = jnp.dot(ext, rws[dw], preferred_element_type=jnp.float32)   # (thi+2, Wu)
                for dh in needed_dh:
                    op[(ci, dw, dh)] = cu[1 + dh:1 + dh + thi, :]                # (thi, Wu)

        # --- phase-decomposed vertical conv (VPU scalar-weight FMAs) ----------
        # One live (thi, Wu) accumulator at a time; stored immediately into the
        # lane-contiguous row-phase slab of the output block.
        for co in range(C):
            for ph in range(sh):
                acc = jnp.zeros((thi, Wu), jnp.float32)
                for ci in range(C):
                    for dh in active_dh[ph]:
                        for kw in range(3):
                            acc = acc + wv[(ph, dh, co, ci, kw)] * op[(ci, kw - 1, dh)]
                o_ref[0, co, :, ph * Wu:(ph + 1) * Wu] = (acc + bias[co]).astype(o_ref.dtype)

    return kernel


# ----------------------------------------------------------------------------
# Host-side helpers
# ----------------------------------------------------------------------------
def _shift_upsample_matrices(W, sw):
    """0/1 matrices: nearest W-upsample, shifted by dw, with conv zero padding.

    R_dw[q, j] = 1  iff  0 <= j+dw < W*sw  and  (j+dw)//sw == q.
    """
    # TODO(synk): for very large W replace these O(W^2) matrices with
    # pltpu.roll-based lane shifts (or store them in bf16) to cut MXU MACs/VMEM.
    Wu = W * sw
    j = jnp.arange(Wu)
    q = jnp.arange(W)[:, None]
    mats = []
    for dw in (-1, 0, 1):
        src = (j + dw) // sw
        valid = (j + dw >= 0) & (j + dw < Wu)
        mats.append(((q == src[None, :]) & valid[None, :]).astype(jnp.float32))
    return mats


def _vertical_phase_weights(weight_oihw, sh):
    """Pre-summed vertical conv weights per output row phase.

    For output row i = sh*p + ph, conv tap kh reads source row p + dh with
    dh = floor((ph - 1 + kh)/sh); all kh mapping to the same dh are pre-summed.
    Returns a flat f32 array indexed (((ph*3 + dh+1)*C + co)*C + ci)*3 + kw and
    the static per-phase list of active dh offsets.
    """
    w = weight_oihw.astype(jnp.float32)
    active, parts = [], []
    for ph in range(sh):
        active.append(tuple(sorted({(ph - 1 + kh) // sh for kh in range(3)})))
        for dh1 in range(3):
            dh = dh1 - 1
            ks = [kh for kh in range(3) if (ph - 1 + kh) // sh == dh]
            if ks:
                part = w[:, :, ks[0], :]
                for kh in ks[1:]:
                    part = part + w[:, :, kh, :]
            else:
                part = jnp.zeros_like(w[:, :, 0, :])
            parts.append(part)                       # (C, C, 3)
    return jnp.stack(parts, axis=0).reshape(-1), active


def _tpu_vmem_capacity():
    try:
        return int(pltpu.get_tpu_info().vmem_capacity_bytes)
    except Exception:
        return 64 * 1024 * 1024      # conservative default (v7x per-TC VMEM)


def _pick_row_tile(N, H, W, C, sh, sw, itemsize, vmem_budget_bytes):
    """Largest multiple-of-8 divisor of H whose per-step footprint fits the budget."""
    Wu = W * sw
    max_t = H
    if N == 1 and H >= 16:
        max_t = H // 2               # keep >= 2 grid steps so v7x's 2nd core has work
    best = 8
    for t in range(8, max_t + 1, 8):
        if H % t:
            continue
        in_b = 2 * C * (t + 16) * W * itemsize               # main + 2 halo blocks, 2x buffers
        out_b = 2 * C * t * sh * Wu * itemsize                # output block, 2x buffers
        rw_b = 2 * 3 * W * Wu * 4                             # shift/upsample matrices
        tmp_b = (3 * C * (t + 2) + 9 * C * t + t) * Wu * 4    # cu tiles + dh slices + acc
        if in_b + out_b + rw_b + tmp_b <= vmem_budget_bytes:
            best = t
    return best


# ----------------------------------------------------------------------------
# Public entry point
# ----------------------------------------------------------------------------
def upsample_forward(x_nchw, weight_oihw, bias, sample_kernel, *, row_tile=None):
    """Upsample.forward (dims=2, use_conv=False): nearest x(sh,sw) + Conv2d(C,C,3,pad=1).

    x_nchw       : (N, C, H, W)
    weight_oihw  : (C, C, 3, 3) PyTorch Conv2d weight layout
    bias         : (C,)
    sample_kernel: (sh, sw) integer nearest-neighbor scale factors
    Returns (N, C, H*sh, W*sw) in NCHW.
    """
    N, C, H, W = x_nchw.shape
    Co, Ci, KH, KW = weight_oihw.shape
    sh, sw = int(sample_kernel[0]), int(sample_kernel[1])
    if Co != C or Ci != C or KH != 3 or KW != 3:
        raise ValueError("expected a (C, C, 3, 3) conv weight with Cin == Cout == channels")
    if sh < 1 or sw < 1:
        raise ValueError("sample_kernel must be positive integers (nearest upsample)")
    # TODO(synk): dims=3 (NCDHW) and H not a multiple of 8 are outside this tiling scheme.
    if H % 8:
        raise ValueError("H must be a multiple of 8 for the 8-row halo blocks")

    Hu, Wu = H * sh, W * sw
    vmem_cap = _tpu_vmem_capacity()
    if row_tile is None:
        row_tile = _pick_row_tile(N, H, W, C, sh, sw, x_nchw.dtype.itemsize,
                                  max(8 << 20, int(vmem_cap * 0.30)))
    if H % row_tile or row_tile % 8:
        raise ValueError("row_tile must be a multiple of 8 that divides H")

    thi = row_tile
    n_row = H // thi
    kb = thi // 8                 # row-tile height in units of 8-row halo blocks
    last_hb = H // 8 - 1          # last valid 8-row halo block index

    rw_m1, rw_0, rw_p1 = _shift_upsample_matrices(W, sw)
    wv, active_dh = _vertical_phase_weights(weight_oihw, sh)
    b_flat = bias.astype(jnp.float32).reshape(-1)

    kernel = _make_kernel(C, thi, W, Wu, sh, active_dh)

    n_taps = sum(len(d) for d in active_dh)
    itemsize = x_nchw.dtype.itemsize
    cost = pl.CostEstimate(
        flops=int(2 * C * C * 3 * n_taps * H * Wu * N              # VPU conv FMAs
                  + 2 * 3 * C * (H + 2 * n_row) * W * Wu * N),     # MXU upsample/shift matmuls
        transcendentals=0,
        bytes_accessed=int(N * C * H * W * itemsize + N * C * Hu * Wu * itemsize
                           + 3 * W * Wu * 4),
    )

    grid_spec = pltpu.PrefetchScalarGridSpec(
        num_scalar_prefetch=0,
        grid=(N, n_row),
        in_specs=[
            # main original-resolution rows of this tile
            pl.BlockSpec((1, C, thi, W), lambda n, i: (n, 0, i, 0)),
            # 8-row block containing the row just above the tile (zeroed at the top edge)
            pl.BlockSpec((1, C, 8, W),
                         lambda n, i: (n, 0, jnp.maximum(i * kb - 1, 0), 0)),
            # 8-row block containing the row just below the tile (zeroed at the bottom edge)
            pl.BlockSpec((1, C, 8, W),
                         lambda n, i: (n, 0, jnp.minimum((i + 1) * kb, last_hb), 0)),
            # constant 0/1 upsample+shift matrices (constant index map -> fetched once)
            pl.BlockSpec((W, Wu), lambda n, i: (0, 0)),
            pl.BlockSpec((W, Wu), lambda n, i: (0, 0)),
            pl.BlockSpec((W, Wu), lambda n, i: (0, 0)),
            # pre-summed phase weights / bias as SMEM scalars
            pl.BlockSpec(memory_space=pltpu.MemorySpace.SMEM),
            pl.BlockSpec(memory_space=pltpu.MemorySpace.SMEM),
        ],
        out_specs=pl.BlockSpec((1, C, thi, sh * Wu), lambda n, i: (n, 0, i, 0)),
    )

    out_flat = pl.pallas_call(
        kernel,
        out_shape=jax.ShapeDtypeStruct((N, C, H, sh * Wu), x_nchw.dtype),
        grid_spec=grid_spec,
        compiler_params=pltpu.CompilerParams(
            dimension_semantics=("parallel", "parallel"),
            vmem_limit_bytes=max(32 << 20, min(int(vmem_cap * 0.60), 100 << 20))),
        cost_estimate=cost,
    )(x_nchw, x_nchw, x_nchw, rw_m1, rw_0, rw_p1, wv, b_flat)

    # (N, C, H, sh*Wu) -> (N, C, H*sh, Wu): pure row-major merge/split, i.e. free
    # (no transpose of upsampled-size data).
    return out_flat.reshape(N, C, Hu, Wu)


# ----------------------------------------------------------------------------
# Pure-JAX reference + self-test
# ----------------------------------------------------------------------------
def _reference(x_nchw, weight_oihw, bias, sample_kernel):
    """torch nearest Upsample + Conv2d(3, padding=1), in plain JAX."""
    sh, sw = int(sample_kernel[0]), int(sample_kernel[1])
    x_up = jnp.repeat(jnp.repeat(x_nchw, sh, axis=2), sw, axis=3)
    y = jax.lax.conv_general_dilated(
        x_up.astype(jnp.float32), weight_oihw.astype(jnp.float32),
        window_strides=(1, 1), padding=((1, 1), (1, 1)),
        dimension_numbers=("NCHW", "OIHW", "NCHW"))
    return (y + bias.reshape(1, -1, 1, 1)).astype(x_nchw.dtype)


if __name__ == "__main__":
    key = jax.random.PRNGKey(0)
    kx, kw_key, kb_key = jax.random.split(key, 3)

    # Module config: channels=4, use_conv=False, sample_kernel=(2, 2), dims=2.
    N, C, H, W = 2, 4, 16, 16
    sample_kernel = (2, 2)

    x = jax.random.normal(kx, (N, C, H, W), dtype=jnp.float32)
    weight = jax.random.normal(kw_key, (C, C, 3, 3), dtype=jnp.float32) * 0.1
    bias = jax.random.normal(kb_key, (C,), dtype=jnp.float32) * 0.1

    # row_tile=8 -> grid (N, 2): exercises cross-tile halos and edge padding.
    out = jax.block_until_ready(upsample_forward(x, weight, bias, sample_kernel, row_tile=8))
    ref = _reference(x, weight, bias, sample_kernel)
    assert out.shape == (N, C, H * 2, W * 2), out.shape
    assert jnp.allclose(out, ref, atol=1e-4, rtol=1e-4), float(jnp.max(jnp.abs(out - ref)))

    # Auto-picked row tile, single-tile image.
    x2 = jax.random.normal(kx, (1, C, 8, 8), dtype=jnp.float32)
    out2 = jax.block_until_ready(upsample_forward(x2, weight, bias, sample_kernel))
    ref2 = _reference(x2, weight, bias, sample_kernel)
    assert jnp.allclose(out2, ref2, atol=1e-4, rtol=1e-4), float(jnp.max(jnp.abs(out2 - ref2)))

    # Asymmetric / degenerate vertical scale (sh=1 path: pure 3-row conv taps).
    out3 = jax.block_until_ready(upsample_forward(x, weight, bias, (1, 2)))
    ref3 = _reference(x, weight, bias, (1, 2))
    assert jnp.allclose(out3, ref3, atol=1e-4, rtol=1e-4), float(jnp.max(jnp.abs(out3 - ref3)))

    print("KERNEL_OK")
</pallas_src>

<mosaic_0001>
module attributes {stable_mosaic.version = 11 : i64} {
  func.func @kernel(%arg0: i32, %arg1: i32, %arg2: memref<1x4x8x16xf32, #tpu.memory_space<vmem>>, %arg3: memref<1x4x8x16xf32, #tpu.memory_space<vmem>>, %arg4: memref<1x4x8x16xf32, #tpu.memory_space<vmem>>, %arg5: memref<16x32xf32, #tpu.memory_space<vmem>>, %arg6: memref<16x32xf32, #tpu.memory_space<vmem>>, %arg7: memref<16x32xf32, #tpu.memory_space<vmem>>, %arg8: memref<288xf32, #tpu.memory_space<smem>>, %arg9: memref<4xf32, #tpu.memory_space<smem>>, %arg10: memref<1x4x8x64xf32, #tpu.memory_space<vmem>>) attributes {dimension_semantics = [#tpu.dimension_semantics<parallel>, #tpu.dimension_semantics<parallel>], iteration_bounds = array<i64: 2, 2>, scalar_prefetch = 0 : i64, scratch_operands = 0 : i64, tpu.core_type = #tpu.core_type<tc>, window_params = [{transform_indices = @transform_0, window_bounds = array<i64: 1, 4, 8, 16>}, {transform_indices = @transform_1, window_bounds = array<i64: 1, 4, 8, 16>}, {transform_indices = @transform_2, window_bounds = array<i64: 1, 4, 8, 16>}, {pipeline_mode = #tpu.pipeline_mode<synchronous>, transform_indices = @transform_3, window_bounds = array<i64: 16, 32>}, {pipeline_mode = #tpu.pipeline_mode<synchronous>, transform_indices = @transform_4, window_bounds = array<i64: 16, 32>}, {pipeline_mode = #tpu.pipeline_mode<synchronous>, transform_indices = @transform_5, window_bounds = array<i64: 16, 32>}, {transform_indices = @transform_6, window_bounds = array<i64: 288>}, {transform_indices = @transform_7, window_bounds = array<i64: 4>}, {transform_indices = @transform_8, window_bounds = array<i64: 1, 4, 8, 64>}]} {
    %c0_i32 = arith.constant 0 : i32
    %0 = arith.cmpi sgt, %arg1, %c0_i32 : i32
    %c1_i32 = arith.constant 1 : i32
    %1 = arith.cmpi slt, %arg1, %c1_i32 : i32
    %c0 = arith.constant 0 : index
    %2 = memref.load %arg8[%c0] : memref<288xf32, #tpu.memory_space<smem>>
    %c1 = arith.constant 1 : index
    %3 = memref.load %arg8[%c1] : memref<288xf32, #tpu.memory_space<smem>>
    %c2 = arith.constant 2 : index
    %4 = memref.load %arg8[%c2] : memref<288xf32, #tpu.memory_space<smem>>
    %c3 = arith.constant 3 : index
    %5 = memref.load %arg8[%c3] : memref<288xf32, #tpu.memory_space<smem>>
    %c4 = arith.constant 4 : index
    %6 = memref.load %arg8[%c4] : memref<288xf32, #tpu.memory_space<smem>>
    %c5 = arith.constant 5 : index
    %7 = memref.load %arg8[%c5] : memref<288xf32, #tpu.memory_space<smem>>
    %c6 = arith.constant 6 : index
    %8 = memref.load %arg8[%c6] : memref<288xf32, #tpu.memory_space<smem>>
    %c7 = arith.constant 7 : index
    %9 = memref.load %arg8[%c7] : memref<288xf32, #tpu.memory_space<smem>>
    %c8 = arith.constant 8 : index
    %10 = memref.load %arg8[%c8] : memref<288xf32, #tpu.memory_space<smem>>
    %c9 = arith.constant 9 : index
    %11 = memref.load %arg8[%c9] : memref<288xf32, #tpu.memory_space<smem>>
    %c10 = arith.constant 10 : index
    %12 = memref.load %arg8[%c10] : memref<288xf32, #tpu.memory_space<smem>>
    %c11 = arith.constant 11 : index
    %13 = memref.load %arg8[%c11] : memref<288xf32, #tpu.memory_space<smem>>
    %c12 = arith.constant 12 : index
    %14 = memref.load %arg8[%c12] : memref<288xf32, #tpu.memory_space<smem>>
    %c13 = arith.constant 13 : index
    %15 = memref.load %arg8[%c13] : memref<288xf32, #tpu.memory_space<smem>>
    %c14 = arith.constant 14 : index
    %16 = memref.load %arg8[%c14] : memref<288xf32, #tpu.memory_space<smem>>
    %c15 = arith.constant 15 : index
    %17 = memref.load %arg8[%c15] : memref<288xf32, #tpu.memory_space<smem>>
    %c16 = arith.constant 16 : index
    %18 = memref.load %arg8[%c16] : memref<288xf32, #tpu.memory_space<smem>>
    %c17 = arith.constant 17 : index
    %19 = memref.load %arg8[%c17] : memref<288xf32, #tpu.memory_space<smem>>
    %c18 = arith.constant 18 : index
    %20 = memref.load %arg8[%c18] : memref<288xf32, #tpu.memory_space<smem>>
    %c19 = arith.constant 19 : index
    %21 = memref.load %arg8[%c19] : memref<288xf32, #tpu.memory_space<smem>>
    %c20 = arith.constant 20 : index
    %22 = memref.load %arg8[%c20] : memref<288xf32, #tpu.memory_space<smem>>
    %c21 = arith.constant 21 : index
    %23 = memref.load %arg8[%c21] : memref<288xf32, #tpu.memory_space<smem>>
    %c22 = arith.constant 22 : index
    %24 = memref.load %arg8[%c22] : memref<288xf32, #tpu.memory_space<smem>>
    %c23 = arith.constant 23 : index
    %25 = memref.load %arg8[%c23] : memref<288xf32, #tpu.memory_space<smem>>
    %c24 = arith.constant 24 : index
    %26 = memref.load %arg8[%c24] : memref<288xf32, #tpu.memory_space<smem>>
    %c25 = arith.constant 25 : index
    %27 = memref.load %arg8[%c25] : memref<288xf32, #tpu.memory_space<smem>>
    %c26 = arith.constant 26 : index
    %28 = memref.load %arg8[%c26] : memref<288xf32, #tpu.memory_space<smem>>
    %c27 = arith.constant 27 : index
    %29 = memref.load %arg8[%c27] : memref<288xf32, #tpu.memory_space<smem>>
    %c28 = arith.constant 28 : index
    %30 = memref.load %arg8[%c28] : memref<288xf32, #tpu.memory_space<smem>>
    %c29 = arith.constant 29 : index
    %31 = memref.load %arg8[%c29] : memref<288xf32, #tpu.memory_space<smem>>
    %c30 = arith.constant 30 : index
    %32 = memref.load %arg8[%c30] : memref<288xf32, #tpu.memory_space<smem>>
    %c31 = arith.constant 31 : index
    %33 = memref.load %arg8[%c31] : memref<288xf32, #tpu.memory_space<smem>>
    %c32 = arith.constant 32 : index
    %34 = memref.load %arg8[%c32] : memref<288xf32, #tpu.memory_space<smem>>
    %c33 = arith.constant 33 : index
    %35 = memref.load %arg8[%c33] : memref<288xf32, #tpu.memory_space<smem>>
    %c34 = arith.constant 34 : index
    %36 = memref.load %arg8[%c34] : memref<288xf32, #tpu.memory_space<smem>>
    %c35 = arith.constant 35 : index
    %37 = memref.load %arg8[%c35] : memref<288xf32, #tpu.memory_space<smem>>
    %c36 = arith.constant 36 : index
    %38 = memref.load %arg8[%c36] : memref<288xf32, #tpu.memory_space<smem>>
    %c37 = arith.constant 37 : index
    %39 = memref.load %arg8[%c37] : memref<288xf32, #tpu.memory_space<smem>>
    %c38 = arith.constant 38 : index
    %40 = memref.load %arg8[%c38] : memref<288xf32, #tpu.memory_space<smem>>
    %c39 = arith.constant 39 : index
    %41 = memref.load %arg8[%c39] : memref<288xf32, #tpu.memory_space<smem>>
    %c40 = arith.constant 40 : index
    %42 = memref.load %arg8[%c40] : memref<288xf32, #tpu.memory_space<smem>>
    %c41 = arith.constant 41 : index
    %43 = memref.load %arg8[%c41] : memref<288xf32, #tpu.memory_space<smem>>
    %c42 = arith.constant 42 : index
    %44 = memref.load %arg8[%c42] : memref<288xf32, #tpu.memory_space<smem>>
    %c43 = arith.constant 43 : index
    %45 = memref.load %arg8[%c43] : memref<288xf32, #tpu.memory_space<smem>>
    %c44 = arith.constant 44 : index
    %46 = memref.load %arg8[%c44] : memref<288xf32, #tpu.memory_space<smem>>
    %c45 = arith.constant 45 : index
    %47 = memref.load %arg8[%c45] : memref<288xf32, #tpu.memory_space<smem>>
    %c46 = arith.constant 46 : index
    %48 = memref.load %arg8[%c46] : memref<288xf32, #tpu.memory_space<smem>>
    %c47 = arith.constant 47 : index
    %49 = memref.load %arg8[%c47] : memref<288xf32, #tpu.memory_space<smem>>
    %c48 = arith.constant 48 : index
    %50 = memref.load %arg8[%c48] : memref<288xf32, #tpu.memory_space<smem>>
    %c49 = arith.constant 49 : index
    %51 = memref.load %arg8[%c49] : memref<288xf32, #tpu.memory_space<smem>>
    %c50 = arith.constant 50 : index
    %52 = memref.load %arg8[%c50] : memref<288xf32, #tpu.memory_space<smem>>
    %c51 = arith.constant 51 : index
    %53 = memref.load %arg8[%c51] : memref<288xf32, #tpu.memory_space<smem>>
    %c52 = arith.constant 52 : index
    %54 = memref.load %arg8[%c52] : memref<288xf32, #tpu.memory_space<smem>>
    %c53 = arith.constant 53 : index
    %55 = memref.load %arg8[%c53] : memref<288xf32, #tpu.memory_space<smem>>
    %c54 = arith.constant 54 : index
    %56 = memref.load %arg8[%c54] : memref<288xf32, #tpu.memory_space<smem>>
    %c55 = arith.constant 55 : index
    %57 = memref.load %arg8[%c55] : memref<288xf32, #tpu.memory_space<smem>>
    %c56 = arith.constant 56 : index
    %58 = memref.load %arg8[%c56] : memref<288xf32, #tpu.memory_space<smem>>
    %c57 = arith.constant 57 : index
    %59 = memref.load %arg8[%c57] : memref<288xf32, #tpu.memory_space<smem>>
    %c58 = arith.constant 58 : index
    %60 = memref.load %arg8[%c58] : memref<288xf32, #tpu.memory_space<smem>>
    %c59 = arith.constant 59 : index
    %61 = memref.load %arg8[%c59] : memref<288xf32, #tpu.memory_space<smem>>
    %c60 = arith.constant 60 : index
    %62 = memref.load %arg8[%c60] : memref<288xf32, #tpu.memory_space<smem>>
    %c61 = arith.constant 61 : index
    %63 = memref.load %arg8[%c61] : memref<288xf32, #tpu.memory_space<smem>>
    %c62 = arith.constant 62 : index
    %64 = memref.load %arg8[%c62] : memref<288xf32, #tpu.memory_space<smem>>
    %c63 = arith.constant 63 : index
    %65 = memref.load %arg8[%c63] : memref<288xf32, #tpu.memory_space<smem>>
    %c64 = arith.constant 64 : index
    %66 = memref.load %arg8[%c64] : memref<288xf32, #tpu.memory_space<smem>>
    %c65 = arith.constant 65 : index
    %67 = memref.load %arg8[%c65] : memref<288xf32, #tpu.memory_space<smem>>
    %c66 = arith.constant 66 : index
    %68 = memref.load %arg8[%c66] : memref<288xf32, #tpu.memory_space<smem>>
    %c67 = arith.constant 67 : index
    %69 = memref.load %arg8[%c67] : memref<288xf32, #tpu.memory_space<smem>>
    %c68 = arith.constant 68 : index
    %70 = memref.load %arg8[%c68] : memref<288xf32, #tpu.memory_space<smem>>
    %c69 = arith.constant 69 : index
    %71 = memref.load %arg8[%c69] : memref<288xf32, #tpu.memory_space<smem>>
    %c70 = arith.constant 70 : index
    %72 = memref.load %arg8[%c70] : memref<288xf32, #tpu.memory_space<smem>>
    %c71 = arith.constant 71 : index
    %73 = memref.load %arg8[%c71] : memref<288xf32, #tpu.memory_space<smem>>
    %c72 = arith.constant 72 : index
    %74 = memref.load %arg8[%c72] : memref<288xf32, #tpu.memory_space<smem>>
    %c73 = arith.constant 73 : index
    %75 = memref.load %arg8[%c73] : memref<288xf32, #tpu.memory_space<smem>>
    %c74 = arith.constant 74 : index
    %76 = memref.load %arg8[%c74] : memref<288xf32, #tpu.memory_space<smem>>
    %c75 = arith.constant 75 : index
    %77 = memref.load %arg8[%c75] : memref<288xf32, #tpu.memory_space<smem>>
    %c76 = arith.constant 76 : index
    %78 = memref.load %arg8[%c76] : memref<288xf32, #tpu.memory_space<smem>>
    %c77 = arith.constant 77 : index
    %79 = memref.load %arg8[%c77] : memref<288xf32, #tpu.memory_space<smem>>
    %c78 = arith.constant 78 : index
    %80 = memref.load %arg8[%c78] : memref<288xf32, #tpu.memory_space<smem>>
    %c79 = arith.constant 79 : index
    %81 = memref.load %arg8[%c79] : memref<288xf32, #tpu.memory_space<smem>>
    %c80 = arith.constant 80 : index
    %82 = memref.load %arg8[%c80] : memref<288xf32, #tpu.memory_space<smem>>
    %c81 = arith.constant 81 : index
    %83 = memref.load %arg8[%c81] : memref<288xf32, #tpu.memory_space<smem>>
    %c82 = arith.constant 82 : index
    %84 = memref.load %arg8[%c82] : memref<288xf32, #tpu.memory_space<smem>>
    %c83 = arith.constant 83 : index
    %85 = memref.load %arg8[%c83] : memref<288xf32, #tpu.memory_space<smem>>
    %c84 = arith.constant 84 : index
    %86 = memref.load %arg8[%c84] : memref<288xf32, #tpu.memory_space<smem>>
    %c85 = arith.constant 85 : index
    %87 = memref.load %arg8[%c85] : memref<288xf32, #tpu.memory_space<smem>>
    %c86 = arith.constant 86 : index
    %88 = memref.load %arg8[%c86] : memref<288xf32, #tpu.memory_space<smem>>
    %c87 = arith.constant 87 : index
    %89 = memref.load %arg8[%c87] : memref<288xf32, #tpu.memory_space<smem>>
    %c88 = arith.constant 88 : index
    %90 = memref.load %arg8[%c88] : memref<288xf32, #tpu.memory_space<smem>>
    %c89 = arith.constant 89 : index
    %91 = memref.load %arg8[%c89] : memref<288xf32, #tpu.memory_space<smem>>
    %c90 = arith.constant 90 : index
    %92 = memref.load %arg8[%c90] : memref<288xf32, #tpu.memory_space<smem>>
    %c91 = arith.constant 91 : index
    %93 = memref.load %arg8[%c91] : memref<288xf32, #tpu.memory_space<smem>>
    %c92 = arith.constant 92 : index
    %94 = memref.load %arg8[%c92] : memref<288xf32, #tpu.memory_space<smem>>
    %c93 = arith.constant 93 : index
    %95 = memref.load %arg8[%c93] : memref<288xf32, #tpu.memory_space<smem>>
    %c94 = arith.constant 94 : index
    %96 = memref.load %arg8[%c94] : memref<288xf32, #tpu.memory_space<smem>>
    %c95 = arith.constant 95 : index
    %97 = memref.load %arg8[%c95] : memref<288xf32, #tpu.memory_space<smem>>
    %c192 = arith.constant 192 : index
    %98 = memref.load %arg8[%c192] : memref<288xf32, #tpu.memory_space<smem>>
    %c193 = arith.constant 193 : index
    %99 = memref.load %arg8[%c193] : memref<288xf32, #tpu.memory_space<smem>>
    %c194 = arith.constant 194 : index
    %100 = memref.load %arg8[%c194] : memref<288xf32, #tpu.memory_space<smem>>
    %c195 = arith.constant 195 : index
    %101 = memref.load %arg8[%c195] : memref<288xf32, #tpu.memory_space<smem>>
    %c196 = arith.constant 196 : index
    %102 = memref.load %arg8[%c196] : memref<288xf32, #tpu.memory_space<smem>>
    %c197 = arith.constant 197 : index
    %103 = memref.load %arg8[%c197] : memref<288xf32, #tpu.memory_space<smem>>
    %c198 = arith.constant 198 : index
    %104 = memref.load %arg8[%c198] : memref<288xf32, #tpu.memory_space<smem>>
    %c199 = arith.constant 199 : index
    %105 = memref.load %arg8[%c199] : memref<288xf32, #tpu.memory_space<smem>>
    %c200 = arith.constant 200 : index
    %106 = memref.load %arg8[%c200] : memref<288xf32, #tpu.memory_space<smem>>
    %c201 = arith.constant 201 : index
    %107 = memref.load %arg8[%c201] : memref<288xf32, #tpu.memory_space<smem>>
    %c202 = arith.constant 202 : index
    %108 = memref.load %arg8[%c202] : memref<288xf32, #tpu.memory_space<smem>>
    %c203 = arith.constant 203 : index
    %109 = memref.load %arg8[%c203] : memref<288xf32, #tpu.memory_space<smem>>
    %c204 = arith.constant 204 : index
    %110 = memref.load %arg8[%c204] : memref<288xf32, #tpu.memory_space<smem>>
    %c205 = arith.constant 205 : index
    %111 = memref.load %arg8[%c205] : memref<288xf32, #tpu.memory_space<smem>>
    %c206 = arith.constant 206 : index
    %112 = memref.load %arg8[%c206] : memref<288xf32, #tpu.memory_space<smem>>
    %c207 = arith.constant 207 : index
    %113 = memref.load %arg8[%c207] : memref<288xf32, #tpu.memory_space<smem>>
    %c208 = arith.constant 208 : index
    %114 = memref.load %arg8[%c208] : memref<288xf32, #tpu.memory_space<smem>>
    %c209 = arith.constant 209 : index
    %115 = memref.load %arg8[%c209] : memref<288xf32, #tpu.memory_space<smem>>
    %c210 = arith.constant 210 : index
    %116 = memref.load %arg8[%c210] : memref<288xf32, #tpu.memory_space<smem>>
    %c211 = arith.constant 211 : index
    %117 = memref.load %arg8[%c211] : memref<288xf32, #tpu.memory_space<smem>>
    %c212 = arith.constant 212 : index
    %118 = memref.load %arg8[%c212] : memref<288xf32, #tpu.memory_space<smem>>
    %c213 = arith.constant 213 : index
    %119 = memref.load %arg8[%c213] : memref<288xf32, #tpu.memory_space<smem>>
    %c214 = arith.constant 214 : index
    %120 = memref.load %arg8[%c214] : memref<288xf32, #tpu.memory_space<smem>>
    %c215 = arith.constant 215 : index
    %121 = memref.load %arg8[%c215] : memref<288xf32, #tpu.memory_space<smem>>
    %c216 = arith.constant 216 : index
    %122 = memref.load %arg8[%c216] : memref<288xf32, #tpu.memory_space<smem>>
    %c217 = arith.constant 217 : index
    %123 = memref.load %arg8[%c217] : memref<288xf32, #tpu.memory_space<smem>>
    %c218 = arith.constant 218 : index
    %124 = memref.load %arg8[%c218] : memref<288xf32, #tpu.memory_space<smem>>
    %c219 = arith.constant 219 : index
    %125 = memref.load %arg8[%c219] : memref<288xf32, #tpu.memory_space<smem>>
    %c220 = arith.constant 220 : index
    %126 = memref.load %arg8[%c220] : memref<288xf32, #tpu.memory_space<smem>>
    %c221 = arith.constant 221 : index
    %127 = memref.load %arg8[%c221] : memref<288xf32, #tpu.memory_space<smem>>
    %c222 = arith.constant 222 : index
    %128 = memref.load %arg8[%c222] : memref<288xf32, #tpu.memory_space<smem>>
    %c223 = arith.constant 223 : index
    %129 = memref.load %arg8[%c223] : memref<288xf32, #tpu.memory_space<smem>>
    %c224 = arith.constant 224 : index
    %130 = memref.load %arg8[%c224] : memref<288xf32, #tpu.memory_space<smem>>
    %c225 = arith.constant 225 : index
    %131 = memref.load %arg8[%c225] : memref<288xf32, #tpu.memory_space<smem>>
    %c226 = arith.constant 226 : index
    %132 = memref.load %arg8[%c226] : memref<288xf32, #tpu.memory_space<smem>>
    %c227 = arith.constant 227 : index
    %133 = memref.load %arg8[%c227] : memref<288xf32, #tpu.memory_space<smem>>
    %c228 = arith.constant 228 : index
    %134 = memref.load %arg8[%c228] : memref<288xf32, #tpu.memory_space<smem>>
    %c229 = arith.constant 229 : index
    %135 = memref.load %arg8[%c229] : memref<288xf32, #tpu.memory_space<smem>>
    %c230 = arith.constant 230 : index
    %136 = memref.load %arg8[%c230] : memref<288xf32, #tpu.memory_space<smem>>
    %c231 = arith.constant 231 : index
    %137 = memref.load %arg8[%c231] : memref<288xf32, #tpu.memory_space<smem>>
    %c232 = arith.constant 232 : index
    %138 = memref.load %arg8[%c232] : memref<288xf32, #tpu.memory_space<smem>>
    %c233 = arith.constant 233 : index
    %139 = memref.load %arg8[%c233] : memref<288xf32, #tpu.memory_space<smem>>
    %c234 = arith.constant 234 : index
    %140 = memref.load %arg8[%c234] : memref<288xf32, #tpu.memory_space<smem>>
    %c235 = arith.constant 235 : index
    %141 = memref.load %arg8[%c235] : memref<288xf32, #tpu.memory_space<smem>>
    %c236 = arith.constant 236 : index
    %142 = memref.load %arg8[%c236] : memref<288xf32, #tpu.memory_space<smem>>
    %c237 = arith.constant 237 : index
    %143 = memref.load %arg8[%c237] : memref<288xf32, #tpu.memory_space<smem>>
    %c238 = arith.constant 238 : index
    %144 = memref.load %arg8[%c238] : memref<288xf32, #tpu.memory_space<smem>>
    %c239 = arith.constant 239 : index
    %145 = memref.load %arg8[%c239] : memref<288xf32, #tpu.memory_space<smem>>
    %c240 = arith.constant 240 : index
    %146 = memref.load %arg8[%c240] : memref<288xf32, #tpu.memory_space<smem>>
    %c241 = arith.constant 241 : index
    %147 = memref.load %arg8[%c241] : memref<288xf32, #tpu.memory_space<smem>>
    %c242 = arith.constant 242 : index
    %148 = memref.load %arg8[%c242] : memref<288xf32, #tpu.memory_space<smem>>
    %c243 = arith.constant 243 : index
    %149 = memref.load %arg8[%c243] : memref<288xf32, #tpu.memory_space<smem>>
    %c244 = arith.constant 244 : index
    %150 = memref.load %arg8[%c244] : memref<288xf32, #tpu.memory_space<smem>>
    %c245 = arith.constant 245 : index
    %151 = memref.load %arg8[%c245] : memref<288xf32, #tpu.memory_space<smem>>
    %c246 = arith.constant 246 : index
    %152 = memref.load %arg8[%c246] : memref<288xf32, #tpu.memory_space<smem>>
    %c247 = arith.constant 247 : index
    %153 = memref.load %arg8[%c247] : memref<288xf32, #tpu.memory_space<smem>>
    %c248 = arith.constant 248 : index
    %154 = memref.load %arg8[%c248] : memref<288xf32, #tpu.memory_space<smem>>
    %c249 = arith.constant 249 : index
    %155 = memref.load %arg8[%c249] : memref<288xf32, #tpu.memory_space<smem>>
    %c250 = arith.constant 250 : index
    %156 = memref.load %arg8[%c250] : memref<288xf32, #tpu.memory_space<smem>>
    %c251 = arith.constant 251 : index
    %157 = memref.load %arg8[%c251] : memref<288xf32, #tpu.memory_space<smem>>
    %c252 = arith.constant 252 : index
    %158 = memref.load %arg8[%c252] : memref<288xf32, #tpu.memory_space<smem>>
    %c253 = arith.constant 253 : index
    %159 = memref.load %arg8[%c253] : memref<288xf32, #tpu.memory_space<smem>>
    %c254 = arith.constant 254 : index
    %160 = memref.load %arg8[%c254] : memref<288xf32, #tpu.memory_space<smem>>
    %c255 = arith.constant 255 : index
    %161 = memref.load %arg8[%c255] : memref<288xf32, #tpu.memory_space<smem>>
    %c256 = arith.constant 256 : index
    %162 = memref.load %arg8[%c256] : memref<288xf32, #tpu.memory_space<smem>>
    %c257 = arith.constant 257 : index
    %163 = memref.load %arg8[%c257] : memref<288xf32, #tpu.memory_space<smem>>
    %c258 = arith.constant 258 : index
    %164 = memref.load %arg8[%c258] : memref<288xf32, #tpu.memory_space<smem>>
    %c259 = arith.constant 259 : index
    %165 = memref.load %arg8[%c259] : memref<288xf32, #tpu.memory_space<smem>>
    %c260 = arith.constant 260 : index
    %166 = memref.load %arg8[%c260] : memref<288xf32, #tpu.memory_space<smem>>
    %c261 = arith.constant 261 : index
    %167 = memref.load %arg8[%c261] : memref<288xf32, #tpu.memory_space<smem>>
    %c262 = arith.constant 262 : index
    %168 = memref.load %arg8[%c262] : memref<288xf32, #tpu.memory_space<smem>>
    %c263 = arith.constant 263 : index
    %169 = memref.load %arg8[%c263] : memref<288xf32, #tpu.memory_space<smem>>
    %c264 = arith.constant 264 : index
    %170 = memref.load %arg8[%c264] : memref<288xf32, #tpu.memory_space<smem>>
    %c265 = arith.constant 265 : index
    %171 = memref.load %arg8[%c265] : memref<288xf32, #tpu.memory_space<smem>>
    %c266 = arith.constant 266 : index
    %172 = memref.load %arg8[%c266] : memref<288xf32, #tpu.memory_space<smem>>
    %c267 = arith.constant 267 : index
    %173 = memref.load %arg8[%c267] : memref<288xf32, #tpu.memory_space<smem>>
    %c268 = arith.constant 268 : index
    %174 = memref.load %arg8[%c268] : memref<288xf32, #tpu.memory_space<smem>>
    %c269 = arith.constant 269 : index
    %175 = memref.load %arg8[%c269] : memref<288xf32, #tpu.memory_space<smem>>
    %c270 = arith.constant 270 : index
    %176 = memref.load %arg8[%c270] : memref<288xf32, #tpu.memory_space<smem>>
    %c271 = arith.constant 271 : index
    %177 = memref.load %arg8[%c271] : memref<288xf32, #tpu.memory_space<smem>>
    %c272 = arith.constant 272 : index
    %178 = memref.load %arg8[%c272] : memref<288xf32, #tpu.memory_space<smem>>
    %c273 = arith.constant 273 : index
    %179 = memref.load %arg8[%c273] : memref<288xf32, #tpu.memory_space<smem>>
    %c274 = arith.constant 274 : index
    %180 = memref.load %arg8[%c274] : memref<288xf32, #tpu.memory_space<smem>>
    %c275 = arith.constant 275 : index
    %181 = memref.load %arg8[%c275] : memref<288xf32, #tpu.memory_space<smem>>
    %c276 = arith.constant 276 : index
    %182 = memref.load %arg8[%c276] : memref<288xf32, #tpu.memory_space<smem>>
    %c277 = arith.constant 277 : index
    %183 = memref.load %arg8[%c277] : memref<288xf32, #tpu.memory_space<smem>>
    %c278 = arith.constant 278 : index
    %184 = memref.load %arg8[%c278] : memref<288xf32, #tpu.memory_space<smem>>
    %c279 = arith.constant 279 : index
    %185 = memref.load %arg8[%c279] : memref<288xf32, #tpu.memory_space<smem>>
    %c280 = arith.constant 280 : index
    %186 = memref.load %arg8[%c280] : memref<288xf32, #tpu.memory_space<smem>>
    %c281 = arith.constant 281 : index
    %187 = memref.load %arg8[%c281] : memref<288xf32, #tpu.memory_space<smem>>
    %c282 = arith.constant 282 : index
    %188 = memref.load %arg8[%c282] : memref<288xf32, #tpu.memory_space<smem>>
    %c283 = arith.constant 283 : index
    %189 = memref.load %arg8[%c283] : memref<288xf32, #tpu.memory_space<smem>>
    %c284 = arith.constant 284 : index
    %190 = memref.load %arg8[%c284] : memref<288xf32, #tpu.memory_space<smem>>
    %c285 = arith.constant 285 : index
    %191 = memref.load %arg8[%c285] : memref<288xf32, #tpu.memory_space<smem>>
    %c286 = arith.constant 286 : index
    %192 = memref.load %arg8[%c286] : memref<288xf32, #tpu.memory_space<smem>>
    %c287 = arith.constant 287 : index
    %193 = memref.load %arg8[%c287] : memref<288xf32, #tpu.memory_space<smem>>
    %c0_0 = arith.constant 0 : index
    %194 = memref.load %arg9[%c0_0] : memref<4xf32, #tpu.memory_space<smem>>
    %c1_1 = arith.constant 1 : index
    %195 = memref.load %arg9[%c1_1] : memref<4xf32, #tpu.memory_space<smem>>
    %c2_2 = arith.constant 2 : index
    %196 = memref.load %arg9[%c2_2] : memref<4xf32, #tpu.memory_space<smem>>
    %c3_3 = arith.constant 3 : index
    %197 = memref.load %arg9[%c3_3] : memref<4xf32, #tpu.memory_space<smem>>
    %c0_4 = arith.constant 0 : index
    %c0_5 = arith.constant 0 : index
    %198 = vector.load %arg5[%c0_4, %c0_5] : memref<16x32xf32, #tpu.memory_space<vmem>>, vector<16x32xf32>
    %c0_6 = arith.constant 0 : index
    %c0_7 = arith.constant 0 : index
    %199 = vector.load %arg6[%c0_6, %c0_7] : memref<16x32xf32, #tpu.memory_space<vmem>>, vector<16x32xf32>
    %c0_8 = arith.constant 0 : index
    %c0_9 = arith.constant 0 : index
    %200 = vector.load %arg7[%c0_8, %c0_9] : memref<16x32xf32, #tpu.memory_space<vmem>>, vector<16x32xf32>
    %c0_10 = arith.constant 0 : index
    %c0_11 = arith.constant 0 : index
    %c0_12 = arith.constant 0 : index
    %c0_13 = arith.constant 0 : index
    %201 = vector.load %arg2[%c0_10, %c0_11, %c0_12, %c0_13] : memref<1x4x8x16xf32, #tpu.memory_space<vmem>>, vector<1x1x8x16xf32>
    %202 = vector.shape_cast %201 : vector<1x1x8x16xf32> to vector<8x16xf32>
    %c0_14 = arith.constant 0 : index
    %c0_15 = arith.constant 0 : index
    %c0_16 = arith.constant 0 : index
    %c0_17 = arith.constant 0 : index
    %203 = vector.load %arg3[%c0_14, %c0_15, %c0_16, %c0_17] : memref<1x4x8x16xf32, #tpu.memory_space<vmem>>, vector<1x1x8x16xf32>
    %204 = vector.shape_cast %203 : vector<1x1x8x16xf32> to vector<8x16xf32>
    %205 = vector.extract_strided_slice %204 {offsets = [7, 0], sizes = [1, 16], strides = [1, 1]} : vector<8x16xf32> to vector<1x16xf32>
    %cst = arith.constant 0.000000e+00 : f32
    %206 = vector.broadcast %cst : f32 to vector<1x16xf32>
    %207 = arith.select %0, %205, %206 : vector<1x16xf32>
    %c0_18 = arith.constant 0 : index
    %c0_19 = arith.constant 0 : index
    %c0_20 = arith.constant 0 : index
    %c0_21 = arith.constant 0 : index
    %208 = vector.load %arg4[%c0_18, %c0_19, %c0_20, %c0_21] : memref<1x4x8x16xf32, #tpu.memory_space<vmem>>, vector<1x1x8x16xf32>
    %209 = vector.shape_cast %208 : vector<1x1x8x16xf32> to vector<8x16xf32>
    %210 = vector.extract_strided_slice %209 {offsets = [0, 0], sizes = [1, 16], strides = [1, 1]} : vector<8x16xf32> to vector<1x16xf32>
    %cst_22 = arith.constant 0.000000e+00 : f32
    %211 = vector.broadcast %cst_22 : f32 to vector<1x16xf32>
    %212 = arith.select %1, %210, %211 : vector<1x16xf32>
    %213 = tpu.concatenate %207, %202, %212 in 0 : vector<1x16xf32>, vector<8x16xf32>, vector<1x16xf32> -> vector<10x16xf32>
    %cst_23 = arith.constant dense<0.000000e+00> : vector<10x32xf32>
    %214 = tpu.matmul %213, %198, %cst_23 {dimension_numbers = #tpu.dot_dimension_numbers<[1], [0], [0], [1], [0, 0, 1, 1], [], []>} : vector<10x16xf32>, vector<16x32xf32>, vector<10x32xf32> -> vector<10x32xf32>
    %215 = vector.extract_strided_slice %214 {offsets = [0, 0], sizes = [8, 32], strides = [1, 1]} : vector<10x32xf32> to vector<8x32xf32>
    %216 = vector.extract_strided_slice %214 {offsets = [1, 0], sizes = [8, 32], strides = [1, 1]} : vector<10x32xf32> to vector<8x32xf32>
    %217 = vector.extract_strided_slice %214 {offsets = [2, 0], sizes = [8, 32], strides = [1, 1]} : vector<10x32xf32> to vector<8x32xf32>
    %cst_24 = arith.constant dense<0.000000e+00> : vector<10x32xf32>
    %218 = tpu.matmul %213, %199, %cst_24 {dimension_numbers = #tpu.dot_dimension_numbers<[1], [0], [0], [1], [0, 0, 1, 1], [], []>} : vector<10x16xf32>, vector<16x32xf32>, vector<10x32xf32> -> vector<10x32xf32>
    %219 = vector.extract_strided_slice %218 {offsets = [0, 0], sizes = [8, 32], strides = [1, 1]} : vector<10x32xf32> to vector<8x32xf32>
    %220 = vector.extract_strided_slice %218 {offsets = [1, 0], sizes = [8, 32], strides = [1, 1]} : vector<10x32xf32> to vector<8x32xf32>
    %221 = vector.extract_strided_slice %218 {offsets = [2, 0], sizes = [8, 32], strides = [1, 1]} : vector<10x32xf32> to vector<8x32xf32>
    %cst_25 = arith.constant dense<0.000000e+00> : vector<10x32xf32>
    %222 = tpu.matmul %213, %200, %cst_25 {dimension_numbers = #tpu.dot_dimension_numbers<[1], [0], [0], [1], [0, 0, 1, 1], [], []>} : vector<10x16xf32>, vector<16x32xf32>, vector<10x32xf32> -> vector<10x32xf32>
    %223 = vector.extract_strided_slice %222 {offsets = [0, 0], sizes = [8, 32], strides = [1, 1]} : vector<10x32xf32> to vector<8x32xf32>
    %224 = vector.extract_strided_slice %222 {offsets = [1, 0], sizes = [8, 32], strides = [1, 1]} : vector<10x32xf32> to vector<8x32xf32>
    %225 = vector.extract_strided_slice %222 {offsets = [2, 0], sizes = [8, 32], strides = [1, 1]} : vector<10x32xf32> to vector<8x32xf32>
    %c0_26 = arith.constant 0 : index
    %c1_27 = arith.constant 1 : index
    %c0_28 = arith.constant 0 : index
    %c0_29 = arith.constant 0 : index
    %226 = vector.load %arg2[%c0_26, %c1_27, %c0_28, %c0_29] : memref<1x4x8x16xf32, #tpu.memory_space<vmem>>, vector<1x1x8x16xf32>
    %227 = vector.shape_cast %226 : vector<1x1x8x16xf32> to vector<8x16xf32>
    %c0_30 = arith.constant 0 : index
    %c1_31 = arith.constant 1 : index
    %c0_32 = arith.constant 0 : index
    %c0_33 = arith.constant 0 : index
    %228 = vector.load %arg3[%c0_30, %c1_31, %c0_32, %c0_33] : memref<1x4x8x16xf32, #tpu.memory_space<vmem>>, vector<1x1x8x16xf32>
    %229 = vector.shape_cast %228 : vector<1x1x8x16xf32> to vector<8x16xf32>
    %230 = vector.extract_strided_slice %229 {offsets = [7, 0], sizes = [1, 16], strides = [1, 1]} : vector<8x16xf32> to vector<1x16xf32>
    %cst_34 = arith.constant 0.000000e+00 : f32
    %231 = vector.broadcast %cst_34 : f32 to vector<1x16xf32>
    %232 = arith.select %0, %230, %231 : vector<1x16xf32>
    %c0_35 = arith.constant 0 : index
    %c1_36 = arith.constant 1 : index
    %c0_37 = arith.constant 0 : index
    %c0_38 = arith.constant 0 : index
    %233 = vector.load %arg4[%c0_35, %c1_36, %c0_37, %c0_38] : memref<1x4x8x16xf32, #tpu.memory_space<vmem>>, vector<1x1x8x16xf32>
    %234 = vector.shape_cast %233 : vector<1x1x8x16xf32> to vector<8x16xf32>
    %235 = vector.extract_strided_slice %234 {offsets = [0, 0], sizes = [1, 16], strides = [1, 1]} : vector<8x16xf32> to vector<1x16xf32>
    %cst_39 = arith.constant 0.000000e+00 : f32
    %236 = vector.broadcast %cst_39 : f32 to vector<1x16xf32>
    %237 = arith.select %1, %235, %236 : vector<1x16xf32>
    %238 = tpu.concatenate %232, %227, %237 in 0 : vector<1x16xf32>, vector<8x16xf32>, vector<1x16xf32> -> vector<10x16xf32>
    %cst_40 = arith.constant dense<0.000000e+00> : vector<10x32xf32>
    %239 = tpu.matmul %238, %198, %cst_40 {dimension_numbers = #tpu.dot_dimension_numbers<[1], [0], [0], [1], [0, 0, 1, 1], [], []>} : vector<10x16xf32>, vector<16x32xf32>, vector<10x32xf32> -> vector<10x32xf32>
    %240 = vector.extract_strided_slice %239 {offsets = [0, 0], sizes = [8, 32], strides = [1, 1]} : vector<10x32xf32> to vector<8x32xf32>
    %241 = vector.extract_strided_slice %239 {offsets = [1, 0], sizes = [8, 32], strides = [1, 1]} : vector<10x32xf32> to vector<8x32xf32>
    %242 = vector.extract_strided_slice %239 {offsets = [2, 0], sizes = [8, 32], strides = [1, 1]} : vector<10x32xf32> to vector<8x32xf32>
    %cst_41 = arith.constant dense<0.000000e+00> : vector<10x32xf32>
    %243 = tpu.matmul %238, %199, %cst_41 {dimension_numbers = #tpu.dot_dimension_numbers<[1], [0], [0], [1], [0, 0, 1, 1], [], []>} : vector<10x16xf32>, vector<16x32xf32>, vector<10x32xf32> -> vector<10x32xf32>
    %244 = vector.extract_strided_slice %243 {offsets = [0, 0], sizes = [8, 32], strides = [1, 1]} : vector<10x32xf32> to vector<8x32xf32>
    %245 = vector.extract_strided_slice %243 {offsets = [1, 0], sizes = [8, 32], strides = [1, 1]} : vector<10x32xf32> to vector<8x32xf32>
    %246 = vector.extract_strided_slice %243 {offsets = [2, 0], sizes = [8, 32], strides = [1, 1]} : vector<10x32xf32> to vector<8x32xf32>
    %cst_42 = arith.constant dense<0.000000e+00> : vector<10x32xf32>
    %247 = tpu.matmul %238, %200, %cst_42 {dimension_numbers = #tpu.dot_dimension_numbers<[1], [0], [0], [1], [0, 0, 1, 1], [], []>} : vector<10x16xf32>, vector<16x32xf32>, vector<10x32xf32> -> vector<10x32xf32>
    %248 = vector.extract_strided_slice %247 {offsets = [0, 0], sizes = [8, 32], strides = [1, 1]} : vector<10x32xf32> to vector<8x32xf32>
    %249 = vector.extract_strided_slice %247 {offsets = [1, 0], sizes = [8, 32], strides = [1, 1]} : vector<10x32xf32> to vector<8x32xf32>
    %250 = vector.extract_strided_slice %247 {offsets = [2, 0], sizes = [8, 32], strides = [1, 1]} : vector<10x32xf32> to vector<8x32xf32>
    %c0_43 = arith.constant 0 : index
    %c2_44 = arith.constant 2 : index
    %c0_45 = arith.constant 0 : index
    %c0_46 = arith.constant 0 : index
    %251 = vector.load %arg2[%c0_43, %c2_44, %c0_45, %c0_46] : memref<1x4x8x16xf32, #tpu.memory_space<vmem>>, vector<1x1x8x16xf32>
    %252 = vector.shape_cast %251 : vector<1x1x8x16xf32> to vector<8x16xf32>
    %c0_47 = arith.constant 0 : index
    %c2_48 = arith.constant 2 : index
    %c0_49 = arith.constant 0 : index
    %c0_50 = arith.constant 0 : index
    %253 = vector.load %arg3[%c0_47, %c2_48, %c0_49, %c0_50] : memref<1x4x8x16xf32, #tpu.memory_space<vmem>>, vector<1x1x8x16xf32>
    %254 = vector.shape_cast %253 : vector<1x1x8x16xf32> to vector<8x16xf32>
    %255 = vector.extract_strided_slice %254 {offsets = [7, 0], sizes = [1, 16], strides = [1, 1]} : vector<8x16xf32> to vector<1x16xf32>
    %cst_51 = arith.constant 0.000000e+00 : f32
    %256 = vector.broadcast %cst_51 : f32 to vector<1x16xf32>
    %257 = arith.select %0, %255, %256 : vector<1x16xf32>
    %c0_52 = arith.constant 0 : index
    %c2_53 = arith.constant 2 : index
    %c0_54 = arith.constant 0 : index
    %c0_55 = arith.constant 0 : index
    %258 = vector.load %arg4[%c0_52, %c2_53, %c0_54, %c0_55] : memref<1x4x8x16xf32, #tpu.memory_space<vmem>>, vector<1x1x8x16xf32>
    %259 = vector.shape_cast %258 : vector<1x1x8x16xf32> to vector<8x16xf32>
    %260 = vector.extract_strided_slice %259 {offsets = [0, 0], sizes = [1, 16], strides = [1, 1]} : vector<8x16xf32> to vector<1x16xf32>
    %cst_56 = arith.constant 0.000000e+00 : f32
    %261 = vector.broadcast %cst_56 : f32 to vector<1x16xf32>
    %262 = arith.select %1, %260, %261 : vector<1x16xf32>
    %263 = tpu.concatenate %257, %252, %262 in 0 : vector<1x16xf32>, vector<8x16xf32>, vector<1x16xf32> -> vector<10x16xf32>
    %cst_57 = arith.constant dense<0.000000e+00> : vector<10x32xf32>
    %264 = tpu.matmul %263, %198, %cst_57 {dimension_numbers = #tpu.dot_dimension_numbers<[1], [0], [0], [1], [0, 0, 1, 1], [], []>} : vector<10x16xf32>, vector<16x32xf32>, vector<10x32xf32> -> vector<10x32xf32>
    %265 = vector.extract_strided_slice %264 {offsets = [0, 0], sizes = [8, 32], strides = [1, 1]} : vector<10x32xf32> to vector<8x32xf32>
    %266 = vector.extract_strided_slice %264 {offsets = [1, 0], sizes = [8, 32], strides = [1, 1]} : vector<10x32xf32> to vector<8x32xf32>
    %267 = vector.extract_strided_slice %264 {offsets = [2, 0], sizes = [8, 32], strides = [1, 1]} : vector<10x32xf32> to vector<8x32xf32>
    %cst_58 = arith.constant dense<0.000000e+00> : vector<10x32xf32>
    %268 = tpu.matmul %263, %199, %cst_58 {dimension_numbers = #tpu.dot_dimension_numbers<[1], [0], [0], [1], [0, 0, 1, 1], [], []>} : vector<10x16xf32>, vector<16x32xf32>, vector<10x32xf32> -> vector<10x32xf32>
    %269 = vector.extract_strided_slice %268 {offsets = [0, 0], sizes = [8, 32], strides = [1, 1]} : vector<10x32xf32> to vector<8x32xf32>
    %270 = vector.extract_strided_slice %268 {offsets = [1, 0], sizes = [8, 32], strides = [1, 1]} : vector<10x32xf32> to vector<8x32xf32>
    %271 = vector.extract_strided_slice %268 {offsets = [2, 0], sizes = [8, 32], strides = [1, 1]} : vector<10x32xf32> to vector<8x32xf32>
    %cst_59 = arith.constant dense<0.000000e+00> : vector<10x32xf32>
    %272 = tpu.matmul %263, %200, %cst_59 {dimension_numbers = #tpu.dot_dimension_numbers<[1], [0], [0], [1], [0, 0, 1, 1], [], []>} : vector<10x16xf32>, vector<16x32xf32>, vector<10x32xf32> -> vector<10x32xf32>
    %273 = vector.extract_strided_slice %272 {offsets = [0, 0], sizes = [8, 32], strides = [1, 1]} : vector<10x32xf32> to vector<8x32xf32>
    %274 = vector.extract_strided_slice %272 {offsets = [1, 0], sizes = [8, 32], strides = [1, 1]} : vector<10x32xf32> to vector<8x32xf32>
    %275 = vector.extract_strided_slice %272 {offsets = [2, 0], sizes = [8, 32], strides = [1, 1]} : vector<10x32xf32> to vector<8x32xf32>
    %c0_60 = arith.constant 0 : index
    %c3_61 = arith.constant 3 : index
    %c0_62 = arith.constant 0 : index
    %c0_63 = arith.constant 0 : index
    %276 = vector.load %arg2[%c0_60, %c3_61, %c0_62, %c0_63] : memref<1x4x8x16xf32, #tpu.memory_space<vmem>>, vector<1x1x8x16xf32>
    %277 = vector.shape_cast %276 : vector<1x1x8x16xf32> to vector<8x16xf32>
    %c0_64 = arith.constant 0 : index
    %c3_65 = arith.constant 3 : index
    %c0_66 = arith.constant 0 : index
    %c0_67 = arith.constant 0 : index
    %278 = vector.load %arg3[%c0_64, %c3_65, %c0_66, %c0_67] : memref<1x4x8x16xf32, #tpu.memory_space<vmem>>, vector<1x1x8x16xf32>
    %279 = vector.shape_cast %278 : vector<1x1x8x16xf32> to vector<8x16xf32>
    %280 = vector.extract_strided_slice %279 {offsets = [7, 0], sizes = [1, 16], strides = [1, 1]} : vector<8x16xf32> to vector<1x16xf32>
    %cst_68 = arith.constant 0.000000e+00 : f32
    %281 = vector.broadcast %cst_68 : f32 to vector<1x16xf32>
    %282 = arith.select %0, %280, %281 : vector<1x16xf32>
    %c0_69 = arith.constant 0 : index
    %c3_70 = arith.constant 3 : index
    %c0_71 = arith.constant 0 : index
    %c0_72 = arith.constant 0 : index
    %283 = vector.load %arg4[%c0_69, %c3_70, %c0_71, %c0_72] : memref<1x4x8x16xf32, #tpu.memory_space<vmem>>, vector<1x1x8x16xf32>
    %284 = vector.shape_cast %283 : vector<1x1x8x16xf32> to vector<8x16xf32>
    %285 = vector.extract_strided_slice %284 {offsets = [0, 0], sizes = [1, 16], strides = [1, 1]} : vector<8x16xf32> to vector<1x16xf32>
    %cst_73 = arith.constant 0.000000e+00 : f32
    %286 = vector.broadcast %cst_73 : f32 to vector<1x16xf32>
    %287 = arith.select %1, %285, %286 : vector<1x16xf32>
    %288 = tpu.concatenate %282, %277, %287 in 0 : vector<1x16xf32>, vector<8x16xf32>, vector<1x16xf32> -> vector<10x16xf32>
    %cst_74 = arith.constant dense<0.000000e+00> : vector<10x32xf32>
    %289 = tpu.matmul %288, %198, %cst_74 {dimension_numbers = #tpu.dot_dimension_numbers<[1], [0], [0], [1], [0, 0, 1, 1], [], []>} : vector<10x16xf32>, vector<16x32xf32>, vector<10x32xf32> -> vector<10x32xf32>
    %290 = vector.extract_strided_slice %289 {offsets = [0, 0], sizes = [8, 32], strides = [1, 1]} : vector<10x32xf32> to vector<8x32xf32>
    %291 = vector.extract_strided_slice %289 {offsets = [1, 0], sizes = [8, 32], strides = [1, 1]} : vector<10x32xf32> to vector<8x32xf32>
    %292 = vector.extract_strided_slice %289 {offsets = [2, 0], sizes = [8, 32], strides = [1, 1]} : vector<10x32xf32> to vector<8x32xf32>
    %cst_75 = arith.constant dense<0.000000e+00> : vector<10x32xf32>
    %293 = tpu.matmul %288, %199, %cst_75 {dimension_numbers = #tpu.dot_dimension_numbers<[1], [0], [0], [1], [0, 0, 1, 1], [], []>} : vector<10x16xf32>, vector<16x32xf32>, vector<10x32xf32> -> vector<10x32xf32>
    %294 = vector.extract_strided_slice %293 {offsets = [0, 0], sizes = [8, 32], strides = [1, 1]} : vector<10x32xf32> to vector<8x32xf32>
    %295 = vector.extract_strided_slice %293 {offsets = [1, 0], sizes = [8, 32], strides = [1, 1]} : vector<10x32xf32> to vector<8x32xf32>
    %296 = vector.extract_strided_slice %293 {offsets = [2, 0], sizes = [8, 32], strides = [1, 1]} : vector<10x32xf32> to vector<8x32xf32>
    %cst_76 = arith.constant dense<0.000000e+00> : vector<10x32xf32>
    %297 = tpu.matmul %288, %200, %cst_76 {dimension_numbers = #tpu.dot_dimension_numbers<[1], [0], [0], [1], [0, 0, 1, 1], [], []>} : vector<10x16xf32>, vector<16x32xf32>, vector<10x32xf32> -> vector<10x32xf32>
    %298 = vector.extract_strided_slice %297 {offsets = [0, 0], sizes = [8, 32], strides = [1, 1]} : vector<10x32xf32> to vector<8x32xf32>
    %299 = vector.extract_strided_slice %297 {offsets = [1, 0], sizes = [8, 32], strides = [1, 1]} : vector<10x32xf32> to vector<8x32xf32>
    %300 = vector.extract_strided_slice %297 {offsets = [2, 0], sizes = [8, 32], strides = [1, 1]} : vector<10x32xf32> to vector<8x32xf32>
    %cst_77 = arith.constant 0.000000e+00 : f32
    %301 = vector.broadcast %cst_77 : f32 to vector<8x32xf32>
    %302 = vector.broadcast %2 : f32 to vector<8x32xf32>
    %303 = arith.mulf %302, %215 : vector<8x32xf32>
    %304 = arith.addf %301, %303 : vector<8x32xf32>
    %305 = vector.broadcast %3 : f32 to vector<8x32xf32>
    %306 = arith.mulf %305, %219 : vector<8x32xf32>
    %307 = arith.addf %304, %306 : vector<8x32xf32>
    %308 = vector.broadcast %4 : f32 to vector<8x32xf32>
    %309 = arith.mulf %308, %223 : vector<8x32xf32>
    %310 = arith.addf %307, %309 : vector<8x32xf32>
    %311 = vector.broadcast %50 : f32 to vector<8x32xf32>
    %312 = arith.mulf %311, %216 : vector<8x32xf32>
    %313 = arith.addf %310, %312 : vector<8x32xf32>
    %314 = vector.broadcast %51 : f32 to vector<8x32xf32>
    %315 = arith.mulf %314, %220 : vector<8x32xf32>
    %316 = arith.addf %313, %315 : vector<8x32xf32>
    %317 = vector.broadcast %52 : f32 to vector<8x32xf32>
    %318 = arith.mulf %317, %224 : vector<8x32xf32>
    %319 = arith.addf %316, %318 : vector<8x32xf32>
    %320 = vector.broadcast %5 : f32 to vector<8x32xf32>
    %321 = arith.mulf %320, %240 : vector<8x32xf32>
    %322 = arith.addf %319, %321 : vector<8x32xf32>
    %323 = vector.broadcast %6 : f32 to vector<8x32xf32>
    %324 = arith.mulf %323, %244 : vector<8x32xf32>
    %325 = arith.addf %322, %324 : vector<8x32xf32>
    %326 = vector.broadcast %7 : f32 to vector<8x32xf32>
    %327 = arith.mulf %326, %248 : vector<8x32xf32>
    %328 = arith.addf %325, %327 : vector<8x32xf32>
    %329 = vector.broadcast %53 : f32 to vector<8x32xf32>
    %330 = arith.mulf %329, %241 : vector<8x32xf32>
    %331 = arith.addf %328, %330 : vector<8x32xf32>
    %332 = vector.broadcast %54 : f32 to vector<8x32xf32>
    %333 = arith.mulf %332, %245 : vector<8x32xf32>
    %334 = arith.addf %331, %333 : vector<8x32xf32>
    %335 = vector.broadcast %55 : f32 to vector<8x32xf32>
    %336 = arith.mulf %335, %249 : vector<8x32xf32>
    %337 = arith.addf %334, %336 : vector<8x32xf32>
    %338 = vector.broadcast %8 : f32 to vector<8x32xf32>
    %339 = arith.mulf %338, %265 : vector<8x32xf32>
    %340 = arith.addf %337, %339 : vector<8x32xf32>
    %341 = vector.broadcast %9 : f32 to vector<8x32xf32>
    %342 = arith.mulf %341, %269 : vector<8x32xf32>
    %343 = arith.addf %340, %342 : vector<8x32xf32>
    %344 = vector.broadcast %10 : f32 to vector<8x32xf32>
    %345 = arith.mulf %344, %273 : vector<8x32xf32>
    %346 = arith.addf %343, %345 : vector<8x32xf32>
    %347 = vector.broadcast %56 : f32 to vector<8x32xf32>
    %348 = arith.mulf %347, %266 : vector<8x32xf32>
    %349 = arith.addf %346, %348 : vector<8x32xf32>
    %350 = vector.broadcast %57 : f32 to vector<8x32xf32>
    %351 = arith.mulf %350, %270 : vector<8x32xf32>
    %352 = arith.addf %349, %351 : vector<8x32xf32>
    %353 = vector.broadcast %58 : f32 to vector<8x32xf32>
    %354 = arith.mulf %353, %274 : vector<8x32xf32>
    %355 = arith.addf %352, %354 : vector<8x32xf32>
    %356 = vector.broadcast %11 : f32 to vector<8x32xf32>
    %357 = arith.mulf %356, %290 : vector<8x32xf32>
    %358 = arith.addf %355, %357 : vector<8x32xf32>
    %359 = vector.broadcast %12 : f32 to vector<8x32xf32>
    %360 = arith.mulf %359, %294 : vector<8x32xf32>
    %361 = arith.addf %358, %360 : vector<8x32xf32>
    %362 = vector.broadcast %13 : f32 to vector<8x32xf32>
    %363 = arith.mulf %362, %298 : vector<8x32xf32>
    %364 = arith.addf %361, %363 : vector<8x32xf32>
    %365 = vector.broadcast %59 : f32 to vector<8x32xf32>
    %366 = arith.mulf %365, %291 : vector<8x32xf32>
    %367 = arith.addf %364, %366 : vector<8x32xf32>
    %368 = vector.broadcast %60 : f32 to vector<8x32xf32>
    %369 = arith.mulf %368, %295 : vector<8x32xf32>
    %370 = arith.addf %367, %369 : vector<8x32xf32>
    %371 = vector.broadcast %61 : f32 to vector<8x32xf32>
    %372 = arith.mulf %371, %299 : vector<8x32xf32>
    %373 = arith.addf %370, %372 : vector<8x32xf32>
    %374 = vector.broadcast %194 : f32 to vector<8x32xf32>
    %375 = arith.addf %373, %374 : vector<8x32xf32>
    %c0_78 = arith.constant 0 : index
    %c0_79 = arith.constant 0 : index
    %c0_80 = arith.constant 0 : index
    %c0_81 = arith.constant 0 : index
    %376 = vector.load %arg10[%c0_78, %c0_79, %c0_80, %c0_81] : memref<1x4x8x64xf32, #tpu.memory_space<vmem>>, vector<1x1x8x32xf32>
    %377 = vector.shape_cast %376 : vector<1x1x8x32xf32> to vector<8x32xf32>
    %378 = vector.shape_cast %375 : vector<8x32xf32> to vector<1x1x8x32xf32>
    tpu.vector_store %arg10[%c0_78, %c0_79, %c0_80, %c0_81], %378 {strides = array<i32>} : memref<1x4x8x64xf32, #tpu.memory_space<vmem>>, vector<1x1x8x32xf32>,
    %cst_82 = arith.constant 0.000000e+00 : f32
    %379 = vector.broadcast %cst_82 : f32 to vector<8x32xf32>
    %380 = vector.broadcast %98 : f32 to vector<8x32xf32>
    %381 = arith.mulf %380, %216 : vector<8x32xf32>
    %382 = arith.addf %379, %381 : vector<8x32xf32>
    %383 = vector.broadcast %99 : f32 to vector<8x32xf32>
    %384 = arith.mulf %383, %220 : vector<8x32xf32>
    %385 = arith.addf %382, %384 : vector<8x32xf32>
    %386 = vector.broadcast %100 : f32 to vector<8x32xf32>
    %387 = arith.mulf %386, %224 : vector<8x32xf32>
    %388 = arith.addf %385, %387 : vector<8x32xf32>
    %389 = vector.broadcast %146 : f32 to vector<8x32xf32>
    %390 = arith.mulf %389, %217 : vector<8x32xf32>
    %391 = arith.addf %388, %390 : vector<8x32xf32>
    %392 = vector.broadcast %147 : f32 to vector<8x32xf32>
    %393 = arith.mulf %392, %221 : vector<8x32xf32>
    %394 = arith.addf %391, %393 : vector<8x32xf32>
    %395 = vector.broadcast %148 : f32 to vector<8x32xf32>
    %396 = arith.mulf %395, %225 : vector<8x32xf32>
    %397 = arith.addf %394, %396 : vector<8x32xf32>
    %398 = vector.broadcast %101 : f32 to vector<8x32xf32>
    %399 = arith.mulf %398, %241 : vector<8x32xf32>
    %400 = arith.addf %397, %399 : vector<8x32xf32>
    %401 = vector.broadcast %102 : f32 to vector<8x32xf32>
    %402 = arith.mulf %401, %245 : vector<8x32xf32>
    %403 = arith.addf %400, %402 : vector<8x32xf32>
    %404 = vector.broadcast %103 : f32 to vector<8x32xf32>
    %405 = arith.mulf %404, %249 : vector<8x32xf32>
    %406 = arith.addf %403, %405 : vector<8x32xf32>
    %407 = vector.broadcast %149 : f32 to vector<8x32xf32>
    %408 = arith.mulf %407, %242 : vector<8x32xf32>
    %409 = arith.addf %406, %408 : vector<8x32xf32>
    %410 = vector.broadcast %150 : f32 to vector<8x32xf32>
    %411 = arith.mulf %410, %246 : vector<8x32xf32>
    %412 = arith.addf %409, %411 : vector<8x32xf32>
    %413 = vector.broadcast %151 : f32 to vector<8x32xf32>
    %414 = arith.mulf %413, %250 : vector<8x32xf32>
    %415 = arith.addf %412, %414 : vector<8x32xf32>
    %416 = vector.broadcast %104 : f32 to vector<8x32xf32>
    %417 = arith.mulf %416, %266 : vector<8x32xf32>
    %418 = arith.addf %415, %417 : vector<8x32xf32>
    %419 = vector.broadcast %105 : f32 to vector<8x32xf32>
    %420 = arith.mulf %419, %270 : vector<8x32xf32>
    %421 = arith.addf %418, %420 : vector<8x32xf32>
    %422 = vector.broadcast %106 : f32 to vector<8x32xf32>
    %423 = arith.mulf %422, %274 : vector<8x32xf32>
    %424 = arith.addf %421, %423 : vector<8x32xf32>
    %425 = vector.broadcast %152 : f32 to vector<8x32xf32>
    %426 = arith.mulf %425, %267 : vector<8x32xf32>
    %427 = arith.addf %424, %426 : vector<8x32xf32>
    %428 = vector.broadcast %153 : f32 to vector<8x32xf32>
    %429 = arith.mulf %428, %271 : vector<8x32xf32>
    %430 = arith.addf %427, %429 : vector<8x32xf32>
    %431 = vector.broadcast %154 : f32 to vector<8x32xf32>
    %432 = arith.mulf %431, %275 : vector<8x32xf32>
    %433 = arith.addf %430, %432 : vector<8x32xf32>
    %434 = vector.broadcast %107 : f32 to vector<8x32xf32>
    %435 = arith.mulf %434, %291 : vector<8x32xf32>
    %436 = arith.addf %433, %435 : vector<8x32xf32>
    %437 = vector.broadcast %108 : f32 to vector<8x32xf32>
    %438 = arith.mulf %437, %295 : vector<8x32xf32>
    %439 = arith.addf %436, %438 : vector<8x32xf32>
    %440 = vector.broadcast %109 : f32 to vector<8x32xf32>
    %441 = arith.mulf %440, %299 : vector<8x32xf32>
    %442 = arith.addf %439, %441 : vector<8x32xf32>
    %443 = vector.broadcast %155 : f32 to vector<8x32xf32>
    %444 = arith.mulf %443, %292 : vector<8x32xf32>
    %445 = arith.addf %442, %444 : vector<8x32xf32>
    %446 = vector.broadcast %156 : f32 to vector<8x32xf32>
    %447 = arith.mulf %446, %296 : vector<8x32xf32>
    %448 = arith.addf %445, %447 : vector<8x32xf32>
    %449 = vector.broadcast %157 : f32 to vector<8x32xf32>
    %450 = arith.mulf %449, %300 : vector<8x32xf32>
    %451 = arith.addf %448, %450 : vector<8x32xf32>
    %452 = vector.broadcast %194 : f32 to vector<8x32xf32>
    %453 = arith.addf %451, %452 : vector<8x32xf32>
    %c0_83 = arith.constant 0 : index
    %c0_84 = arith.constant 0 : index
    %c0_85 = arith.constant 0 : index
    %c32_86 = arith.constant 32 : index
    %454 = vector.load %arg10[%c0_83, %c0_84, %c0_85, %c32_86] : memref<1x4x8x64xf32, #tpu.memory_space<vmem>>, vector<1x1x8x32xf32>
    %455 = vector.shape_cast %454 : vector<1x1x8x32xf32> to vector<8x32xf32>
    %456 = vector.shape_cast %453 : vector<8x32xf32> to vector<1x1x8x32xf32>
    tpu.vector_store %arg10[%c0_83, %c0_84, %c0_85, %c32_86], %456 {strides = array<i32>} : memref<1x4x8x64xf32, #tpu.memory_space<vmem>>, vector<1x1x8x32xf32>,
    %cst_87 = arith.constant 0.000000e+00 : f32
    %457 = vector.broadcast %cst_87 : f32 to vector<8x32xf32>
    %458 = vector.broadcast %14 : f32 to vector<8x32xf32>
    %459 = arith.mulf %458, %215 : vector<8x32xf32>
    %460 = arith.addf %457, %459 : vector<8x32xf32>
    %461 = vector.broadcast %15 : f32 to vector<8x32xf32>
    %462 = arith.mulf %461, %219 : vector<8x32xf32>
    %463 = arith.addf %460, %462 : vector<8x32xf32>
    %464 = vector.broadcast %16 : f32 to vector<8x32xf32>
    %465 = arith.mulf %464, %223 : vector<8x32xf32>
    %466 = arith.addf %463, %465 : vector<8x32xf32>
    %467 = vector.broadcast %62 : f32 to vector<8x32xf32>
    %468 = arith.mulf %467, %216 : vector<8x32xf32>
    %469 = arith.addf %466, %468 : vector<8x32xf32>
    %470 = vector.broadcast %63 : f32 to vector<8x32xf32>
    %471 = arith.mulf %470, %220 : vector<8x32xf32>
    %472 = arith.addf %469, %471 : vector<8x32xf32>
    %473 = vector.broadcast %64 : f32 to vector<8x32xf32>
    %474 = arith.mulf %473, %224 : vector<8x32xf32>
    %475 = arith.addf %472, %474 : vector<8x32xf32>
    %476 = vector.broadcast %17 : f32 to vector<8x32xf32>
    %477 = arith.mulf %476, %240 : vector<8x32xf32>
    %478 = arith.addf %475, %477 : vector<8x32xf32>
    %479 = vector.broadcast %18 : f32 to vector<8x32xf32>
    %480 = arith.mulf %479, %244 : vector<8x32xf32>
    %481 = arith.addf %478, %480 : vector<8x32xf32>
    %482 = vector.broadcast %19 : f32 to vector<8x32xf32>
    %483 = arith.mulf %482, %248 : vector<8x32xf32>
    %484 = arith.addf %481, %483 : vector<8x32xf32>
    %485 = vector.broadcast %65 : f32 to vector<8x32xf32>
    %486 = arith.mulf %485, %241 : vector<8x32xf32>
    %487 = arith.addf %484, %486 : vector<8x32xf32>
    %488 = vector.broadcast %66 : f32 to vector<8x32xf32>
    %489 = arith.mulf %488, %245 : vector<8x32xf32>
    %490 = arith.addf %487, %489 : vector<8x32xf32>
    %491 = vector.broadcast %67 : f32 to vector<8x32xf32>
    %492 = arith.mulf %491, %249 : vector<8x32xf32>
    %493 = arith.addf %490, %492 : vector<8x32xf32>
    %494 = vector.broadcast %20 : f32 to vector<8x32xf32>
    %495 = arith.mulf %494, %265 : vector<8x32xf32>
    %496 = arith.addf %493, %495 : vector<8x32xf32>
    %497 = vector.broadcast %21 : f32 to vector<8x32xf32>
    %498 = arith.mulf %497, %269 : vector<8x32xf32>
    %499 = arith.addf %496, %498 : vector<8x32xf32>
    %500 = vector.broadcast %22 : f32 to vector<8x32xf32>
    %501 = arith.mulf %500, %273 : vector<8x32xf32>
    %502 = arith.addf %499, %501 : vector<8x32xf32>
    %503 = vector.broadcast %68 : f32 to vector<8x32xf32>
    %504 = arith.mulf %503, %266 : vector<8x32xf32>
    %505 = arith.addf %502, %504 : vector<8x32xf32>
    %506 = vector.broadcast %69 : f32 to vector<8x32xf32>
    %507 = arith.mulf %506, %270 : vector<8x32xf32>
    %508 = arith.addf %505, %507 : vector<8x32xf32>
    %509 = vector.broadcast %70 : f32 to vector<8x32xf32>
    %510 = arith.mulf %509, %274 : vector<8x32xf32>
    %511 = arith.addf %508, %510 : vector<8x32xf32>
    %512 = vector.broadcast %23 : f32 to vector<8x32xf32>
    %513 = arith.mulf %512, %290 : vector<8x32xf32>
    %514 = arith.addf %511, %513 : vector<8x32xf32>
    %515 = vector.broadcast %24 : f32 to vector<8x32xf32>
    %516 = arith.mulf %515, %294 : vector<8x32xf32>
    %517 = arith.addf %514, %516 : vector<8x32xf32>
    %518 = vector.broadcast %25 : f32 to vector<8x32xf32>
    %519 = arith.mulf %518, %298 : vector<8x32xf32>
    %520 = arith.addf %517, %519 : vector<8x32xf32>
    %521 = vector.broadcast %71 : f32 to vector<8x32xf32>
    %522 = arith.mulf %521, %291 : vector<8x32xf32>
    %523 = arith.addf %520, %522 : vector<8x32xf32>
    %524 = vector.broadcast %72 : f32 to vector<8x32xf32>
    %525 = arith.mulf %524, %295 : vector<8x32xf32>
    %526 = arith.addf %523, %525 : vector<8x32xf32>
    %527 = vector.broadcast %73 : f32 to vector<8x32xf32>
    %528 = arith.mulf %527, %299 : vector<8x32xf32>
    %529 = arith.addf %526, %528 : vector<8x32xf32>
    %530 = vector.broadcast %195 : f32 to vector<8x32xf32>
    %531 = arith.addf %529, %530 : vector<8x32xf32>
    %c0_88 = arith.constant 0 : index
    %c1_89 = arith.constant 1 : index
    %c0_90 = arith.constant 0 : index
    %c0_91 = arith.constant 0 : index
    %532 = vector.load %arg10[%c0_88, %c1_89, %c0_90, %c0_91] : memref<1x4x8x64xf32, #tpu.memory_space<vmem>>, vector<1x1x8x32xf32>
    %533 = vector.shape_cast %532 : vector<1x1x8x32xf32> to vector<8x32xf32>
    %534 = vector.shape_cast %531 : vector<8x32xf32> to vector<1x1x8x32xf32>
    tpu.vector_store %arg10[%c0_88, %c1_89, %c0_90, %c0_91], %534 {strides = array<i32>} : memref<1x4x8x64xf32, #tpu.memory_space<vmem>>, vector<1x1x8x32xf32>,
    %cst_92 = arith.constant 0.000000e+00 : f32
    %535 = vector.broadcast %cst_92 : f32 to vector<8x32xf32>
    %536 = vector.broadcast %110 : f32 to vector<8x32xf32>
    %537 = arith.mulf %536, %216 : vector<8x32xf32>
    %538 = arith.addf %535, %537 : vector<8x32xf32>
    %539 = vector.broadcast %111 : f32 to vector<8x32xf32>
    %540 = arith.mulf %539, %220 : vector<8x32xf32>
    %541 = arith.addf %538, %540 : vector<8x32xf32>
    %542 = vector.broadcast %112 : f32 to vector<8x32xf32>
    %543 = arith.mulf %542, %224 : vector<8x32xf32>
    %544 = arith.addf %541, %543 : vector<8x32xf32>
    %545 = vector.broadcast %158 : f32 to vector<8x32xf32>
    %546 = arith.mulf %545, %217 : vector<8x32xf32>
    %547 = arith.addf %544, %546 : vector<8x32xf32>
    %548 = vector.broadcast %159 : f32 to vector<8x32xf32>
    %549 = arith.mulf %548, %221 : vector<8x32xf32>
    %550 = arith.addf %547, %549 : vector<8x32xf32>
    %551 = vector.broadcast %160 : f32 to vector<8x32xf32>
    %552 = arith.mulf %551, %225 : vector<8x32xf32>
    %553 = arith.addf %550, %552 : vector<8x32xf32>
    %554 = vector.broadcast %113 : f32 to vector<8x32xf32>
    %555 = arith.mulf %554, %241 : vector<8x32xf32>
    %556 = arith.addf %553, %555 : vector<8x32xf32>
    %557 = vector.broadcast %114 : f32 to vector<8x32xf32>
    %558 = arith.mulf %557, %245 : vector<8x32xf32>
    %559 = arith.addf %556, %558 : vector<8x32xf32>
    %560 = vector.broadcast %115 : f32 to vector<8x32xf32>
    %561 = arith.mulf %560, %249 : vector<8x32xf32>
    %562 = arith.addf %559, %561 : vector<8x32xf32>
    %563 = vector.broadcast %161 : f32 to vector<8x32xf32>
    %564 = arith.mulf %563, %242 : vector<8x32xf32>
    %565 = arith.addf %562, %564 : vector<8x32xf32>
    %566 = vector.broadcast %162 : f32 to vector<8x32xf32>
    %567 = arith.mulf %566, %246 : vector<8x32xf32>
    %568 = arith.addf %565, %567 : vector<8x32xf32>
    %569 = vector.broadcast %163 : f32 to vector<8x32xf32>
    %570 = arith.mulf %569, %250 : vector<8x32xf32>
    %571 = arith.addf %568, %570 : vector<8x32xf32>
    %572 = vector.broadcast %116 : f32 to vector<8x32xf32>
    %573 = arith.mulf %572, %266 : vector<8x32xf32>
    %574 = arith.addf %571, %573 : vector<8x32xf32>
    %575 = vector.broadcast %117 : f32 to vector<8x32xf32>
    %576 = arith.mulf %575, %270 : vector<8x32xf32>
    %577 = arith.addf %574, %576 : vector<8x32xf32>
    %578 = vector.broadcast %118 : f32 to vector<8x32xf32>
    %579 = arith.mulf %578, %274 : vector<8x32xf32>
    %580 = arith.addf %577, %579 : vector<8x32xf32>
    %581 = vector.broadcast %164 : f32 to vector<8x32xf32>
    %582 = arith.mulf %581, %267 : vector<8x32xf32>
    %583 = arith.addf %580, %582 : vector<8x32xf32>
    %584 = vector.broadcast %165 : f32 to vector<8x32xf32>
    %585 = arith.mulf %584, %271 : vector<8x32xf32>
    %586 = arith.addf %583, %585 : vector<8x32xf32>
    %587 = vector.broadcast %166 : f32 to vector<8x32xf32>
    %588 = arith.mulf %587, %275 : vector<8x32xf32>
    %589 = arith.addf %586, %588 : vector<8x32xf32>
    %590 = vector.broadcast %119 : f32 to vector<8x32xf32>
    %591 = arith.mulf %590, %291 : vector<8x32xf32>
    %592 = arith.addf %589, %591 : vector<8x32xf32>
    %593 = vector.broadcast %120 : f32 to vector<8x32xf32>
    %594 = arith.mulf %593, %295 : vector<8x32xf32>
    %595 = arith.addf %592, %594 : vector<8x32xf32>
    %596 = vector.broadcast %121 : f32 to vector<8x32xf32>
    %597 = arith.mulf %596, %299 : vector<8x32xf32>
    %598 = arith.addf %595, %597 : vector<8x32xf32>
    %599 = vector.broadcast %167 : f32 to vector<8x32xf32>
    %600 = arith.mulf %599, %292 : vector<8x32xf32>
    %601 = arith.addf %598, %600 : vector<8x32xf32>
    %602 = vector.broadcast %168 : f32 to vector<8x32xf32>
    %603 = arith.mulf %602, %296 : vector<8x32xf32>
    %604 = arith.addf %601, %603 : vector<8x32xf32>
    %605 = vector.broadcast %169 : f32 to vector<8x32xf32>
    %606 = arith.mulf %605, %300 : vector<8x32xf32>
    %607 = arith.addf %604, %606 : vector<8x32xf32>
    %608 = vector.broadcast %195 : f32 to vector<8x32xf32>
    %609 = arith.addf %607, %608 : vector<8x32xf32>
    %c0_93 = arith.constant 0 : index
    %c1_94 = arith.constant 1 : index
    %c0_95 = arith.constant 0 : index
    %c32_96 = arith.constant 32 : index
    %610 = vector.load %arg10[%c0_93, %c1_94, %c0_95, %c32_96] : memref<1x4x8x64xf32, #tpu.memory_space<vmem>>, vector<1x1x8x32xf32>
    %611 = vector.shape_cast %610 : vector<1x1x8x32xf32> to vector<8x32xf32>
    %612 = vector.shape_cast %609 : vector<8x32xf32> to vector<1x1x8x32xf32>
    tpu.vector_store %arg10[%c0_93, %c1_94, %c0_95, %c32_96], %612 {strides = array<i32>} : memref<1x4x8x64xf32, #tpu.memory_space<vmem>>, vector<1x1x8x32xf32>,
    %cst_97 = arith.constant 0.000000e+00 : f32
    %613 = vector.broadcast %cst_97 : f32 to vector<8x32xf32>
    %614 = vector.broadcast %26 : f32 to vector<8x32xf32>
    %615 = arith.mulf %614, %215 : vector<8x32xf32>
    %616 = arith.addf %613, %615 : vector<8x32xf32>
    %617 = vector.broadcast %27 : f32 to vector<8x32xf32>
    %618 = arith.mulf %617, %219 : vector<8x32xf32>
    %619 = arith.addf %616, %618 : vector<8x32xf32>
    %620 = vector.broadcast %28 : f32 to vector<8x32xf32>
    %621 = arith.mulf %620, %223 : vector<8x32xf32>
    %622 = arith.addf %619, %621 : vector<8x32xf32>
    %623 = vector.broadcast %74 : f32 to vector<8x32xf32>
    %624 = arith.mulf %623, %216 : vector<8x32xf32>
    %625 = arith.addf %622, %624 : vector<8x32xf32>
    %626 = vector.broadcast %75 : f32 to vector<8x32xf32>
    %627 = arith.mulf %626, %220 : vector<8x32xf32>
    %628 = arith.addf %625, %627 : vector<8x32xf32>
    %629 = vector.broadcast %76 : f32 to vector<8x32xf32>
    %630 = arith.mulf %629, %224 : vector<8x32xf32>
    %631 = arith.addf %628, %630 : vector<8x32xf32>
    %632 = vector.broadcast %29 : f32 to vector<8x32xf32>
    %633 = arith.mulf %632, %240 : vector<8x32xf32>
    %634 = arith.addf %631, %633 : vector<8x32xf32>
    %635 = vector.broadcast %30 : f32 to vector<8x32xf32>
    %636 = arith.mulf %635, %244 : vector<8x32xf32>
    %637 = arith.addf %634, %636 : vector<8x32xf32>
    %638 = vector.broadcast %31 : f32 to vector<8x32xf32>
    %639 = arith.mulf %638, %248 : vector<8x32xf32>
    %640 = arith.addf %637, %639 : vector<8x32xf32>
    %641 = vector.broadcast %77 : f32 to vector<8x32xf32>
    %642 = arith.mulf %641, %241 : vector<8x32xf32>
    %643 = arith.addf %640, %642 : vector<8x32xf32>
    %644 = vector.broadcast %78 : f32 to vector<8x32xf32>
    %645 = arith.mulf %644, %245 : vector<8x32xf32>
    %646 = arith.addf %643, %645 : vector<8x32xf32>
    %647 = vector.broadcast %79 : f32 to vector<8x32xf32>
    %648 = arith.mulf %647, %249 : vector<8x32xf32>
    %649 = arith.addf %646, %648 : vector<8x32xf32>
    %650 = vector.broadcast %32 : f32 to vector<8x32xf32>
    %651 = arith.mulf %650, %265 : vector<8x32xf32>
    %652 = arith.addf %649, %651 : vector<8x32xf32>
    %653 = vector.broadcast %33 : f32 to vector<8x32xf32>
    %654 = arith.mulf %653, %269 : vector<8x32xf32>
    %655 = arith.addf %652, %654 : vector<8x32xf32>
    %656 = vector.broadcast %34 : f32 to vector<8x32xf32>
    %657 = arith.mulf %656, %273 : vector<8x32xf32>
    %658 = arith.addf %655, %657 : vector<8x32xf32>
    %659 = vector.broadcast %80 : f32 to vector<8x32xf32>
    %660 = arith.mulf %659, %266 : vector<8x32xf32>
    %661 = arith.addf %658, %660 : vector<8x32xf32>
    %662 = vector.broadcast %81 : f32 to vector<8x32xf32>
    %663 = arith.mulf %662, %270 : vector<8x32xf32>
    %664 = arith.addf %661, %663 : vector<8x32xf32>
    %665 = vector.broadcast %82 : f32 to vector<8x32xf32>
    %666 = arith.mulf %665, %274 : vector<8x32xf32>
    %667 = arith.addf %664, %666 : vector<8x32xf32>
    %668 = vector.broadcast %35 : f32 to vector<8x32xf32>
    %669 = arith.mulf %668, %290 : vector<8x32xf32>
    %670 = arith.addf %667, %669 : vector<8x32xf32>
    %671 = vector.broadcast %36 : f32 to vector<8x32xf32>
    %672 = arith.mulf %671, %294 : vector<8x32xf32>
    %673 = arith.addf %670, %672 : vector<8x32xf32>
    %674 = vector.broadcast %37 : f32 to vector<8x32xf32>
    %675 = arith.mulf %674, %298 : vector<8x32xf32>
    %676 = arith.addf %673, %675 : vector<8x32xf32>
    %677 = vector.broadcast %83 : f32 to vector<8x32xf32>
    %678 = arith.mulf %677, %291 : vector<8x32xf32>
    %679 = arith.addf %676, %678 : vector<8x32xf32>
    %680 = vector.broadcast %84 : f32 to vector<8x32xf32>
    %681 = arith.mulf %680, %295 : vector<8x32xf32>
    %682 = arith.addf %679, %681 : vector<8x32xf32>
    %683 = vector.broadcast %85 : f32 to vector<8x32xf32>
    %684 = arith.mulf %683, %299 : vector<8x32xf32>
    %685 = arith.addf %682, %684 : vector<8x32xf32>
    %686 = vector.broadcast %196 : f32 to vector<8x32xf32>
    %687 = arith.addf %685, %686 : vector<8x32xf32>
    %c0_98 = arith.constant 0 : index
    %c2_99 = arith.constant 2 : index
    %c0_100 = arith.constant 0 : index
    %c0_101 = arith.constant 0 : index
    %688 = vector.load %arg10[%c0_98, %c2_99, %c0_100, %c0_101] : memref<1x4x8x64xf32, #tpu.memory_space<vmem>>, vector<1x1x8x32xf32>
    %689 = vector.shape_cast %688 : vector<1x1x8x32xf32> to vector<8x32xf32>
    %690 = vector.shape_cast %687 : vector<8x32xf32> to vector<1x1x8x32xf32>
    tpu.vector_store %arg10[%c0_98, %c2_99, %c0_100, %c0_101], %690 {strides = array<i32>} : memref<1x4x8x64xf32, #tpu.memory_space<vmem>>, vector<1x1x8x32xf32>,
    %cst_102 = arith.constant 0.000000e+00 : f32
    %691 = vector.broadcast %cst_102 : f32 to vector<8x32xf32>
    %692 = vector.broadcast %122 : f32 to vector<8x32xf32>
    %693 = arith.mulf %692, %216 : vector<8x32xf32>
    %694 = arith.addf %691, %693 : vector<8x32xf32>
    %695 = vector.broadcast %123 : f32 to vector<8x32xf32>
    %696 = arith.mulf %695, %220 : vector<8x32xf32>
    %697 = arith.addf %694, %696 : vector<8x32xf32>
    %698 = vector.broadcast %124 : f32 to vector<8x32xf32>
    %699 = arith.mulf %698, %224 : vector<8x32xf32>
    %700 = arith.addf %697, %699 : vector<8x32xf32>
    %701 = vector.broadcast %170 : f32 to vector<8x32xf32>
    %702 = arith.mulf %701, %217 : vector<8x32xf32>
    %703 = arith.addf %700, %702 : vector<8x32xf32>
    %704 = vector.broadcast %171 : f32 to vector<8x32xf32>
    %705 = arith.mulf %704, %221 : vector<8x32xf32>
    %706 = arith.addf %703, %705 : vector<8x32xf32>
    %707 = vector.broadcast %172 : f32 to vector<8x32xf32>
    %708 = arith.mulf %707, %225 : vector<8x32xf32>
    %709 = arith.addf %706, %708 : vector<8x32xf32>
    %710 = vector.broadcast %125 : f32 to vector<8x32xf32>
    %711 = arith.mulf %710, %241 : vector<8x32xf32>
    %712 = arith.addf %709, %711 : vector<8x32xf32>
    %713 = vector.broadcast %126 : f32 to vector<8x32xf32>
    %714 = arith.mulf %713, %245 : vector<8x32xf32>
    %715 = arith.addf %712, %714 : vector<8x32xf32>
    %716 = vector.broadcast %127 : f32 to vector<8x32xf32>
    %717 = arith.mulf %716, %249 : vector<8x32xf32>
    %718 = arith.addf %715, %717 : vector<8x32xf32>
    %719 = vector.broadcast %173 : f32 to vector<8x32xf32>
    %720 = arith.mulf %719, %242 : vector<8x32xf32>
    %721 = arith.addf %718, %720 : vector<8x32xf32>
    %722 = vector.broadcast %174 : f32 to vector<8x32xf32>
    %723 = arith.mulf %722, %246 : vector<8x32xf32>
    %724 = arith.addf %721, %723 : vector<8x32xf32>
    %725 = vector.broadcast %175 : f32 to vector<8x32xf32>
    %726 = arith.mulf %725, %250 : vector<8x32xf32>
    %727 = arith.addf %724, %726 : vector<8x32xf32>
    %728 = vector.broadcast %128 : f32 to vector<8x32xf32>
    %729 = arith.mulf %728, %266 : vector<8x32xf32>
    %730 = arith.addf %727, %729 : vector<8x32xf32>
    %731 = vector.broadcast %129 : f32 to vector<8x32xf32>
    %732 = arith.mulf %731, %270 : vector<8x32xf32>
    %733 = arith.addf %730, %732 : vector<8x32xf32>
    %734 = vector.broadcast %130 : f32 to vector<8x32xf32>
    %735 = arith.mulf %734, %274 : vector<8x32xf32>
    %736 = arith.addf %733, %735 : vector<8x32xf32>
    %737 = vector.broadcast %176 : f32 to vector<8x32xf32>
    %738 = arith.mulf %737, %267 : vector<8x32xf32>
    %739 = arith.addf %736, %738 : vector<8x32xf32>
    %740 = vector.broadcast %177 : f32 to vector<8x32xf32>
    %741 = arith.mulf %740, %271 : vector<8x32xf32>
    %742 = arith.addf %739, %741 : vector<8x32xf32>
    %743 = vector.broadcast %178 : f32 to vector<8x32xf32>
    %744 = arith.mulf %743, %275 : vector<8x32xf32>
    %745 = arith.addf %742, %744 : vector<8x32xf32>
    %746 = vector.broadcast %131 : f32 to vector<8x32xf32>
    %747 = arith.mulf %746, %291 : vector<8x32xf32>
    %748 = arith.addf %745, %747 : vector<8x32xf32>
    %749 = vector.broadcast %132 : f32 to vector<8x32xf32>
    %750 = arith.mulf %749, %295 : vector<8x32xf32>
    %751 = arith.addf %748, %750 : vector<8x32xf32>
    %752 = vector.broadcast %133 : f32 to vector<8x32xf32>
    %753 = arith.mulf %752, %299 : vector<8x32xf32>
    %754 = arith.addf %751, %753 : vector<8x32xf32>
    %755 = vector.broadcast %179 : f32 to vector<8x32xf32>
    %756 = arith.mulf %755, %292 : vector<8x32xf32>
    %757 = arith.addf %754, %756 : vector<8x32xf32>
    %758 = vector.broadcast %180 : f32 to vector<8x32xf32>
    %759 = arith.mulf %758, %296 : vector<8x32xf32>
    %760 = arith.addf %757, %759 : vector<8x32xf32>
    %761 = vector.broadcast %181 : f32 to vector<8x32xf32>
    %762 = arith.mulf %761, %300 : vector<8x32xf32>
    %763 = arith.addf %760, %762 : vector<8x32xf32>
    %764 = vector.broadcast %196 : f32 to vector<8x32xf32>
    %765 = arith.addf %763, %764 : vector<8x32xf32>
    %c0_103 = arith.constant 0 : index
    %c2_104 = arith.constant 2 : index
    %c0_105 = arith.constant 0 : index
    %c32_106 = arith.constant 32 : index
    %766 = vector.load %arg10[%c0_103, %c2_104, %c0_105, %c32_106] : memref<1x4x8x64xf32, #tpu.memory_space<vmem>>, vector<1x1x8x32xf32>
    %767 = vector.shape_cast %766 : vector<1x1x8x32xf32> to vector<8x32xf32>
    %768 = vector.shape_cast %765 : vector<8x32xf32> to vector<1x1x8x32xf32>
    tpu.vector_store %arg10[%c0_103, %c2_104, %c0_105, %c32_106], %768 {strides = array<i32>} : memref<1x4x8x64xf32, #tpu.memory_space<vmem>>, vector<1x1x8x32xf32>,
    %cst_107 = arith.constant 0.000000e+00 : f32
    %769 = vector.broadcast %cst_107 : f32 to vector<8x32xf32>
    %770 = vector.broadcast %38 : f32 to vector<8x32xf32>
    %771 = arith.mulf %770, %215 : vector<8x32xf32>
    %772 = arith.addf %769, %771 : vector<8x32xf32>
    %773 = vector.broadcast %39 : f32 to vector<8x32xf32>
    %774 = arith.mulf %773, %219 : vector<8x32xf32>
    %775 = arith.addf %772, %774 : vector<8x32xf32>
    %776 = vector.broadcast %40 : f32 to vector<8x32xf32>
    %777 = arith.mulf %776, %223 : vector<8x32xf32>
    %778 = arith.addf %775, %777 : vector<8x32xf32>
    %779 = vector.broadcast %86 : f32 to vector<8x32xf32>
    %780 = arith.mulf %779, %216 : vector<8x32xf32>
    %781 = arith.addf %778, %780 : vector<8x32xf32>
    %782 = vector.broadcast %87 : f32 to vector<8x32xf32>
    %783 = arith.mulf %782, %220 : vector<8x32xf32>
    %784 = arith.addf %781, %783 : vector<8x32xf32>
    %785 = vector.broadcast %88 : f32 to vector<8x32xf32>
    %786 = arith.mulf %785, %224 : vector<8x32xf32>
    %787 = arith.addf %784, %786 : vector<8x32xf32>
    %788 = vector.broadcast %41 : f32 to vector<8x32xf32>
    %789 = arith.mulf %788, %240 : vector<8x32xf32>
    %790 = arith.addf %787, %789 : vector<8x32xf32>
    %791 = vector.broadcast %42 : f32 to vector<8x32xf32>
    %792 = arith.mulf %791, %244 : vector<8x32xf32>
    %793 = arith.addf %790, %792 : vector<8x32xf32>
    %794 = vector.broadcast %43 : f32 to vector<8x32xf32>
    %795 = arith.mulf %794, %248 : vector<8x32xf32>
    %796 = arith.addf %793, %795 : vector<8x32xf32>
    %797 = vector.broadcast %89 : f32 to vector<8x32xf32>
    %798 = arith.mulf %797, %241 : vector<8x32xf32>
    %799 = arith.addf %796, %798 : vector<8x32xf32>
    %800 = vector.broadcast %90 : f32 to vector<8x32xf32>
    %801 = arith.mulf %800, %245 : vector<8x32xf32>
    %802 = arith.addf %799, %801 : vector<8x32xf32>
    %803 = vector.broadcast %91 : f32 to vector<8x32xf32>
    %804 = arith.mulf %803, %249 : vector<8x32xf32>
    %805 = arith.addf %802, %804 : vector<8x32xf32>
    %806 = vector.broadcast %44 : f32 to vector<8x32xf32>
    %807 = arith.mulf %806, %265 : vector<8x32xf32>
    %808 = arith.addf %805, %807 : vector<8x32xf32>
    %809 = vector.broadcast %45 : f32 to vector<8x32xf32>
    %810 = arith.mulf %809, %269 : vector<8x32xf32>
    %811 = arith.addf %808, %810 : vector<8x32xf32>
    %812 = vector.broadcast %46 : f32 to vector<8x32xf32>
    %813 = arith.mulf %812, %273 : vector<8x32xf32>
    %814 = arith.addf %811, %813 : vector<8x32xf32>
    %815 = vector.broadcast %92 : f32 to vector<8x32xf32>
    %816 = arith.mulf %815, %266 : vector<8x32xf32>
    %817 = arith.addf %814, %816 : vector<8x32xf32>
    %818 = vector.broadcast %93 : f32 to vector<8x32xf32>
    %819 = arith.mulf %818, %270 : vector<8x32xf32>
    %820 = arith.addf %817, %819 : vector<8x32xf32>
    %821 = vector.broadcast %94 : f32 to vector<8x32xf32>
    %822 = arith.mulf %821, %274 : vector<8x32xf32>
    %823 = arith.addf %820, %822 : vector<8x32xf32>
    %824 = vector.broadcast %47 : f32 to vector<8x32xf32>
    %825 = arith.mulf %824, %290 : vector<8x32xf32>
    %826 = arith.addf %823, %825 : vector<8x32xf32>
    %827 = vector.broadcast %48 : f32 to vector<8x32xf32>
    %828 = arith.mulf %827, %294 : vector<8x32xf32>
    %829 = arith.addf %826, %828 : vector<8x32xf32>
    %830 = vector.broadcast %49 : f32 to vector<8x32xf32>
    %831 = arith.mulf %830, %298 : vector<8x32xf32>
    %832 = arith.addf %829, %831 : vector<8x32xf32>
    %833 = vector.broadcast %95 : f32 to vector<8x32xf32>
    %834 = arith.mulf %833, %291 : vector<8x32xf32>
    %835 = arith.addf %832, %834 : vector<8x32xf32>
    %836 = vector.broadcast %96 : f32 to vector<8x32xf32>
    %837 = arith.mulf %836, %295 : vector<8x32xf32>
    %838 = arith.addf %835, %837 : vector<8x32xf32>
    %839 = vector.broadcast %97 : f32 to vector<8x32xf32>
    %840 = arith.mulf %839, %299 : vector<8x32xf32>
    %841 = arith.addf %838, %840 : vector<8x32xf32>
    %842 = vector.broadcast %197 : f32 to vector<8x32xf32>
    %843 = arith.addf %841, %842 : vector<8x32xf32>
    %c0_108 = arith.constant 0 : index
    %c3_109 = arith.constant 3 : index
    %c0_110 = arith.constant 0 : index
    %c0_111 = arith.constant 0 : index
    %844 = vector.load %arg10[%c0_108, %c3_109, %c0_110, %c0_111] : memref<1x4x8x64xf32, #tpu.memory_space<vmem>>, vector<1x1x8x32xf32>
    %845 = vector.shape_cast %844 : vector<1x1x8x32xf32> to vector<8x32xf32>
    %846 = vector.shape_cast %843 : vector<8x32xf32> to vector<1x1x8x32xf32>
    tpu.vector_store %arg10[%c0_108, %c3_109, %c0_110, %c0_111], %846 {strides = array<i32>} : memref<1x4x8x64xf32, #tpu.memory_space<vmem>>, vector<1x1x8x32xf32>,
    %cst_112 = arith.constant 0.000000e+00 : f32
    %847 = vector.broadcast %cst_112 : f32 to vector<8x32xf32>
    %848 = vector.broadcast %134 : f32 to vector<8x32xf32>
    %849 = arith.mulf %848, %216 : vector<8x32xf32>
    %850 = arith.addf %847, %849 : vector<8x32xf32>
    %851 = vector.broadcast %135 : f32 to vector<8x32xf32>
    %852 = arith.mulf %851, %220 : vector<8x32xf32>
    %853 = arith.addf %850, %852 : vector<8x32xf32>
    %854 = vector.broadcast %136 : f32 to vector<8x32xf32>
    %855 = arith.mulf %854, %224 : vector<8x32xf32>
    %856 = arith.addf %853, %855 : vector<8x32xf32>
    %857 = vector.broadcast %182 : f32 to vector<8x32xf32>
    %858 = arith.mulf %857, %217 : vector<8x32xf32>
    %859 = arith.addf %856, %858 : vector<8x32xf32>
    %860 = vector.broadcast %183 : f32 to vector<8x32xf32>
    %861 = arith.mulf %860, %221 : vector<8x32xf32>
    %862 = arith.addf %859, %861 : vector<8x32xf32>
    %863 = vector.broadcast %184 : f32 to vector<8x32xf32>
    %864 = arith.mulf %863, %225 : vector<8x32xf32>
    %865 = arith.addf %862, %864 : vector<8x32xf32>
    %866 = vector.broadcast %137 : f32 to vector<8x32xf32>
    %867 = arith.mulf %866, %241 : vector<8x32xf32>
    %868 = arith.addf %865, %867 : vector<8x32xf32>
    %869 = vector.broadcast %138 : f32 to vector<8x32xf32>
    %870 = arith.mulf %869, %245 : vector<8x32xf32>
    %871 = arith.addf %868, %870 : vector<8x32xf32>
    %872 = vector.broadcast %139 : f32 to vector<8x32xf32>
    %873 = arith.mulf %872, %249 : vector<8x32xf32>
    %874 = arith.addf %871, %873 : vector<8x32xf32>
    %875 = vector.broadcast %185 : f32 to vector<8x32xf32>
    %876 = arith.mulf %875, %242 : vector<8x32xf32>
    %877 = arith.addf %874, %876 : vector<8x32xf32>
    %878 = vector.broadcast %186 : f32 to vector<8x32xf32>
    %879 = arith.mulf %878, %246 : vector<8x32xf32>
    %880 = arith.addf %877, %879 : vector<8x32xf32>
    %881 = vector.broadcast %187 : f32 to vector<8x32xf32>
    %882 = arith.mulf %881, %250 : vector<8x32xf32>
    %883 = arith.addf %880, %882 : vector<8x32xf32>
    %884 = vector.broadcast %140 : f32 to vector<8x32xf32>
    %885 = arith.mulf %884, %266 : vector<8x32xf32>
    %886 = arith.addf %883, %885 : vector<8x32xf32>
    %887 = vector.broadcast %141 : f32 to vector<8x32xf32>
    %888 = arith.mulf %887, %270 : vector<8x32xf32>
    %889 = arith.addf %886, %888 : vector<8x32xf32>
    %890 = vector.broadcast %142 : f32 to vector<8x32xf32>
    %891 = arith.mulf %890, %274 : vector<8x32xf32>
    %892 = arith.addf %889, %891 : vector<8x32xf32>
    %893 = vector.broadcast %188 : f32 to vector<8x32xf32>
    %894 = arith.mulf %893, %267 : vector<8x32xf32>
    %895 = arith.addf %892, %894 : vector<8x32xf32>
    %896 = vector.broadcast %189 : f32 to vector<8x32xf32>
    %897 = arith.mulf %896, %271 : vector<8x32xf32>
    %898 = arith.addf %895, %897 : vector<8x32xf32>
    %899 = vector.broadcast %190 : f32 to vector<8x32xf32>
    %900 = arith.mulf %899, %275 : vector<8x32xf32>
    %901 = arith.addf %898, %900 : vector<8x32xf32>
    %902 = vector.broadcast %143 : f32 to vector<8x32xf32>
    %903 = arith.mulf %902, %291 : vector<8x32xf32>
    %904 = arith.addf %901, %903 : vector<8x32xf32>
    %905 = vector.broadcast %144 : f32 to vector<8x32xf32>
    %906 = arith.mulf %905, %295 : vector<8x32xf32>
    %907 = arith.addf %904, %906 : vector<8x32xf32>
    %908 = vector.broadcast %145 : f32 to vector<8x32xf32>
    %909 = arith.mulf %908, %299 : vector<8x32xf32>
    %910 = arith.addf %907, %909 : vector<8x32xf32>
    %911 = vector.broadcast %191 : f32 to vector<8x32xf32>
    %912 = arith.mulf %911, %292 : vector<8x32xf32>
    %913 = arith.addf %910, %912 : vector<8x32xf32>
    %914 = vector.broadcast %192 : f32 to vector<8x32xf32>
    %915 = arith.mulf %914, %296 : vector<8x32xf32>
    %916 = arith.addf %913, %915 : vector<8x32xf32>
    %917 = vector.broadcast %193 : f32 to vector<8x32xf32>
    %918 = arith.mulf %917, %300 : vector<8x32xf32>
    %919 = arith.addf %916, %918 : vector<8x32xf32>
    %920 = vector.broadcast %197 : f32 to vector<8x32xf32>
    %921 = arith.addf %919, %920 : vector<8x32xf32>
    %c0_113 = arith.constant 0 : index
    %c3_114 = arith.constant 3 : index
    %c0_115 = arith.constant 0 : index
    %c32_116 = arith.constant 32 : index
    %922 = vector.load %arg10[%c0_113, %c3_114, %c0_115, %c32_116] : memref<1x4x8x64xf32, #tpu.memory_space<vmem>>, vector<1x1x8x32xf32>
    %923 = vector.shape_cast %922 : vector<1x1x8x32xf32> to vector<8x32xf32>
    %924 = vector.shape_cast %921 : vector<8x32xf32> to vector<1x1x8x32xf32>
    tpu.vector_store %arg10[%c0_113, %c3_114, %c0_115, %c32_116], %924 {strides = array<i32>} : memref<1x4x8x64xf32, #tpu.memory_space<vmem>>, vector<1x1x8x32xf32>,
    return
  }
  func.func @transform_0(%arg0: i32, %arg1: i32) -> (i32, i32, i32, i32) {
    %c0_i32 = arith.constant 0 : i32
    %c0_i32_0 = arith.constant 0 : i32
    %c0_i32_1 = arith.constant 0 : i32
    return %arg0, %c0_i32, %arg1, %c0_i32_0 : i32, i32, i32, i32
  }
  func.func @transform_1(%arg0: i32, %arg1: i32) -> (i32, i32, i32, i32) {
    %c1_i32 = arith.constant 1 : i32
    %0 = arith.muli %arg1, %c1_i32 : i32
    %c1_i32_0 = arith.constant 1 : i32
    %1 = arith.subi %0, %c1_i32_0 : i32
    %c0_i32 = arith.constant 0 : i32
    %2 = arith.maxsi %1, %c0_i32 : i32
    %c0_i32_1 = arith.constant 0 : i32
    %c0_i32_2 = arith.constant 0 : i32
    %c0_i32_3 = arith.constant 0 : i32
    return %arg0, %c0_i32_1, %2, %c0_i32_2 : i32, i32, i32, i32
  }
  func.func @transform_2(%arg0: i32, %arg1: i32) -> (i32, i32, i32, i32) {
    %c1_i32 = arith.constant 1 : i32
    %0 = arith.addi %arg1, %c1_i32 : i32
    %c1_i32_0 = arith.constant 1 : i32
    %1 = arith.muli %0, %c1_i32_0 : i32
    %c1_i32_1 = arith.constant 1 : i32
    %2 = arith.minsi %1, %c1_i32_1 : i32
    %c0_i32 = arith.constant 0 : i32
    %c0_i32_2 = arith.constant 0 : i32
    %c0_i32_3 = arith.constant 0 : i32
    return %arg0, %c0_i32, %2, %c0_i32_2 : i32, i32, i32, i32
  }
  func.func @transform_3(%arg0: i32, %arg1: i32) -> (i32, i32) {
    %c0_i32 = arith.constant 0 : i32
    %c0_i32_0 = arith.constant 0 : i32
    %c0_i32_1 = arith.constant 0 : i32
    return %c0_i32, %c0_i32_0 : i32, i32
  }
  func.func @transform_4(%arg0: i32, %arg1: i32) -> (i32, i32) {
    %c0_i32 = arith.constant 0 : i32
    %c0_i32_0 = arith.constant 0 : i32
    %c0_i32_1 = arith.constant 0 : i32
    return %c0_i32, %c0_i32_0 : i32, i32
  }
  func.func @transform_5(%arg0: i32, %arg1: i32) -> (i32, i32) {
    %c0_i32 = arith.constant 0 : i32
    %c0_i32_0 = arith.constant 0 : i32
    %c0_i32_1 = arith.constant 0 : i32
    return %c0_i32, %c0_i32_0 : i32, i32
  }
  func.func @transform_6(%arg0: i32, %arg1: i32) -> i32 {
    %c0_i32 = arith.constant 0 : i32
    %c0_i32_0 = arith.constant 0 : i32
    return %c0_i32 : i32
  }
  func.func @transform_7(%arg0: i32, %arg1: i32) -> i32 {
    %c0_i32 = arith.constant 0 : i32
    %c0_i32_0 = arith.constant 0 : i32
    return %c0_i32 : i32
  }
  func.func @transform_8(%arg0: i32, %arg1: i32) -> (i32, i32, i32, i32) {
    %c0_i32 = arith.constant 0 : i32
    %c0_i32_0 = arith.constant 0 : i32
    %c0_i32_1 = arith.constant 0 : i32
    return %arg0, %c0_i32, %arg1, %c0_i32_0 : i32, i32, i32, i32
  }
}

</mosaic_0001>

<llo_original>
// kernel: tpu_custom_call.1
$region0: #{tpu_custom_call.1}
  #allocation0 [shape = 'u32[]', space=smem, size = 0x4, offset = 0x4, fixed_abs, tag = 'smem constant byte address 0x4 - core index']
  #allocation1 [shape = 'u32[72,128]{1,0:T(1,128)}', space=vmem, size = 0x9000, scoped, tag = 'internal scratch']
  %s0 = inlined_call_operand.hbm [shape: f32[2,4,16,16], index: 0, kind: input, shape index: {}]
  %s1 = inlined_call_operand.hbm [shape: f32[2,4,16,16], index: 1, kind: input, shape index: {}]
  %s2 = inlined_call_operand.hbm [shape: f32[2,4,16,16], index: 2, kind: input, shape index: {}]
  %s3 = inlined_call_operand.hbm [shape: f32[16,32], index: 3, kind: input, shape index: {}]
  %s4 = inlined_call_operand.hbm [shape: f32[16,32], index: 4, kind: input, shape index: {}]
  %s5 = inlined_call_operand.hbm [shape: f32[16,32], index: 5, kind: input, shape index: {}]
  %s6 = inlined_call_operand.vmem [shape: f32[288], index: 6, kind: input, shape index: {}]
  %s7 = inlined_call_operand.vmem [shape: f32[4], index: 7, kind: input, shape index: {}]
  %s8 = inlined_call_operand.hbm [shape: f32[2,4,16,64], index: 8, kind: output, shape index: {}]
  %s9 = sld [smem:[#allocation0]]
  $region97: #{tpu_custom_call.1} parent=0
    _
  %s11 = ssub.s32 1, %s9
  %s12 = scalar_select 0, %s11, %s9
  $region1: #{tpu_custom_call.1} parent=0
    #allocation2 [shape = 'u8[32768]{0}', space=vmem, size = 0x8000, scoped, tag = 'input window, operand 0']
    #allocation3 [shape = 's32[2]{0}', space=sflag, size = 0x8, scoped, tag = 'scoped memory for tpu_custom_call.1']
    #allocation4 [shape = 's32[2]{0}', space=sflag, size = 0x8, scoped, tag = 'scoped memory for tpu_custom_call.1']
    #allocation5 [shape = 's32[2]{0}', space=sflag, size = 0x8, scoped, tag = 'scoped memory for tpu_custom_call.1']
    #allocation6 [shape = 'u8[32768]{0}', space=vmem, size = 0x8000, scoped, tag = 'input window, operand 1']
    #allocation7 [shape = 's32[2]{0}', space=sflag, size = 0x8, scoped, tag = 'scoped memory for tpu_custom_call.1']
    #allocation8 [shape = 'u8[32768]{0}', space=vmem, size = 0x8000, scoped, tag = 'input window, operand 2']
    #allocation9 [shape = 'u8[8192]{0}', space=vmem, size = 0x2000, scoped, tag = 'input window, operand 3, single buffered']
    #allocation10 [shape = 's32[1]{0}', space=sflag, size = 0x4, scoped, tag = 'scoped memory for tpu_custom_call.1']
    #allocation11 [shape = 'u8[8192]{0}', space=vmem, size = 0x2000, scoped, tag = 'input window, operand 4, single buffered']
    #allocation12 [shape = 'u8[8192]{0}', space=vmem, size = 0x2000, scoped, tag = 'input window, operand 5, single buffered']
    #allocation13 [shape = 's32[1]{0}', space=sflag, size = 0x4, scoped, tag = 'scoped memory for tpu_custom_call.1']
    #allocation14 [shape = 'u8[1536]{0}', space=smem, size = 0x600, scoped, tag = 'input window, operand 6, single buffered']
    #allocation15 [shape = 'u8[512]{0}', space=smem, size = 0x200, scoped, tag = 'input window, operand 7, single buffered']
    #allocation16 [shape = 's32[1]{0}', space=sflag, size = 0x4, scoped, tag = 'scoped memory for tpu_custom_call.1']
    #allocation17 [shape = 'u8[32768]{0}', space=vmem, size = 0x8000, scoped, tag = 'output window, operand 0']
    %13 = vsyncpa [#allocation3], 0
    %s14 = scalar_lea.sflag [#allocation3], 1
    %15 = vsyncpa %s14, 0
    %16 = vsyncpa [#allocation7], 0
    %s17 = scalar_lea.sflag [#allocation7], 1
    %18 = vsyncpa %s17, 0
    %19 = vsyncpa [#allocation10], 0
    %20 = vsyncpa [#allocation13], 0
    %21 = vsyncpa [#allocation5], 0
    %22 = vsyncpa [#allocation16], 0
    %23 = vsyncpa [#allocation4], 0
    %s24 = scalar_lea.sflag [#allocation4], 1
    %25 = vsyncpa %s24, 0
    loop: start=0, step=1, limit=6
    $region2: #{tpu_custom_call.1} parent=1 // loop_pre_header
      _
    $region3: #{tpu_custom_call.1} parent=1 // loop_header
      %s27 = sphi 0, %s31
      %p28 = scmp.ge.s32.totalorder %s27, 6
      %s34 = sphi 0, %s46
      %s35 = sphi 0, %s42
      %s36 = sphi 0, %s34
      %s37 = sphi 0, %s35
      %s38 = sphi 0, %s36
      %s39 = sphi 0, %s37
      %s51 = sphi 0, %s53
      %s54 = sphi 0, %s51
      %s55 = sphi 0, %s54
      %s71 = sphi 0, %s55
      %s85 = sphi 0, %s87
      %s88 = sphi 0, %s85
      %s89 = sphi 0, %s88
      %s105 = sphi 0, %s89
      %s119 = sphi 0, %s121
      %s122 = sphi 0, %s119
      %s123 = sphi 0, %s122
      %s139 = sphi 0, %s123
      %s143 = sphi 0, %s143
      %s145 = sphi 0, %s143
      %s146 = sphi 0, %s145
      %s160 = sphi 0, %s146
      %s164 = sphi 0, %s164
      %s166 = sphi 0, %s164
      %s167 = sphi 0, %s166
      %s181 = sphi 0, %s167
      %s185 = sphi 0, %s185
      %s187 = sphi 0, %s185
      %s188 = sphi 0, %s187
      %s202 = sphi 0, %s188
      %s206 = sphi 0, %s206
      %s208 = sphi 0, %s206
      %s209 = sphi 0, %s208
      %s223 = sphi 0, %s209
      %s227 = sphi 0, %s227
      %s229 = sphi 0, %s227
      %s230 = sphi 0, %s229
      %s244 = sphi 0, %s230
      %s252 = sphi 0, %s254
      %s255 = sphi 0, %s252
      %s256 = sphi 0, %s255
      %s272 = sphi 0, %s256
    $region4: #{tpu_custom_call.1} parent=1 // loop_header_branch
      %30 = sbr.rel (%p28) target = $region8
    $region5: #{tpu_custom_call.1} parent=1 // loop_body
      %s32 = ssub.s32 %s27, 1
      %s33 = ssub.s32 %s27, 2
      %s40 = sadd.s32 1, %s35
      %p41 = scmp.ge.s32.totalorder %s40, 2
      %s42 = scalar_select %p41, 0, %s40
      %s43 = sadd.s32 1, %s34
      %s44 = scalar_select %p41, %s43, %s34
      %p45 = scmp.ge.s32.totalorder %s44, 2
      %s46 = scalar_select %p45, 0, %s44
      %s47 = ssub.s32 %s34, %s46
      %s48 = ssub.s32 %s35, %s42
      %s49 = sor.u32 %s47, %s48
      %p50 = scmp.eq.s32.totalorder %s49, 0
      %s52 = sadd.s32 %s51, 1
      %s53 = scalar_select %p50, %s51, %s52
      %p56 = pneg %p50
      %p57 = scmp.eq.s32.totalorder %s27, 3
      %p58 = por %p56, %p57
      %p59 = scmp.ne.s32.totalorder %s51, %s54
      %p60 = scmp.eq.s32.totalorder %s27, 0
      %p61 = por %p59, %p60
      %p62 = scmp.ne.s32.totalorder %s51, %s54
      %p63 = scmp.eq.s32.totalorder %s32, 3
      %p64 = por %p62, %p63
      %p65 = scmp.ne.s32.totalorder %s54, %s55
      %p66 = scmp.eq.s32.totalorder %s32, 0
      %p67 = por %p65, %p66
      %p68 = scmp.ne.s32.totalorder %s54, %s55
      %p69 = scmp.eq.s32.totalorder %s33, 3
      %p70 = por %p68, %p69
      %p72 = scmp.ne.s32.totalorder %s55, %s71
      %p73 = scmp.eq.s32.totalorder %s33, 0
      %p74 = por %p72, %p73
      %s75 = ssub.s32 %s35, 1
      %p76 = scmp.gt.s32.totalorder %s75, 0
      %s77 = scalar_select %p76, %s75, 0
      %s78 = ssub.s32 %s42, 1
      %p79 = scmp.gt.s32.totalorder %s78, 0
      %s80 = scalar_select %p79, %s78, 0
      %s81 = ssub.s32 %s34, %s46
      %s82 = ssub.s32 %s77, %s80
      %s83 = sor.u32 %s81, %s82
      %p84 = scmp.eq.s32.totalorder %s83, 0
      %s86 = sadd.s32 %s85, 1
      %s87 = scalar_select %p84, %s85, %s86
      %p90 = pneg %p84
      %p91 = scmp.eq.s32.totalorder %s27, 3
      %p92 = por %p90, %p91
      %p93 = scmp.ne.s32.totalorder %s85, %s88
      %p94 = scmp.eq.s32.totalorder %s27, 0
      %p95 = por %p93, %p94
      %p96 = scmp.ne.s32.totalorder %s85, %s88
      %p97 = scmp.eq.s32.totalorder %s32, 3
      %p98 = por %p96, %p97
      %p99 = scmp.ne.s32.totalorder %s88, %s89
      %p100 = scmp.eq.s32.totalorder %s32, 0
      %p101 = por %p99, %p100
      %p102 = scmp.ne.s32.totalorder %s88, %s89
      %p103 = scmp.eq.s32.totalorder %s33, 3
      %p104 = por %p102, %p103
      %p106 = scmp.ne.s32.totalorder %s89, %s105
      %p107 = scmp.eq.s32.totalorder %s33, 0
      %p108 = por %p106, %p107
      %s109 = sadd.s32 %s35, 1
      %p110 = scmp.lt.s32.totalorder %s109, 1
      %s111 = scalar_select %p110, %s109, 1
      %s112 = sadd.s32 %s42, 1
      %p113 = scmp.lt.s32.totalorder %s112, 1
      %s114 = scalar_select %p113, %s112, 1
      %s115 = ssub.s32 %s34, %s46
      %s116 = ssub.s32 %s111, %s114
      %s117 = sor.u32 %s115, %s116
      %p118 = scmp.eq.s32.totalorder %s117, 0
      %s120 = sadd.s32 %s119, 1
      %s121 = scalar_select %p118, %s119, %s120
      %p124 = pneg %p118
      %p125 = scmp.eq.s32.totalorder %s27, 3
      %p126 = por %p124, %p125
      %p127 = scmp.ne.s32.totalorder %s119, %s122
      %p128 = scmp.eq.s32.totalorder %s27, 0
      %p129 = por %p127, %p128
      %p130 = scmp.ne.s32.totalorder %s119, %s122
      %p131 = scmp.eq.s32.totalorder %s32, 3
      %p132 = por %p130, %p131
      %p133 = scmp.ne.s32.totalorder %s122, %s123
      %p134 = scmp.eq.s32.totalorder %s32, 0
      %p135 = por %p133, %p134
      %p136 = scmp.ne.s32.totalorder %s122, %s123
      %p137 = scmp.eq.s32.totalorder %s33, 3
      %p138 = por %p136, %p137
      %p140 = scmp.ne.s32.totalorder %s123, %s139
      %p141 = scmp.eq.s32.totalorder %s33, 0
      %p142 = por %p140, %p141
      %s144 = sadd.s32 %s143, 1
      %p147 = scmp.eq.s32.totalorder %s27, 3
      %p148 = scmp.ne.s32.totalorder %s143, %s145
      %p149 = scmp.eq.s32.totalorder %s27, 0
      %p150 = por %p148, %p149
      %p151 = scmp.ne.s32.totalorder %s143, %s145
      %p152 = scmp.eq.s32.totalorder %s32, 3
      %p153 = por %p151, %p152
      %p154 = scmp.ne.s32.totalorder %s145, %s146
      %p155 = scmp.eq.s32.totalorder %s32, 0
      %p156 = por %p154, %p155
      %p157 = scmp.ne.s32.totalorder %s145, %s146
      %p158 = scmp.eq.s32.totalorder %s33, 3
      %p159 = por %p157, %p158
      %p161 = scmp.ne.s32.totalorder %s146, %s160
      %p162 = scmp.eq.s32.totalorder %s33, 0
      %p163 = por %p161, %p162
      %s165 = sadd.s32 %s164, 1
      %p168 = scmp.eq.s32.totalorder %s27, 3
      %p169 = scmp.ne.s32.totalorder %s164, %s166
      %p170 = scmp.eq.s32.totalorder %s27, 0
      %p171 = por %p169, %p170
      %p172 = scmp.ne.s32.totalorder %s164, %s166
      %p173 = scmp.eq.s32.totalorder %s32, 3
      %p174 = por %p172, %p173
      %p175 = scmp.ne.s32.totalorder %s166, %s167
      %p176 = scmp.eq.s32.totalorder %s32, 0
      %p177 = por %p175, %p176
      %p178 = scmp.ne.s32.totalorder %s166, %s167
      %p179 = scmp.eq.s32.totalorder %s33, 3
      %p180 = por %p178, %p179
      %p182 = scmp.ne.s32.totalorder %s167, %s181
      %p183 = scmp.eq.s32.totalorder %s33, 0
      %p184 = por %p182, %p183
      %s186 = sadd.s32 %s185, 1
      %p189 = scmp.eq.s32.totalorder %s27, 3
      %p190 = scmp.ne.s32.totalorder %s185, %s187
      %p191 = scmp.eq.s32.totalorder %s27, 0
      %p192 = por %p190, %p191
      %p193 = scmp.ne.s32.totalorder %s185, %s187
      %p194 = scmp.eq.s32.totalorder %s32, 3
      %p195 = por %p193, %p194
      %p196 = scmp.ne.s32.totalorder %s187, %s188
      %p197 = scmp.eq.s32.totalorder %s32, 0
      %p198 = por %p196, %p197
      %p199 = scmp.ne.s32.totalorder %s187, %s188
      %p200 = scmp.eq.s32.totalorder %s33, 3
      %p201 = por %p199, %p200
      %p203 = scmp.ne.s32.totalorder %s188, %s202
      %p204 = scmp.eq.s32.totalorder %s33, 0
      %p205 = por %p203, %p204
      %s207 = sadd.s32 %s206, 1
      %p210 = scmp.eq.s32.totalorder %s27, 3
      %p211 = scmp.ne.s32.totalorder %s206, %s208
      %p212 = scmp.eq.s32.totalorder %s27, 0
      %p213 = por %p211, %p212
      %p214 = scmp.ne.s32.totalorder %s206, %s208
      %p215 = scmp.eq.s32.totalorder %s32, 3
      %p216 = por %p214, %p215
      %p217 = scmp.ne.s32.totalorder %s208, %s209
      %p218 = scmp.eq.s32.totalorder %s32, 0
      %p219 = por %p217, %p218
      %p220 = scmp.ne.s32.totalorder %s208, %s209
      %p221 = scmp.eq.s32.totalorder %s33, 3
      %p222 = por %p220, %p221
      %p224 = scmp.ne.s32.totalorder %s209, %s223
      %p225 = scmp.eq.s32.totalorder %s33, 0
      %p226 = por %p224, %p225
      %s228 = sadd.s32 %s227, 1
      %p231 = scmp.eq.s32.totalorder %s27, 3
      %p232 = scmp.ne.s32.totalorder %s227, %s229
      %p233 = scmp.eq.s32.totalorder %s27, 0
      %p234 = por %p232, %p233
      %p235 = scmp.ne.s32.totalorder %s227, %s229
      %p236 = scmp.eq.s32.totalorder %s32, 3
      %p237 = por %p235, %p236
      %p238 = scmp.ne.s32.totalorder %s229, %s230
      %p239 = scmp.eq.s32.totalorder %s32, 0
      %p240 = por %p238, %p239
      %p241 = scmp.ne.s32.totalorder %s229, %s230
      %p242 = scmp.eq.s32.totalorder %s33, 3
      %p243 = por %p241, %p242
      %p245 = scmp.ne.s32.totalorder %s230, %s244
      %p246 = scmp.eq.s32.totalorder %s33, 0
      %p247 = por %p245, %p246
      %s248 = ssub.s32 %s34, %s46
      %s249 = ssub.s32 %s35, %s42
      %s250 = sor.u32 %s248, %s249
      %p251 = scmp.eq.s32.totalorder %s250, 0
      %s253 = sadd.s32 %s252, 1
      %s254 = scalar_select %p251, %s252, %s253
      %p257 = pneg %p251
      %p258 = scmp.eq.s32.totalorder %s27, 3
      %p259 = por %p257, %p258
      %p260 = scmp.ne.s32.totalorder %s252, %s255
      %p261 = scmp.eq.s32.totalorder %s27, 0
      %p262 = por %p260, %p261
      %p263 = scmp.ne.s32.totalorder %s252, %s255
      %p264 = scmp.eq.s32.totalorder %s32, 3
      %p265 = por %p263, %p264
      %p266 = scmp.ne.s32.totalorder %s255, %s256
      %p267 = scmp.eq.s32.totalorder %s32, 0
      %p268 = por %p266, %p267
      %p269 = scmp.ne.s32.totalorder %s255, %s256
      %p270 = scmp.eq.s32.totalorder %s33, 3
      %p271 = por %p269, %p270
      %p273 = scmp.ne.s32.totalorder %s256, %s272
      %p274 = scmp.eq.s32.totalorder %s33, 0
      %p275 = por %p273, %p274
      %p276 = scmp.le.s32.totalorder 1, %s27
      %p277 = scmp.lt.s32.totalorder %s27, 5
      %p278 = pnand %p276, %p277
      %p279 = pneg %p278
      // Predicated region
      $region9: #{tpu_custom_call.1} parent=5 // pred_check
        _
      $region10: #{tpu_custom_call.1} parent=5 // pred_check_branch
        %281 = sbr.rel (%p278) target = $region12
      $region11: #{tpu_custom_call.1} parent=5 // pred_region
        %s282 = ssub.s32 %s27, 1
        // Predicated region
        $region13: #{tpu_custom_call.1} parent=11 // pred_check
          %p283 = pneg %p156
        $region14: #{tpu_custom_call.1} parent=11 // pred_check_branch
          %285 = sbr.rel (%p283) target = $region16
        $region15: #{tpu_custom_call.1} parent=11 // pred_region
          %287 = vsyncadd [#allocation10], 0
          %s288 = sshll.u32 %s3, 4
          %s289 = int_to_ptr.hbm [resolvable:$true] %s288
          %s290 = sshll.u32 [#allocation9], 4
          %s291 = int_to_ptr.vmem [resolvable:$true] %s290
          %296 = dma.hbm_to_vmem [thread:$0]  %s289, 256, %s291, [#allocation10], 128, 128, 8
        $region16: #{tpu_custom_call.1} parent=11 // pred_fallthru
          _
        // Predicated region
        $region17: #{tpu_custom_call.1} parent=11 // pred_check
          %p297 = pneg %p177
        $region18: #{tpu_custom_call.1} parent=11 // pred_check_branch
          %299 = sbr.rel (%p297) target = $region20
        $region19: #{tpu_custom_call.1} parent=11 // pred_region
          %301 = vsyncadd [#allocation10], 0
          %s302 = sshll.u32 %s4, 4
          %s303 = int_to_ptr.hbm [resolvable:$true] %s302
          %s304 = sshll.u32 [#allocation11], 4
          %s305 = int_to_ptr.vmem [resolvable:$true] %s304
          %310 = dma.hbm_to_vmem [thread:$0]  %s303, 256, %s305, [#allocation10], 128, 128, 8
        $region20: #{tpu_custom_call.1} parent=11 // pred_fallthru
          _
        // Predicated region
        $region21: #{tpu_custom_call.1} parent=11 // pred_check
          %p311 = pneg %p198
        $region22: #{tpu_custom_call.1} parent=11 // pred_check_branch
          %313 = sbr.rel (%p311) target = $region24
        $region23: #{tpu_custom_call.1} parent=11 // pred_region
          %315 = vsyncadd [#allocation13], 0
          %s316 = sshll.u32 %s5, 4
          %s317 = int_to_ptr.hbm [resolvable:$true] %s316
          %s318 = sshll.u32 [#allocation12], 4
          %s319 = int_to_ptr.vmem [resolvable:$true] %s318
          %324 = dma.hbm_to_vmem [thread:$0]  %s317, 256, %s319, [#allocation13], 128, 128, 8
        $region24: #{tpu_custom_call.1} parent=11 // pred_fallthru
          _
        // Predicated region
        $region25: #{tpu_custom_call.1} parent=11 // pred_check
          %p325 = pneg %p219
        $region26: #{tpu_custom_call.1} parent=11 // pred_check_branch
          %327 = sbr.rel (%p325) target = $region28
        $region27: #{tpu_custom_call.1} parent=11 // pred_region
          %329 = vsyncadd [#allocation5], 0
          %s331 = sshll.u32 %s6, 4
          %s332 = int_to_ptr.vmem [resolvable:$true] %s331
          %334 = dma.vmem_to_smem %s332, 48, [#allocation14], [#allocation5]
        $region28: #{tpu_custom_call.1} parent=11 // pred_fallthru
          _
        // Predicated region
        $region29: #{tpu_custom_call.1} parent=11 // pred_check
          %p335 = pneg %p240
        $region30: #{tpu_custom_call.1} parent=11 // pred_check_branch
          %337 = sbr.rel (%p335) target = $region32
        $region31: #{tpu_custom_call.1} parent=11 // pred_region
          %339 = vsyncadd [#allocation16], 0
          %s341 = sshll.u32 %s7, 4
          %s342 = int_to_ptr.vmem [resolvable:$true] %s341
          %344 = dma.vmem_to_smem %s342, 16, [#allocation15], [#allocation16]
        $region32: #{tpu_custom_call.1} parent=11 // pred_fallthru
          _
      $region12: #{tpu_custom_call.1} parent=5 // pred_fallthru
        _
      %p345 = scmp.lt.s32.totalorder %s27, 4
      // Predicated region
      $region33: #{tpu_custom_call.1} parent=5 // pred_check
        %p346 = pneg %p345
      $region34: #{tpu_custom_call.1} parent=5 // pred_check_branch
        %348 = sbr.rel (%p346) target = $region36
      $region35: #{tpu_custom_call.1} parent=5 // pred_region
        // Predicated region
        $region37: #{tpu_custom_call.1} parent=35 // pred_check
          %p349 = pneg %p61
        $region38: #{tpu_custom_call.1} parent=35 // pred_check_branch
          %351 = sbr.rel (%p349) target = $region40
        $region39: #{tpu_custom_call.1} parent=35 // pred_region
          %s352 = sand.u32 %s51, 1
          %s353 = scalar_lea.sflag [#allocation3], %s352
          %s354 = sand.u32 %s51, 1
          %s355 = smul.addr %s354, 32
          %s356 = scalar_lea.vmem [#allocation2], %s355
          %358 = vsyncadd %s353, 0
          %s359 = smul.addr %s34, 8
          %s360 = sadd.s32 %s35, %s359
          %s361 = smul.addr %s360, 8
          %s362 = scalar_lea.hbm %s0, %s361
          %s363 = sshll.u32 %s362, 4
          %s364 = int_to_ptr.hbm [resolvable:$true] %s363
          %s365 = sshll.u32 %s356, 4
          %s366 = int_to_ptr.vmem [resolvable:$true] %s365
          %371 = dma.hbm_to_vmem [thread:$0]  %s364, 512, %s366, %s353, 256, 128, 8
        $region40: #{tpu_custom_call.1} parent=35 // pred_fallthru
          _
        // Predicated region
        $region41: #{tpu_custom_call.1} parent=35 // pred_check
          %p372 = pneg %p95
        $region42: #{tpu_custom_call.1} parent=35 // pred_check_branch
          %374 = sbr.rel (%p372) target = $region44
        $region43: #{tpu_custom_call.1} parent=35 // pred_region
          %s375 = sand.u32 %s27, 1
          %s376 = scalar_lea.sflag [#allocation7], %s375
          %s377 = sand.u32 %s85, 1
          %s378 = smul.addr %s377, 32
          %s379 = scalar_lea.vmem [#allocation6], %s378
          %s380 = ssub.s32 %s35, 1
          %p381 = scmp.gt.s32.totalorder %s380, 0
          %s382 = scalar_select %p381, %s380, 0
          %384 = vsyncadd %s376, 0
          %s385 = smul.addr %s34, 8
          %s386 = sadd.s32 %s382, %s385
          %s387 = smul.addr %s386, 8
          %s388 = scalar_lea.hbm %s1, %s387
          %s389 = sshll.u32 %s388, 4
          %s390 = int_to_ptr.hbm [resolvable:$true] %s389
          %s391 = sshll.u32 %s379, 4
          %s392 = int_to_ptr.vmem [resolvable:$true] %s391
          %397 = dma.hbm_to_vmem [thread:$0]  %s390, 512, %s392, %s376, 256, 128, 8
        $region44: #{tpu_custom_call.1} parent=35 // pred_fallthru
          _
        // Predicated region
        $region45: #{tpu_custom_call.1} parent=35 // pred_check
          %p398 = pneg %p129
        $region46: #{tpu_custom_call.1} parent=35 // pred_check_branch
          %400 = sbr.rel (%p398) target = $region48
        $region47: #{tpu_custom_call.1} parent=35 // pred_region
          %s401 = sand.u32 %s27, 1
          %s402 = scalar_lea.sflag [#allocation7], %s401
          %s403 = sand.u32 %s119, 1
          %s404 = smul.addr %s403, 32
          %s405 = scalar_lea.vmem [#allocation8], %s404
          %s406 = sadd.s32 %s35, 1
          %p407 = scmp.lt.s32.totalorder %s406, 1
          %s408 = scalar_select %p407, %s406, 1
          %410 = vsyncadd %s402, 0
          %s411 = smul.addr %s34, 8
          %s412 = sadd.s32 %s408, %s411
          %s413 = smul.addr %s412, 8
          %s414 = scalar_lea.hbm %s2, %s413
          %s415 = sshll.u32 %s414, 4
          %s416 = int_to_ptr.hbm [resolvable:$true] %s415
          %s417 = sshll.u32 %s405, 4
          %s418 = int_to_ptr.vmem [resolvable:$true] %s417
          %423 = dma.hbm_to_vmem [thread:$0]  %s416, 512, %s418, %s402, 256, 128, 8
        $region48: #{tpu_custom_call.1} parent=35 // pred_fallthru
          _
      $region36: #{tpu_custom_call.1} parent=5 // pred_fallthru
        _
      %p424 = scmp.le.s32.totalorder 1, %s27
      %p425 = scmp.lt.s32.totalorder %s27, 5
      %p426 = pnand %p424, %p425
      %p427 = pneg %p426
      // Predicated region
      $region49: #{tpu_custom_call.1} parent=5 // pred_check
        _
      $region50: #{tpu_custom_call.1} parent=5 // pred_check_branch
        %429 = sbr.rel (%p426) target = $region52
      $region51: #{tpu_custom_call.1} parent=5 // pred_region
        %s430 = ssub.s32 %s27, 1
        %s431 = sand.u32 %s54, 1
        %s432 = scalar_lea.sflag [#allocation3], %s431
        %s433 = sand.u32 %s54, 1
        %s434 = smul.addr %s433, 32
        %s435 = scalar_lea.vmem [#allocation2], %s434
        // Predicated region
        $region53: #{tpu_custom_call.1} parent=51 // pred_check
          %p436 = pneg %p67
        $region54: #{tpu_custom_call.1} parent=51 // pred_check_branch
          %438 = sbr.rel (%p436) target = $region56
        $region55: #{tpu_custom_call.1} parent=51 // pred_region
          %440 = dma.done %s432, 512
        $region56: #{tpu_custom_call.1} parent=51 // pred_fallthru
          _
        %s441 = sand.u32 %s32, 1
        %s442 = scalar_lea.sflag [#allocation7], %s441
        %s443 = sand.u32 %s88, 1
        %s444 = smul.addr %s443, 32
        %s445 = scalar_lea.vmem [#allocation6], %s444
        // Predicated region
        $region57: #{tpu_custom_call.1} parent=51 // pred_check
          %p446 = pneg %p101
        $region58: #{tpu_custom_call.1} parent=51 // pred_check_branch
          %448 = sbr.rel (%p446) target = $region60
        $region59: #{tpu_custom_call.1} parent=51 // pred_region
          %450 = dma.done %s442, 512
        $region60: #{tpu_custom_call.1} parent=51 // pred_fallthru
          _
        %s451 = sand.u32 %s32, 1
        %s452 = scalar_lea.sflag [#allocation7], %s451
        %s453 = sand.u32 %s122, 1
        %s454 = smul.addr %s453, 32
        %s455 = scalar_lea.vmem [#allocation8], %s454
        // Predicated region
        $region61: #{tpu_custom_call.1} parent=51 // pred_check
          %p456 = pneg %p135
        $region62: #{tpu_custom_call.1} parent=51 // pred_check_branch
          %458 = sbr.rel (%p456) target = $region64
        $region63: #{tpu_custom_call.1} parent=51 // pred_region
          %460 = dma.done %s452, 512
        $region64: #{tpu_custom_call.1} parent=51 // pred_fallthru
          _
        // Predicated region
        $region65: #{tpu_custom_call.1} parent=51 // pred_check
          %p461 = pneg %p156
        $region66: #{tpu_custom_call.1} parent=51 // pred_check_branch
          %463 = sbr.rel (%p461) target = $region68
        $region67: #{tpu_custom_call.1} parent=51 // pred_region
          %465 = dma.done [#allocation10], 256
        $region68: #{tpu_custom_call.1} parent=51 // pred_fallthru
          _
        // Predicated region
        $region69: #{tpu_custom_call.1} parent=51 // pred_check
          %p466 = pneg %p177
        $region70: #{tpu_custom_call.1} parent=51 // pred_check_branch
          %468 = sbr.rel (%p466) target = $region72
        $region71: #{tpu_custom_call.1} parent=51 // pred_region
          %470 = dma.done [#allocation10], 256
        $region72: #{tpu_custom_call.1} parent=51 // pred_fallthru
          _
        // Predicated region
        $region73: #{tpu_custom_call.1} parent=51 // pred_check
          %p471 = pneg %p198
        $region74: #{tpu_custom_call.1} parent=51 // pred_check_branch
          %473 = sbr.rel (%p471) target = $region76
        $region75: #{tpu_custom_call.1} parent=51 // pred_region
          %475 = dma.done [#allocation13], 256
        $region76: #{tpu_custom_call.1} parent=51 // pred_fallthru
          _
        // Predicated region
        $region77: #{tpu_custom_call.1} parent=51 // pred_check
          %p476 = pneg %p219
        $region78: #{tpu_custom_call.1} parent=51 // pred_check_branch
          %478 = sbr.rel (%p476) target = $region80
        $region79: #{tpu_custom_call.1} parent=51 // pred_region
          %480 = dma.done [#allocation5], 48
        $region80: #{tpu_custom_call.1} parent=51 // pred_fallthru
          _
        // Predicated region
        $region81: #{tpu_custom_call.1} parent=51 // pred_check
          %p481 = pneg %p240
        $region82: #{tpu_custom_call.1} parent=51 // pred_check_branch
          %483 = sbr.rel (%p481) target = $region84
        $region83: #{tpu_custom_call.1} parent=51 // pred_region
          %485 = dma.done [#allocation16], 16
        $region84: #{tpu_custom_call.1} parent=51 // pred_fallthru
          _
        %486 = sfence
        %s487 = sand.u32 %s54, 1
        %s488 = scalar_lea.sflag [#allocation3], %s487
        %s489 = sand.u32 %s54, 1
        %s490 = smul.addr %s489, 32
        %s491 = scalar_lea.vmem [#allocation2], %s490
        %p492 = pneg %p67
        %p493 = pneg %p64
        %s494 = sand.u32 %s32, 1
        %s495 = scalar_lea.sflag [#allocation7], %s494
        %s496 = sand.u32 %s88, 1
        %s497 = smul.addr %s496, 32
        %s498 = scalar_lea.vmem [#allocation6], %s497
        %p499 = pneg %p101
        %p500 = pneg %p98
        %s501 = sand.u32 %s32, 1
        %s502 = scalar_lea.sflag [#allocation7], %s501
        %s503 = sand.u32 %s122, 1
        %s504 = smul.addr %s503, 32
        %s505 = scalar_lea.vmem [#allocation8], %s504
        %p506 = pneg %p135
        %p507 = pneg %p132
        %p508 = pneg %p156
        %p509 = pneg %p153
        %p510 = pneg %p177
        %p511 = pneg %p174
        %p512 = pneg %p198
        %p513 = pneg %p195
        %p514 = pneg %p219
        %p515 = pneg %p216
        %p516 = pneg %p240
        %p517 = pneg %p237
        %p518 = pneg %p268
        %p519 = pneg %p265
        %s520 = sand.u32 %s255, 1
        %s521 = scalar_lea.sflag [#allocation4], %s520
        %s522 = sand.u32 %s255, 1
        %s523 = smul.addr %s522, 32
        %s524 = scalar_lea.vmem [#allocation17], %s523
        %s525 = ssub.s32 %s37, 1
        %p526 = scmp.gt.s32.totalorder %s525, 0
        %s527 = scalar_select %p526, %s525, 0
        %s528 = sadd.s32 %s37, 1
        %p529 = scmp.lt.s32.totalorder %s528, 1
        %s530 = scalar_select %p529, %s528, 1
        %p531 = scmp.gt.s32.totalorder %s37, 0
        %p532 = scmp.lt.s32.totalorder %s37, 1
        %s533 = sld [smem:[#allocation14]]
        %s534 = sld [smem:[#allocation14 + $0x1]]
        %s535 = sld [smem:[#allocation14 + $0x2]]
        %s536 = sld [smem:[#allocation14 + $0x3]]
        %s537 = sld [smem:[#allocation14 + $0x4]]
        %s538 = sld [smem:[#allocation14 + $0x5]]
        %s539 = sld [smem:[#allocation14 + $0x6]]
        %s540 = sld [smem:[#allocation14 + $0x7]]
        %s541 = sld [smem:[#allocation14 + $0x8]]
        %s542 = sld [smem:[#allocation14 + $0x9]]
        %s543 = sld [smem:[#allocation14 + $0xa]]
        %s544 = sld [smem:[#allocation14 + $0xb]]
        %s545 = sld [smem:[#allocation14 + $0xc]]
        %s546 = sld [smem:[#allocation14 + $0xd]]
        %s547 = sld [smem:[#allocation14 + $0xe]]
        %s548 = sld [smem:[#allocation14 + $0xf]]
        %s549 = sld [smem:[#allocation14 + $0x10]]
        %s550 = sld [smem:[#allocation14 + $0x11]]
        %s551 = sld [smem:[#allocation14 + $0x12]]
        %s552 = sld [smem:[#allocation14 + $0x13]]
        %s553 = sld [smem:[#allocation14 + $0x14]]
        %s554 = sld [smem:[#allocation14 + $0x15]]
        %s555 = sld [smem:[#allocation14 + $0x16]]
        %s556 = sld [smem:[#allocation14 + $0x17]]
        %s557 = sld [smem:[#allocation14 + $0x18]]
        %s558 = sld [smem:[#allocation14 + $0x19]]
        %s559 = sld [smem:[#allocation14 + $0x1a]]
        %s560 = sld [smem:[#allocation14 + $0x1b]]
        %s561 = sld [smem:[#allocation14 + $0x1c]]
        %s562 = sld [smem:[#allocation14 + $0x1d]]
        %s563 = sld [smem:[#allocation14 + $0x1e]]
        %s564 = sld [smem:[#allocation14 + $0x1f]]
        %s565 = sld [smem:[#allocation14 + $0x20]]
        %s566 = sld [smem:[#allocation14 + $0x21]]
        %s567 = sld [smem:[#allocation14 + $0x22]]
        %s568 = sld [smem:[#allocation14 + $0x23]]
        %s569 = sld [smem:[#allocation14 + $0x24]]
        %s570 = sld [smem:[#allocation14 + $0x25]]
        %s571 = sld [smem:[#allocation14 + $0x26]]
        %s572 = sld [smem:[#allocation14 + $0x27]]
        %s573 = sld [smem:[#allocation14 + $0x28]]
        %s574 = sld [smem:[#allocation14 + $0x29]]
        %s575 = sld [smem:[#allocation14 + $0x2a]]
        %s576 = sld [smem:[#allocation14 + $0x2b]]
        %s577 = sld [smem:[#allocation14 + $0x2c]]
        %s578 = sld [smem:[#allocation14 + $0x2d]]
        %s579 = sld [smem:[#allocation14 + $0x2e]]
        %s580 = sld [smem:[#allocation14 + $0x2f]]
        %s581 = sld [smem:[#allocation14 + $0x30]]
        %s582 = sld [smem:[#allocation14 + $0x31]]
        %s583 = sld [smem:[#allocation14 + $0x32]]
        %s584 = sld [smem:[#allocation14 + $0x33]]
        %s585 = sld [smem:[#allocation14 + $0x34]]
        %s586 = sld [smem:[#allocation14 + $0x35]]
        %s587 = sld [smem:[#allocation14 + $0x36]]
        %s588 = sld [smem:[#allocation14 + $0x37]]
        %s589 = sld [smem:[#allocation14 + $0x38]]
        %s590 = sld [smem:[#allocation14 + $0x39]]
        %s591 = sld [smem:[#allocation14 + $0x3a]]
        %s592 = sld [smem:[#allocation14 + $0x3b]]
        %s593 = sld [smem:[#allocation14 + $0x3c]]
        %s594 = sld [smem:[#allocation14 + $0x3d]]
        %s595 = sld [smem:[#allocation14 + $0x3e]]
        %s596 = sld [smem:[#allocation14 + $0x3f]]
        %s597 = sld [smem:[#allocation14 + $0x40]]
        %s598 = sld [smem:[#allocation14 + $0x41]]
        %s599 = sld [smem:[#allocation14 + $0x42]]
        %s600 = sld [smem:[#allocation14 + $0x43]]
        %s601 = sld [smem:[#allocation14 + $0x44]]
        %s602 = sld [smem:[#allocation14 + $0x45]]
        %s603 = sld [smem:[#allocation14 + $0x46]]
        %s604 = sld [smem:[#allocation14 + $0x47]]
        %s605 = sld [smem:[#allocation14 + $0x48]]
        %s606 = sld [smem:[#allocation14 + $0x49]]
        %s607 = sld [smem:[#allocation14 + $0x4a]]
        %s608 = sld [smem:[#allocation14 + $0x4b]]
        %s609 = sld [smem:[#allocation14 + $0x4c]]
        %s610 = sld [smem:[#allocation14 + $0x4d]]
        %s611 = sld [smem:[#allocation14 + $0x4e]]
        %s612 = sld [smem:[#allocation14 + $0x4f]]
        %s613 = sld [smem:[#allocation14 + $0x50]]
        %s614 = sld [smem:[#allocation14 + $0x51]]
        %s615 = sld [smem:[#allocation14 + $0x52]]
        %s616 = sld [smem:[#allocation14 + $0x53]]
        %s617 = sld [smem:[#allocation14 + $0x54]]
        %s618 = sld [smem:[#allocation14 + $0x55]]
        %s619 = sld [smem:[#allocation14 + $0x56]]
        %s620 = sld [smem:[#allocation14 + $0x57]]
        %s621 = sld [smem:[#allocation14 + $0x58]]
        %s622 = sld [smem:[#allocation14 + $0x59]]
        %s623 = sld [smem:[#allocation14 + $0x5a]]
        %s624 = sld [smem:[#allocation14 + $0x5b]]
        %s625 = sld [smem:[#allocation14 + $0x5c]]
        %s626 = sld [smem:[#allocation14 + $0x5d]]
        %s627 = sld [smem:[#allocation14 + $0x5e]]
        %s628 = sld [smem:[#allocation14 + $0x5f]]
        %s629 = sld [smem:[#allocation14 + $0xc0]]
        %s630 = sld [smem:[#allocation14 + $0xc1]]
        %s631 = sld [smem:[#allocation14 + $0xc2]]
        %s632 = sld [smem:[#allocation14 + $0xc3]]
        %s633 = sld [smem:[#allocation14 + $0xc4]]
        %s634 = sld [smem:[#allocation14 + $0xc5]]
        %s635 = sld [smem:[#allocation14 + $0xc6]]
        %s636 = sld [smem:[#allocation14 + $0xc7]]
        %s637 = sld [smem:[#allocation14 + $0xc8]]
        %s638 = sld [smem:[#allocation14 + $0xc9]]
        %s639 = sld [smem:[#allocation14 + $0xca]]
        %s640 = sld [smem:[#allocation14 + $0xcb]]
        %s641 = sld [smem:[#allocation14 + $0xcc]]
        %s642 = sld [smem:[#allocation14 + $0xcd]]
        %s643 = sld [smem:[#allocation14 + $0xce]]
        %s644 = sld [smem:[#allocation14 + $0xcf]]
        %s645 = sld [smem:[#allocation14 + $0xd0]]
        %s646 = sld [smem:[#allocation14 + $0xd1]]
        %s647 = sld [smem:[#allocation14 + $0xd2]]
        %s648 = sld [smem:[#allocation14 + $0xd3]]
        %s649 = sld [smem:[#allocation14 + $0xd4]]
        %s650 = sld [smem:[#allocation14 + $0xd5]]
        %s651 = sld [smem:[#allocation14 + $0xd6]]
        %s652 = sld [smem:[#allocation14 + $0xd7]]
        %s653 = sld [smem:[#allocation14 + $0xd8]]
        %s654 = sld [smem:[#allocation14 + $0xd9]]
        %s655 = sld [smem:[#allocation14 + $0xda]]
        %s656 = sld [smem:[#allocation14 + $0xdb]]
        %s657 = sld [smem:[#allocation14 + $0xdc]]
        %s658 = sld [smem:[#allocation14 + $0xdd]]
        %s659 = sld [smem:[#allocation14 + $0xde]]
        %s660 = sld [smem:[#allocation14 + $0xdf]]
        %s661 = sld [smem:[#allocation14 + $0xe0]]
        %s662 = sld [smem:[#allocation14 + $0xe1]]
        %s663 = sld [smem:[#allocation14 + $0xe2]]
        %s664 = sld [smem:[#allocation14 + $0xe3]]
        %s665 = sld [smem:[#allocation14 + $0xe4]]
        %s666 = sld [smem:[#allocation14 + $0xe5]]
        %s667 = sld [smem:[#allocation14 + $0xe6]]
        %s668 = sld [smem:[#allocation14 + $0xe7]]
        %s669 = sld [smem:[#allocation14 + $0xe8]]
        %s670 = sld [smem:[#allocation14 + $0xe9]]
        %s671 = sld [smem:[#allocation14 + $0xea]]
        %s672 = sld [smem:[#allocation14 + $0xeb]]
        %s673 = sld [smem:[#allocation14 + $0xec]]
        %s674 = sld [smem:[#allocation14 + $0xed]]
        %s675 = sld [smem:[#allocation14 + $0xee]]
        %s676 = sld [smem:[#allocation14 + $0xef]]
        %s677 = sld [smem:[#allocation14 + $0xf0]]
        %s678 = sld [smem:[#allocation14 + $0xf1]]
        %s679 = sld [smem:[#allocation14 + $0xf2]]
        %s680 = sld [smem:[#allocation14 + $0xf3]]
        %s681 = sld [smem:[#allocation14 + $0xf4]]
        %s682 = sld [smem:[#allocation14 + $0xf5]]
        %s683 = sld [smem:[#allocation14 + $0xf6]]
        %s684 = sld [smem:[#allocation14 + $0xf7]]
        %s685 = sld [smem:[#allocation14 + $0xf8]]
        %s686 = sld [smem:[#allocation14 + $0xf9]]
        %s687 = sld [smem:[#allocation14 + $0xfa]]
        %s688 = sld [smem:[#allocation14 + $0xfb]]
        %s689 = sld [smem:[#allocation14 + $0xfc]]
        %s690 = sld [smem:[#allocation14 + $0xfd]]
        %s691 = sld [smem:[#allocation14 + $0xfe]]
        %s692 = sld [smem:[#allocation14 + $0xff]]
        %s693 = sld [smem:[#allocation14 + $0x100]]
        %s694 = sld [smem:[#allocation14 + $0x101]]
        %s695 = sld [smem:[#allocation14 + $0x102]]
        %s696 = sld [smem:[#allocation14 + $0x103]]
        %s697 = sld [smem:[#allocation14 + $0x104]]
        %s698 = sld [smem:[#allocation14 + $0x105]]
        %s699 = sld [smem:[#allocation14 + $0x106]]
        %s700 = sld [smem:[#allocation14 + $0x107]]
        %s701 = sld [smem:[#allocation14 + $0x108]]
        %s702 = sld [smem:[#allocation14 + $0x109]]
        %s703 = sld [smem:[#allocation14 + $0x10a]]
        %s704 = sld [smem:[#allocation14 + $0x10b]]
        %s705 = sld [smem:[#allocation14 + $0x10c]]
        %s706 = sld [smem:[#allocation14 + $0x10d]]
        %s707 = sld [smem:[#allocation14 + $0x10e]]
        %s708 = sld [smem:[#allocation14 + $0x10f]]
        %s709 = sld [smem:[#allocation14 + $0x110]]
        %s710 = sld [smem:[#allocation14 + $0x111]]
        %s711 = sld [smem:[#allocation14 + $0x112]]
        %s712 = sld [smem:[#allocation14 + $0x113]]
        %s713 = sld [smem:[#allocation14 + $0x114]]
        %s714 = sld [smem:[#allocation14 + $0x115]]
        %s715 = sld [smem:[#allocation14 + $0x116]]
        %s716 = sld [smem:[#allocation14 + $0x117]]
        %s717 = sld [smem:[#allocation14 + $0x118]]
        %s718 = sld [smem:[#allocation14 + $0x119]]
        %s719 = sld [smem:[#allocation14 + $0x11a]]
        %s720 = sld [smem:[#allocation14 + $0x11b]]
        %s721 = sld [smem:[#allocation14 + $0x11c]]
        %s722 = sld [smem:[#allocation14 + $0x11d]]
        %s723 = sld [smem:[#allocation14 + $0x11e]]
        %s724 = sld [smem:[#allocation14 + $0x11f]]
        %s725 = sld [smem:[#allocation15]]
        %s726 = sld [smem:[#allocation15 + $0x1]]
        %s727 = sld [smem:[#allocation15 + $0x2]]
        %s728 = sld [smem:[#allocation15 + $0x3]]
        %v729 = vld [vmem:[#allocation9] sm:$0xff]
        %v730 = vld [vmem:[#allocation9 + $0x8] sm:$0xff]
        %v731 = vld [vmem:[#allocation11] sm:$0xff]
        %v732 = vld [vmem:[#allocation11 + $0x8] sm:$0xff]
        %v733 = vld [vmem:[#allocation12] sm:$0xff]
        %v734 = vld [vmem:[#allocation12 + $0x8] sm:$0xff]
        %v735 = vld [vmem:[%s435] sm:$0xff]
        %v736 = vld [vmem:[%s445] sm:$0xff]
        %s737 = scalar_select %p531, 1, 0
        %v738 = vstv %s737
        %vm739 = vcmp.eq.s32.totalorder %v738, 1
        %v740 = vsel %vm739, %v736, 0.0
        %v741 = vld [vmem:[%s455] sm:$0xff]
        %s742 = scalar_select %p532, 1, 0
        %v743 = vstv %s742
        %vm744 = vcmp.eq.s32.totalorder %v743, 1
        %v745 = vsel %vm744, %v741, 0.0
        %v747 = vrot.slane %v740, 7
        %v750 = vrot.slane %v735, 7
        %v753 = vrot.slane %v745, 7
        %vm755 = vcmask 1040384
        %v756 = vsel %vm755, %v747, %v750
        %v757 = vsel %vm755, %v750, %v753
        %vm758 = vcmask 130048
        %v760 = vsel %vm758, %v756, 0
        %v763 = vsel %vm758, %v757, 0
        %765 = vmatpush.msra.mxu0 0.0
        %766 = vmatpush.msra.mxu0 0.0
        %767 = vmatpush.msra.mxu0 0.0
        %768 = vmatpush.msra.mxu0 0.0
        %769 = vmatpush.msra.mxu0 0.0
        %770 = vmatpush.msra.mxu0 0.0
        %771 = vmatpush.msra.mxu0 0.0
        %772 = vmatpush.msra.mxu0 0.0
        %773 = vmatpush.msra.mxu0 0.0
        %774 = vmatpush.msra.mxu0 0.0
        %775 = vmatpush.msra.mxu0 0.0
        %776 = vmatpush.msra.mxu0 0.0
        %777 = vmatpush.msra.mxu0 0.0
        %778 = vmatpush.msra.mxu0 0.0
        %779 = vmatpush.msra.mxu0 %v730
        %780 = vmatpush.msra.mxu0 %v729
        %781 = vmatmul.f32.gmra.mxu0 %v760
        %v782 = vpop.f32.mrf.mxu0
        %v783 = vadd.f32 0.0, %v782
        %784 = vmatmul.f32.gmra.mxu0 %v763
        %v785 = vpop.f32.mrf.mxu0
        %v786 = vadd.f32 0.0, %v785
        %787 = vdwg.mxu0
        %788 = vmatpush.msra.mxu0 0.0
        %789 = vmatpush.msra.mxu0 0.0
        %790 = vmatpush.msra.mxu0 0.0
        %791 = vmatpush.msra.mxu0 0.0
        %792 = vmatpush.msra.mxu0 0.0
        %793 = vmatpush.msra.mxu0 0.0
        %794 = vmatpush.msra.mxu0 0.0
        %795 = vmatpush.msra.mxu0 0.0
        %796 = vmatpush.msra.mxu0 0.0
        %797 = vmatpush.msra.mxu0 0.0
        %798 = vmatpush.msra.mxu0 0.0
        %799 = vmatpush.msra.mxu0 0.0
        %800 = vmatpush.msra.mxu0 0.0
        %801 = vmatpush.msra.mxu0 0.0
        %802 = vmatpush.msra.mxu0 %v732
        %803 = vmatpush.msra.mxu0 %v731
        %804 = vmatmul.f32.gmra.mxu0 %v760
        %v805 = vpop.f32.mrf.mxu0
        %v806 = vadd.f32 0.0, %v805
        %807 = vmatmul.f32.gmra.mxu0 %v763
        %v808 = vpop.f32.mrf.mxu0
        %v809 = vadd.f32 0.0, %v808
        %810 = vdwg.mxu0
        %811 = vmatpush.msra.mxu0 0.0
        %812 = vmatpush.msra.mxu0 0.0
        %813 = vmatpush.msra.mxu0 0.0
        %814 = vmatpush.msra.mxu0 0.0
        %815 = vmatpush.msra.mxu0 0.0
        %816 = vmatpush.msra.mxu0 0.0
        %817 = vmatpush.msra.mxu0 0.0
        %818 = vmatpush.msra.mxu0 0.0
        %819 = vmatpush.msra.mxu0 0.0
        %820 = vmatpush.msra.mxu0 0.0
        %821 = vmatpush.msra.mxu0 0.0
        %822 = vmatpush.msra.mxu0 0.0
        %823 = vmatpush.msra.mxu0 0.0
        %824 = vmatpush.msra.mxu0 0.0
        %825 = vmatpush.msra.mxu0 %v734
        %826 = vmatpush.msra.mxu0 %v733
        %827 = vmatmul.f32.gmra.mxu0 %v760
        %v828 = vpop.f32.mrf.mxu0
        %v829 = vadd.f32 0.0, %v828
        %830 = vmatmul.f32.gmra.mxu0 %v763
        %v831 = vpop.f32.mrf.mxu0
        %v832 = vadd.f32 0.0, %v831
        %833 = vdwg.mxu0
        %s834 = scalar_lea.vmem %s435, 8 [#allocation2]
        %v835 = vld [vmem:[%s834] sm:$0xff]
        %s836 = scalar_lea.vmem %s445, 8 [#allocation6]
        %v837 = vld [vmem:[%s836] sm:$0xff]
        %v838 = vsel %vm739, %v837, 0.0
        %s839 = scalar_lea.vmem %s455, 8 [#allocation8]
        %v840 = vld [vmem:[%s839] sm:$0xff]
        %v841 = vsel %vm744, %v840, 0.0
        %v843 = vrot.slane %v838, 7
        %v846 = vrot.slane %v835, 7
        %v849 = vrot.slane %v841, 7
        %v851 = vsel %vm755, %v843, %v846
        %v852 = vsel %vm755, %v846, %v849
        %v854 = vsel %vm758, %v851, 0
        %v857 = vsel %vm758, %v852, 0
        %859 = vmatpush.msra.mxu0 0.0
        %860 = vmatpush.msra.mxu0 0.0
        %861 = vmatpush.msra.mxu0 0.0
        %862 = vmatpush.msra.mxu0 0.0
        %863 = vmatpush.msra.mxu0 0.0
        %864 = vmatpush.msra.mxu0 0.0
        %865 = vmatpush.msra.mxu0 0.0
        %866 = vmatpush.msra.mxu0 0.0
        %867 = vmatpush.msra.mxu0 0.0
        %868 = vmatpush.msra.mxu0 0.0
        %869 = vmatpush.msra.mxu0 0.0
        %870 = vmatpush.msra.mxu0 0.0
        %871 = vmatpush.msra.mxu0 0.0
        %872 = vmatpush.msra.mxu0 0.0
        %873 = vmatpush.msra.mxu0 %v730
        %874 = vmatpush.msra.mxu0 %v729
        %875 = vmatmul.f32.gmra.mxu0 %v854
        %v876 = vpop.f32.mrf.mxu0
        %v877 = vadd.f32 0.0, %v876
        %878 = vmatmul.f32.gmra.mxu0 %v857
        %v879 = vpop.f32.mrf.mxu0
        %v880 = vadd.f32 0.0, %v879
        %881 = vdwg.mxu0
        %882 = vmatpush.msra.mxu0 0.0
        %883 = vmatpush.msra.mxu0 0.0
        %884 = vmatpush.msra.mxu0 0.0
        %885 = vmatpush.msra.mxu0 0.0
        %886 = vmatpush.msra.mxu0 0.0
        %887 = vmatpush.msra.mxu0 0.0
        %888 = vmatpush.msra.mxu0 0.0
        %889 = vmatpush.msra.mxu0 0.0
        %890 = vmatpush.msra.mxu0 0.0
        %891 = vmatpush.msra.mxu0 0.0
        %892 = vmatpush.msra.mxu0 0.0
        %893 = vmatpush.msra.mxu0 0.0
        %894 = vmatpush.msra.mxu0 0.0
        %895 = vmatpush.msra.mxu0 0.0
        %896 = vmatpush.msra.mxu0 %v732
        %897 = vmatpush.msra.mxu0 %v731
        %898 = vmatmul.f32.gmra.mxu0 %v854
        %v899 = vpop.f32.mrf.mxu0
        %v900 = vadd.f32 0.0, %v899
        %901 = vmatmul.f32.gmra.mxu0 %v857
        %v902 = vpop.f32.mrf.mxu0
        %v903 = vadd.f32 0.0, %v902
        %904 = vdwg.mxu0
        %905 = vmatpush.msra.mxu0 0.0
        %906 = vmatpush.msra.mxu0 0.0
        %907 = vmatpush.msra.mxu0 0.0
        %908 = vmatpush.msra.mxu0 0.0
        %909 = vmatpush.msra.mxu0 0.0
        %910 = vmatpush.msra.mxu0 0.0
        %911 = vmatpush.msra.mxu0 0.0
        %912 = vmatpush.msra.mxu0 0.0
        %913 = vmatpush.msra.mxu0 0.0
        %914 = vmatpush.msra.mxu0 0.0
        %915 = vmatpush.msra.mxu0 0.0
        %916 = vmatpush.msra.mxu0 0.0
        %917 = vmatpush.msra.mxu0 0.0
        %918 = vmatpush.msra.mxu0 0.0
        %919 = vmatpush.msra.mxu0 %v734
        %920 = vmatpush.msra.mxu0 %v733
        %921 = vmatmul.f32.gmra.mxu0 %v854
        %v922 = vpop.f32.mrf.mxu0
        %v923 = vadd.f32 0.0, %v922
        %924 = vmatmul.f32.gmra.mxu0 %v857
        %v925 = vpop.f32.mrf.mxu0
        %v926 = vadd.f32 0.0, %v925
        %927 = vdwg.mxu0
        %s928 = scalar_lea.vmem %s435, 16 [#allocation2]
        %v929 = vld [vmem:[%s928] sm:$0xff]
        %s930 = scalar_lea.vmem %s445, 16 [#allocation6]
        %v931 = vld [vmem:[%s930] sm:$0xff]
        %v932 = vsel %vm739, %v931, 0.0
        %s933 = scalar_lea.vmem %s455, 16 [#allocation8]
        %v934 = vld [vmem:[%s933] sm:$0xff]
        %v935 = vsel %vm744, %v934, 0.0
        %v937 = vrot.slane %v932, 7
        %v940 = vrot.slane %v929, 7
        %v943 = vrot.slane %v935, 7
        %v945 = vsel %vm755, %v937, %v940
        %v946 = vsel %vm755, %v940, %v943
        %v948 = vsel %vm758, %v945, 0
        %v951 = vsel %vm758, %v946, 0
        %953 = vmatpush.msra.mxu0 0.0
        %954 = vmatpush.msra.mxu0 0.0
        %955 = vmatpush.msra.mxu0 0.0
        %956 = vmatpush.msra.mxu0 0.0
        %957 = vmatpush.msra.mxu0 0.0
        %958 = vmatpush.msra.mxu0 0.0
        %959 = vmatpush.msra.mxu0 0.0
        %960 = vmatpush.msra.mxu0 0.0
        %961 = vmatpush.msra.mxu0 0.0
        %962 = vmatpush.msra.mxu0 0.0
        %963 = vmatpush.msra.mxu0 0.0
        %964 = vmatpush.msra.mxu0 0.0
        %965 = vmatpush.msra.mxu0 0.0
        %966 = vmatpush.msra.mxu0 0.0
        %967 = vmatpush.msra.mxu0 %v730
        %968 = vmatpush.msra.mxu0 %v729
        %969 = vmatmul.f32.gmra.mxu0 %v948
        %v970 = vpop.f32.mrf.mxu0
        %v971 = vadd.f32 0.0, %v970
        %972 = vmatmul.f32.gmra.mxu0 %v951
        %v973 = vpop.f32.mrf.mxu0
        %v974 = vadd.f32 0.0, %v973
        %975 = vdwg.mxu0
        %976 = vmatpush.msra.mxu0 0.0
        %977 = vmatpush.msra.mxu0 0.0
        %978 = vmatpush.msra.mxu0 0.0
        %979 = vmatpush.msra.mxu0 0.0
        %980 = vmatpush.msra.mxu0 0.0
        %981 = vmatpush.msra.mxu0 0.0
        %982 = vmatpush.msra.mxu0 0.0
        %983 = vmatpush.msra.mxu0 0.0
        %984 = vmatpush.msra.mxu0 0.0
        %985 = vmatpush.msra.mxu0 0.0
        %986 = vmatpush.msra.mxu0 0.0
        %987 = vmatpush.msra.mxu0 0.0
        %988 = vmatpush.msra.mxu0 0.0
        %989 = vmatpush.msra.mxu0 0.0
        %990 = vmatpush.msra.mxu0 %v732
        %991 = vmatpush.msra.mxu0 %v731
        %992 = vmatmul.f32.gmra.mxu0 %v948
        %v993 = vpop.f32.mrf.mxu0
        %v994 = vadd.f32 0.0, %v993
        %995 = vmatmul.f32.gmra.mxu0 %v951
        %v996 = vpop.f32.mrf.mxu0
        %v997 = vadd.f32 0.0, %v996
        %998 = vdwg.mxu0
        %999 = vmatpush.msra.mxu0 0.0
        %1000 = vmatpush.msra.mxu0 0.0
        %1001 = vmatpush.msra.mxu0 0.0
        %1002 = vmatpush.msra.mxu0 0.0
        %1003 = vmatpush.msra.mxu0 0.0
        %1004 = vmatpush.msra.mxu0 0.0
        %1005 = vmatpush.msra.mxu0 0.0
        %1006 = vmatpush.msra.mxu0 0.0
        %1007 = vmatpush.msra.mxu0 0.0
        %1008 = vmatpush.msra.mxu0 0.0
        %1009 = vmatpush.msra.mxu0 0.0
        %1010 = vmatpush.msra.mxu0 0.0
        %1011 = vmatpush.msra.mxu0 0.0
        %1012 = vmatpush.msra.mxu0 0.0
        %1013 = vmatpush.msra.mxu0 %v734
        %1014 = vmatpush.msra.mxu0 %v733
        %1015 = vmatmul.f32.gmra.mxu0 %v948
        %v1016 = vpop.f32.mrf.mxu0
        %v1017 = vadd.f32 0.0, %v1016
        %1018 = vmatmul.f32.gmra.mxu0 %v951
        %v1019 = vpop.f32.mrf.mxu0
        %v1020 = vadd.f32 0.0, %v1019
        %1021 = vdwg.mxu0
        %s1022 = scalar_lea.vmem %s435, 24 [#allocation2]
        %v1023 = vld [vmem:[%s1022] sm:$0xff]
        %s1024 = scalar_lea.vmem %s445, 24 [#allocation6]
        %v1025 = vld [vmem:[%s1024] sm:$0xff]
        %v1026 = vsel %vm739, %v1025, 0.0
        %s1027 = scalar_lea.vmem %s455, 24 [#allocation8]
        %v1028 = vld [vmem:[%s1027] sm:$0xff]
        %v1029 = vsel %vm744, %v1028, 0.0
        %v1031 = vrot.slane %v1026, 7
        %v1034 = vrot.slane %v1023, 7
        %v1037 = vrot.slane %v1029, 7
        %v1039 = vsel %vm755, %v1031, %v1034
        %v1040 = vsel %vm755, %v1034, %v1037
        %v1042 = vsel %vm758, %v1039, 0
        %v1045 = vsel %vm758, %v1040, 0
        %1047 = vmatpush.msra.mxu0 0.0
        %1048 = vmatpush.msra.mxu0 0.0
        %1049 = vmatpush.msra.mxu0 0.0
        %1050 = vmatpush.msra.mxu0 0.0
        %1051 = vmatpush.msra.mxu0 0.0
        %1052 = vmatpush.msra.mxu0 0.0
        %1053 = vmatpush.msra.mxu0 0.0
        %1054 = vmatpush.msra.mxu0 0.0
        %1055 = vmatpush.msra.mxu0 0.0
        %1056 = vmatpush.msra.mxu0 0.0
        %1057 = vmatpush.msra.mxu0 0.0
        %1058 = vmatpush.msra.mxu0 0.0
        %1059 = vmatpush.msra.mxu0 0.0
        %1060 = vmatpush.msra.mxu0 0.0
        %1061 = vmatpush.msra.mxu0 %v730
        %1062 = vmatpush.msra.mxu0 %v729
        %1063 = vmatmul.f32.gmra.mxu0 %v1042
        %v1064 = vpop.f32.mrf.mxu0
        %v1065 = vadd.f32 0.0, %v1064
        %1066 = vmatmul.f32.gmra.mxu0 %v1045
        %v1067 = vpop.f32.mrf.mxu0
        %v1068 = vadd.f32 0.0, %v1067
        %1069 = vdwg.mxu0
        %1070 = vmatpush.msra.mxu0 0.0
        %1071 = vmatpush.msra.mxu0 0.0
        %1072 = vmatpush.msra.mxu0 0.0
        %1073 = vmatpush.msra.mxu0 0.0
        %1074 = vmatpush.msra.mxu0 0.0
        %1075 = vmatpush.msra.mxu0 0.0
        %1076 = vmatpush.msra.mxu0 0.0
        %1077 = vmatpush.msra.mxu0 0.0
        %1078 = vmatpush.msra.mxu0 0.0
        %1079 = vmatpush.msra.mxu0 0.0
        %1080 = vmatpush.msra.mxu0 0.0
        %1081 = vmatpush.msra.mxu0 0.0
        %1082 = vmatpush.msra.mxu0 0.0
        %1083 = vmatpush.msra.mxu0 0.0
        %1084 = vmatpush.msra.mxu0 %v732
        %1085 = vmatpush.msra.mxu0 %v731
        %1086 = vmatmul.f32.gmra.mxu0 %v1042
        %v1087 = vpop.f32.mrf.mxu0
        %v1088 = vadd.f32 0.0, %v1087
        %1089 = vmatmul.f32.gmra.mxu0 %v1045
        %v1090 = vpop.f32.mrf.mxu0
        %v1091 = vadd.f32 0.0, %v1090
        %1092 = vdwg.mxu0
        %1093 = vmatpush.msra.mxu0 0.0
        %1094 = vmatpush.msra.mxu0 0.0
        %1095 = vmatpush.msra.mxu0 0.0
        %1096 = vmatpush.msra.mxu0 0.0
        %1097 = vmatpush.msra.mxu0 0.0
        %1098 = vmatpush.msra.mxu0 0.0
        %1099 = vmatpush.msra.mxu0 0.0
        %1100 = vmatpush.msra.mxu0 0.0
        %1101 = vmatpush.msra.mxu0 0.0
        %1102 = vmatpush.msra.mxu0 0.0
        %1103 = vmatpush.msra.mxu0 0.0
        %1104 = vmatpush.msra.mxu0 0.0
        %1105 = vmatpush.msra.mxu0 0.0
        %1106 = vmatpush.msra.mxu0 0.0
        %1107 = vmatpush.msra.mxu0 %v734
        %1108 = vmatpush.msra.mxu0 %v733
        %1109 = vmatmul.f32.gmra.mxu0 %v1042
        %v1110 = vpop.f32.mrf.mxu0
        %v1111 = vadd.f32 0.0, %v1110
        %1112 = vmatmul.f32.gmra.mxu0 %v1045
        %v1113 = vpop.f32.mrf.mxu0
        %v1114 = vadd.f32 0.0, %v1113
        %1115 = vdwg.mxu0
        %v1116 = vstv %s533
        %v1117 = vmul.f32 %v1116, %v783
        %v1118 = vadd.f32 %v1117, 0.0
        %v1119 = vstv %s534
        %v1120 = vmul.f32 %v1119, %v806
        %v1121 = vadd.f32 %v1118, %v1120
        %v1122 = vstv %s535
        %v1123 = vmul.f32 %v1122, %v829
        %v1124 = vadd.f32 %v1121, %v1123
        %v1125 = vstv %s581
        %v1126 = vmul.f32 %v1125, %v783
        %v1127 = vmul.f32 %v1125, %v786
        %vm1130 = vcmask 1046528
        %v1131 = vrot.slane %v1126, 1
        %v1132 = vrot.slane %v1127, 1
        %v1133 = vsel %vm1130, %v1131, %v1132
        %v1135 = vadd.f32 %v1124, %v1133
        %v1136 = vstv %s582
        %v1137 = vmul.f32 %v1136, %v806
        %v1138 = vmul.f32 %v1136, %v809
        %v1141 = vrot.slane %v1137, 1
        %v1142 = vrot.slane %v1138, 1
        %v1143 = vsel %vm1130, %v1141, %v1142
        %v1145 = vadd.f32 %v1135, %v1143
        %v1146 = vstv %s583
        %v1147 = vmul.f32 %v1146, %v829
        %v1148 = vmul.f32 %v1146, %v832
        %v1151 = vrot.slane %v1147, 1
        %v1152 = vrot.slane %v1148, 1
        %v1153 = vsel %vm1130, %v1151, %v1152
        %v1155 = vadd.f32 %v1145, %v1153
        %v1156 = vstv %s536
        %v1157 = vmul.f32 %v1156, %v877
        %v1158 = vadd.f32 %v1155, %v1157
        %v1159 = vstv %s537
        %v1160 = vmul.f32 %v1159, %v900
        %v1161 = vadd.f32 %v1158, %v1160
        %v1162 = vstv %s538
        %v1163 = vmul.f32 %v1162, %v923
        %v1164 = vadd.f32 %v1161, %v1163
        %v1165 = vstv %s584
        %v1166 = vmul.f32 %v1165, %v877
        %v1167 = vmul.f32 %v1165, %v880
        %v1170 = vrot.slane %v1166, 1
        %v1171 = vrot.slane %v1167, 1
        %v1172 = vsel %vm1130, %v1170, %v1171
        %v1174 = vadd.f32 %v1164, %v1172
        %v1175 = vstv %s585
        %v1176 = vmul.f32 %v1175, %v900
        %v1177 = vmul.f32 %v1175, %v903
        %v1180 = vrot.slane %v1176, 1
        %v1181 = vrot.slane %v1177, 1
        %v1182 = vsel %vm1130, %v1180, %v1181
        %v1184 = vadd.f32 %v1174, %v1182
        %v1185 = vstv %s586
        %v1186 = vmul.f32 %v1185, %v923
        %v1187 = vmul.f32 %v1185, %v926
        %v1190 = vrot.slane %v1186, 1
        %v1191 = vrot.slane %v1187, 1
        %v1192 = vsel %vm1130, %v1190, %v1191
        %v1194 = vadd.f32 %v1184, %v1192
        %v1195 = vstv %s539
        %v1196 = vmul.f32 %v1195, %v971
        %v1197 = vadd.f32 %v1194, %v1196
        %v1198 = vstv %s540
        %v1199 = vmul.f32 %v1198, %v994
        %v1200 = vadd.f32 %v1197, %v1199
        %v1201 = vstv %s541
        %v1202 = vmul.f32 %v1201, %v1017
        %v1203 = vadd.f32 %v1200, %v1202
        %v1204 = vstv %s587
        %v1205 = vmul.f32 %v1204, %v971
        %v1206 = vmul.f32 %v1204, %v974
        %v1209 = vrot.slane %v1205, 1
        %v1210 = vrot.slane %v1206, 1
        %v1211 = vsel %vm1130, %v1209, %v1210
        %v1213 = vadd.f32 %v1203, %v1211
        %v1214 = vstv %s588
        %v1215 = vmul.f32 %v1214, %v994
        %v1216 = vmul.f32 %v1214, %v997
        %v1219 = vrot.slane %v1215, 1
        %v1220 = vrot.slane %v1216, 1
        %v1221 = vsel %vm1130, %v1219, %v1220
        %v1223 = vadd.f32 %v1213, %v1221
        %v1224 = vstv %s589
        %v1225 = vmul.f32 %v1224, %v1017
        %v1226 = vmul.f32 %v1224, %v1020
        %v1229 = vrot.slane %v1225, 1
        %v1230 = vrot.slane %v1226, 1
        %v1231 = vsel %vm1130, %v1229, %v1230
        %v1233 = vadd.f32 %v1223, %v1231
        %v1234 = vstv %s542
        %v1235 = vmul.f32 %v1234, %v1065
        %v1236 = vadd.f32 %v1233, %v1235
        %v1237 = vstv %s543
        %v1238 = vmul.f32 %v1237, %v1088
        %v1239 = vadd.f32 %v1236, %v1238
        %v1240 = vstv %s544
        %v1241 = vmul.f32 %v1240, %v1111
        %v1242 = vadd.f32 %v1239, %v1241
        %v1243 = vstv %s590
        %v1244 = vmul.f32 %v1243, %v1065
        %v1245 = vmul.f32 %v1243, %v1068
        %v1248 = vrot.slane %v1244, 1
        %v1249 = vrot.slane %v1245, 1
        %v1250 = vsel %vm1130, %v1248, %v1249
        %v1252 = vadd.f32 %v1242, %v1250
        %v1253 = vstv %s591
        %v1254 = vmul.f32 %v1253, %v1088
        %v1255 = vmul.f32 %v1253, %v1091
        %v1258 = vrot.slane %v1254, 1
        %v1259 = vrot.slane %v1255, 1
        %v1260 = vsel %vm1130, %v1258, %v1259
        %v1262 = vadd.f32 %v1252, %v1260
        %v1263 = vstv %s592
        %v1264 = vmul.f32 %v1263, %v1111
        %v1265 = vmul.f32 %v1263, %v1114
        %v1268 = vrot.slane %v1264, 1
        %v1269 = vrot.slane %v1265, 1
        %v1270 = vsel %vm1130, %v1268, %v1269
        %v1272 = vadd.f32 %v1262, %v1270
        %v1273 = vstv %s725
        %v1274 = vadd.f32 %v1272, %v1273
        %vm1275 = vcmask 261120
        %1276 = vst.msk [vmem:[%s524] sm:$0xff] %vm1275, %v1274
        %v1277 = vstv %s629
        %v1278 = vmul.f32 %v1277, %v783
        %v1279 = vmul.f32 %v1277, %v786
        %v1280 = vadd.f32 %v1278, 0.0
        %v1281 = vadd.f32 %v1279, 0.0
        %v1282 = vstv %s630
        %v1283 = vmul.f32 %v1282, %v806
        %v1284 = vmul.f32 %v1282, %v809
        %v1285 = vadd.f32 %v1280, %v1283
        %v1286 = vadd.f32 %v1281, %v1284
        %v1287 = vstv %s631
        %v1288 = vmul.f32 %v1287, %v829
        %v1289 = vmul.f32 %v1287, %v832
        %v1290 = vadd.f32 %v1285, %v1288
        %v1291 = vadd.f32 %v1286, %v1289
        %v1292 = vstv %s677
        %v1293 = vmul.f32 %v1292, %v783
        %v1294 = vmul.f32 %v1292, %v786
        %v1297 = vrot.slane %v1293, 1
        %v1298 = vrot.slane %v1294, 1
        %v1299 = vsel %vm1130, %v1297, %v1298
        %v1302 = vadd.f32 %v1290, %v1299
        %v1303 = vadd.f32 %v1291, %v1298
        %v1304 = vstv %s678
        %v1305 = vmul.f32 %v1304, %v806
        %v1306 = vmul.f32 %v1304, %v809
        %v1309 = vrot.slane %v1305, 1
        %v1310 = vrot.slane %v1306, 1
        %v1311 = vsel %vm1130, %v1309, %v1310
        %v1314 = vadd.f32 %v1302, %v1311
        %v1315 = vadd.f32 %v1303, %v1310
        %v1316 = vstv %s679
        %v1317 = vmul.f32 %v1316, %v829
        %v1318 = vmul.f32 %v1316, %v832
        %v1321 = vrot.slane %v1317, 1
        %v1322 = vrot.slane %v1318, 1
        %v1323 = vsel %vm1130, %v1321, %v1322
        %v1326 = vadd.f32 %v1314, %v1323
        %v1327 = vadd.f32 %v1315, %v1322
        %v1328 = vstv %s632
        %v1329 = vmul.f32 %v1328, %v877
        %v1330 = vmul.f32 %v1328, %v880
        %v1331 = vadd.f32 %v1326, %v1329
        %v1332 = vadd.f32 %v1327, %v1330
        %v1333 = vstv %s633
        %v1334 = vmul.f32 %v1333, %v900
        %v1335 = vmul.f32 %v1333, %v903
        %v1336 = vadd.f32 %v1331, %v1334
        %v1337 = vadd.f32 %v1332, %v1335
        %v1338 = vstv %s634
        %v1339 = vmul.f32 %v1338, %v923
        %v1340 = vmul.f32 %v1338, %v926
        %v1341 = vadd.f32 %v1336, %v1339
        %v1342 = vadd.f32 %v1337, %v1340
        %v1343 = vstv %s680
        %v1344 = vmul.f32 %v1343, %v877
        %v1345 = vmul.f32 %v1343, %v880
        %v1348 = vrot.slane %v1344, 1
        %v1349 = vrot.slane %v1345, 1
        %v1350 = vsel %vm1130, %v1348, %v1349
        %v1353 = vadd.f32 %v1341, %v1350
        %v1354 = vadd.f32 %v1342, %v1349
        %v1355 = vstv %s681
        %v1356 = vmul.f32 %v1355, %v900
        %v1357 = vmul.f32 %v1355, %v903
        %v1360 = vrot.slane %v1356, 1
        %v1361 = vrot.slane %v1357, 1
        %v1362 = vsel %vm1130, %v1360, %v1361
        %v1365 = vadd.f32 %v1353, %v1362
        %v1366 = vadd.f32 %v1354, %v1361
        %v1367 = vstv %s682
        %v1368 = vmul.f32 %v1367, %v923
        %v1369 = vmul.f32 %v1367, %v926
        %v1372 = vrot.slane %v1368, 1
        %v1373 = vrot.slane %v1369, 1
        %v1374 = vsel %vm1130, %v1372, %v1373
        %v1377 = vadd.f32 %v1365, %v1374
        %v1378 = vadd.f32 %v1366, %v1373
        %v1379 = vstv %s635
        %v1380 = vmul.f32 %v1379, %v971
        %v1381 = vmul.f32 %v1379, %v974
        %v1382 = vadd.f32 %v1377, %v1380
        %v1383 = vadd.f32 %v1378, %v1381
        %v1384 = vstv %s636
        %v1385 = vmul.f32 %v1384, %v994
        %v1386 = vmul.f32 %v1384, %v997
        %v1387 = vadd.f32 %v1382, %v1385
        %v1388 = vadd.f32 %v1383, %v1386
        %v1389 = vstv %s637
        %v1390 = vmul.f32 %v1389, %v1017
        %v1391 = vmul.f32 %v1389, %v1020
        %v1392 = vadd.f32 %v1387, %v1390
        %v1393 = vadd.f32 %v1388, %v1391
        %v1394 = vstv %s683
        %v1395 = vmul.f32 %v1394, %v971
        %v1396 = vmul.f32 %v1394, %v974
        %v1399 = vrot.slane %v1395, 1
        %v1400 = vrot.slane %v1396, 1
        %v1401 = vsel %vm1130, %v1399, %v1400
        %v1404 = vadd.f32 %v1392, %v1401
        %v1405 = vadd.f32 %v1393, %v1400
        %v1406 = vstv %s684
        %v1407 = vmul.f32 %v1406, %v994
        %v1408 = vmul.f32 %v1406, %v997
        %v1411 = vrot.slane %v1407, 1
        %v1412 = vrot.slane %v1408, 1
        %v1413 = vsel %vm1130, %v1411, %v1412
        %v1416 = vadd.f32 %v1404, %v1413
        %v1417 = vadd.f32 %v1405, %v1412
        %v1418 = vstv %s685
        %v1419 = vmul.f32 %v1418, %v1017
        %v1420 = vmul.f32 %v1418, %v1020
        %v1423 = vrot.slane %v1419, 1
        %v1424 = vrot.slane %v1420, 1
        %v1425 = vsel %vm1130, %v1423, %v1424
        %v1428 = vadd.f32 %v1416, %v1425
        %v1429 = vadd.f32 %v1417, %v1424
        %v1430 = vstv %s638
        %v1431 = vmul.f32 %v1430, %v1065
        %v1432 = vmul.f32 %v1430, %v1068
        %v1433 = vadd.f32 %v1428, %v1431
        %v1434 = vadd.f32 %v1429, %v1432
        %v1435 = vstv %s639
        %v1436 = vmul.f32 %v1435, %v1088
        %v1437 = vmul.f32 %v1435, %v1091
        %v1438 = vadd.f32 %v1433, %v1436
        %v1439 = vadd.f32 %v1434, %v1437
        %v1440 = vstv %s640
        %v1441 = vmul.f32 %v1440, %v1111
        %v1442 = vmul.f32 %v1440, %v1114
        %v1443 = vadd.f32 %v1438, %v1441
        %v1444 = vadd.f32 %v1439, %v1442
        %v1445 = vstv %s686
        %v1446 = vmul.f32 %v1445, %v1065
        %v1447 = vmul.f32 %v1445, %v1068
        %v1450 = vrot.slane %v1446, 1
        %v1451 = vrot.slane %v1447, 1
        %v1452 = vsel %vm1130, %v1450, %v1451
        %v1455 = vadd.f32 %v1443, %v1452
        %v1456 = vadd.f32 %v1444, %v1451
        %v1457 = vstv %s687
        %v1458 = vmul.f32 %v1457, %v1088
        %v1459 = vmul.f32 %v1457, %v1091
        %v1462 = vrot.slane %v1458, 1
        %v1463 = vrot.slane %v1459, 1
        %v1464 = vsel %vm1130, %v1462, %v1463
        %v1467 = vadd.f32 %v1455, %v1464
        %v1468 = vadd.f32 %v1456, %v1463
        %v1469 = vstv %s688
        %v1470 = vmul.f32 %v1469, %v1111
        %v1471 = vmul.f32 %v1469, %v1114
        %v1474 = vrot.slane %v1470, 1
        %v1475 = vrot.slane %v1471, 1
        %v1476 = vsel %vm1130, %v1474, %v1475
        %v1479 = vadd.f32 %v1467, %v1476
        %v1480 = vadd.f32 %v1468, %v1475
        %v1481 = vadd.f32 %v1479, %v1273
        %v1482 = vadd.f32 %v1480, %v1273
        %1485 = vrot.lane.b32.xlu0 %v1481, 32
        %v1486 = vpop.permute.xlu0 %1485
        %1487 = vrot.lane.b32.xlu0 %v1482, 32
        %v1488 = vpop.permute.xlu0 %1487
        %vm1491 = vcmask 523521
        %1492 = vst.msk [vmem:[%s524 - $0x1] sm:$0xfe] %vm1491, %v1486
        %vm1493 = vcmask 516352
        %1494 = vst.msk [vmem:[%s524 + $0x7] sm:$0x1] %vm1493, %v1488
        %v1495 = vstv %s545
        %v1496 = vmul.f32 %v1495, %v783
        %v1497 = vadd.f32 %v1496, 0.0
        %v1498 = vstv %s546
        %v1499 = vmul.f32 %v1498, %v806
        %v1500 = vadd.f32 %v1497, %v1499
        %v1501 = vstv %s547
        %v1502 = vmul.f32 %v1501, %v829
        %v1503 = vadd.f32 %v1500, %v1502
        %v1504 = vstv %s593
        %v1505 = vmul.f32 %v1504, %v783
        %v1506 = vmul.f32 %v1504, %v786
        %v1509 = vrot.slane %v1505, 1
        %v1510 = vrot.slane %v1506, 1
        %v1511 = vsel %vm1130, %v1509, %v1510
        %v1513 = vadd.f32 %v1503, %v1511
        %v1514 = vstv %s594
        %v1515 = vmul.f32 %v1514, %v806
        %v1516 = vmul.f32 %v1514, %v809
        %v1519 = vrot.slane %v1515, 1
        %v1520 = vrot.slane %v1516, 1
        %v1521 = vsel %vm1130, %v1519, %v1520
        %v1523 = vadd.f32 %v1513, %v1521
        %v1524 = vstv %s595
        %v1525 = vmul.f32 %v1524, %v829
        %v1526 = vmul.f32 %v1524, %v832
        %v1529 = vrot.slane %v1525, 1
        %v1530 = vrot.slane %v1526, 1
        %v1531 = vsel %vm1130, %v1529, %v1530
        %v1533 = vadd.f32 %v1523, %v1531
        %v1534 = vstv %s548
        %v1535 = vmul.f32 %v1534, %v877
        %v1536 = vadd.f32 %v1533, %v1535
        %v1537 = vstv %s549
        %v1538 = vmul.f32 %v1537, %v900
        %v1539 = vadd.f32 %v1536, %v1538
        %v1540 = vstv %s550
        %v1541 = vmul.f32 %v1540, %v923
        %v1542 = vadd.f32 %v1539, %v1541
        %v1543 = vstv %s596
        %v1544 = vmul.f32 %v1543, %v877
        %v1545 = vmul.f32 %v1543, %v880
        %v1548 = vrot.slane %v1544, 1
        %v1549 = vrot.slane %v1545, 1
        %v1550 = vsel %vm1130, %v1548, %v1549
        %v1552 = vadd.f32 %v1542, %v1550
        %v1553 = vstv %s597
        %v1554 = vmul.f32 %v1553, %v900
        %v1555 = vmul.f32 %v1553, %v903
        %v1558 = vrot.slane %v1554, 1
        %v1559 = vrot.slane %v1555, 1
        %v1560 = vsel %vm1130, %v1558, %v1559
        %v1562 = vadd.f32 %v1552, %v1560
        %v1563 = vstv %s598
        %v1564 = vmul.f32 %v1563, %v923
        %v1565 = vmul.f32 %v1563, %v926
        %v1568 = vrot.slane %v1564, 1
        %v1569 = vrot.slane %v1565, 1
        %v1570 = vsel %vm1130, %v1568, %v1569
        %v1572 = vadd.f32 %v1562, %v1570
        %v1573 = vstv %s551
        %v1574 = vmul.f32 %v1573, %v971
        %v1575 = vadd.f32 %v1572, %v1574
        %v1576 = vstv %s552
        %v1577 = vmul.f32 %v1576, %v994
        %v1578 = vadd.f32 %v1575, %v1577
        %v1579 = vstv %s553
        %v1580 = vmul.f32 %v1579, %v1017
        %v1581 = vadd.f32 %v1578, %v1580
        %v1582 = vstv %s599
        %v1583 = vmul.f32 %v1582, %v971
        %v1584 = vmul.f32 %v1582, %v974
        %v1587 = vrot.slane %v1583, 1
        %v1588 = vrot.slane %v1584, 1
        %v1589 = vsel %vm1130, %v1587, %v1588
        %v1591 = vadd.f32 %v1581, %v1589
        %v1592 = vstv %s600
        %v1593 = vmul.f32 %v1592, %v994
        %v1594 = vmul.f32 %v1592, %v997
        %v1597 = vrot.slane %v1593, 1
        %v1598 = vrot.slane %v1594, 1
        %v1599 = vsel %vm1130, %v1597, %v1598
        %v1601 = vadd.f32 %v1591, %v1599
        %v1602 = vstv %s601
        %v1603 = vmul.f32 %v1602, %v1017
        %v1604 = vmul.f32 %v1602, %v1020
        %v1607 = vrot.slane %v1603, 1
        %v1608 = vrot.slane %v1604, 1
        %v1609 = vsel %vm1130, %v1607, %v1608
        %v1611 = vadd.f32 %v1601, %v1609
        %v1612 = vstv %s554
        %v1613 = vmul.f32 %v1612, %v1065
        %v1614 = vadd.f32 %v1611, %v1613
        %v1615 = vstv %s555
        %v1616 = vmul.f32 %v1615, %v1088
        %v1617 = vadd.f32 %v1614, %v1616
        %v1618 = vstv %s556
        %v1619 = vmul.f32 %v1618, %v1111
        %v1620 = vadd.f32 %v1617, %v1619
        %v1621 = vstv %s602
        %v1622 = vmul.f32 %v1621, %v1065
        %v1623 = vmul.f32 %v1621, %v1068
        %v1626 = vrot.slane %v1622, 1
        %v1627 = vrot.slane %v1623, 1
        %v1628 = vsel %vm1130, %v1626, %v1627
        %v1630 = vadd.f32 %v1620, %v1628
        %v1631 = vstv %s603
        %v1632 = vmul.f32 %v1631, %v1088
        %v1633 = vmul.f32 %v1631, %v1091
        %v1636 = vrot.slane %v1632, 1
        %v1637 = vrot.slane %v1633, 1
        %v1638 = vsel %vm1130, %v1636, %v1637
        %v1640 = vadd.f32 %v1630, %v1638
        %v1641 = vstv %s604
        %v1642 = vmul.f32 %v1641, %v1111
        %v1643 = vmul.f32 %v1641, %v1114
        %v1646 = vrot.slane %v1642, 1
        %v1647 = vrot.slane %v1643, 1
        %v1648 = vsel %vm1130, %v1646, %v1647
        %v1650 = vadd.f32 %v1640, %v1648
        %v1651 = vstv %s726
        %v1652 = vadd.f32 %v1650, %v1651
        %s1653 = scalar_lea.vmem %s524, 8 [#allocation17]
        %1654 = vst.msk [vmem:[%s1653] sm:$0xff] %vm1275, %v1652
        %v1655 = vstv %s641
        %v1656 = vmul.f32 %v1655, %v783
        %v1657 = vmul.f32 %v1655, %v786
        %v1658 = vadd.f32 %v1656, 0.0
        %v1659 = vadd.f32 %v1657, 0.0
        %v1660 = vstv %s642
        %v1661 = vmul.f32 %v1660, %v806
        %v1662 = vmul.f32 %v1660, %v809
        %v1663 = vadd.f32 %v1658, %v1661
        %v1664 = vadd.f32 %v1659, %v1662
        %v1665 = vstv %s643
        %v1666 = vmul.f32 %v1665, %v829
        %v1667 = vmul.f32 %v1665, %v832
        %v1668 = vadd.f32 %v1663, %v1666
        %v1669 = vadd.f32 %v1664, %v1667
        %v1670 = vstv %s689
        %v1671 = vmul.f32 %v1670, %v783
        %v1672 = vmul.f32 %v1670, %v786
        %v1675 = vrot.slane %v1671, 1
        %v1676 = vrot.slane %v1672, 1
        %v1677 = vsel %vm1130, %v1675, %v1676
        %v1680 = vadd.f32 %v1668, %v1677
        %v1681 = vadd.f32 %v1669, %v1676
        %v1682 = vstv %s690
        %v1683 = vmul.f32 %v1682, %v806
        %v1684 = vmul.f32 %v1682, %v809
        %v1687 = vrot.slane %v1683, 1
        %v1688 = vrot.slane %v1684, 1
        %v1689 = vsel %vm1130, %v1687, %v1688
        %v1692 = vadd.f32 %v1680, %v1689
        %v1693 = vadd.f32 %v1681, %v1688
        %v1694 = vstv %s691
        %v1695 = vmul.f32 %v1694, %v829
        %v1696 = vmul.f32 %v1694, %v832
        %v1699 = vrot.slane %v1695, 1
        %v1700 = vrot.slane %v1696, 1
        %v1701 = vsel %vm1130, %v1699, %v1700
        %v1704 = vadd.f32 %v1692, %v1701
        %v1705 = vadd.f32 %v1693, %v1700
        %v1706 = vstv %s644
        %v1707 = vmul.f32 %v1706, %v877
        %v1708 = vmul.f32 %v1706, %v880
        %v1709 = vadd.f32 %v1704, %v1707
        %v1710 = vadd.f32 %v1705, %v1708
        %v1711 = vstv %s645
        %v1712 = vmul.f32 %v1711, %v900
        %v1713 = vmul.f32 %v1711, %v903
        %v1714 = vadd.f32 %v1709, %v1712
        %v1715 = vadd.f32 %v1710, %v1713
        %v1716 = vstv %s646
        %v1717 = vmul.f32 %v1716, %v923
        %v1718 = vmul.f32 %v1716, %v926
        %v1719 = vadd.f32 %v1714, %v1717
        %v1720 = vadd.f32 %v1715, %v1718
        %v1721 = vstv %s692
        %v1722 = vmul.f32 %v1721, %v877
        %v1723 = vmul.f32 %v1721, %v880
        %v1726 = vrot.slane %v1722, 1
        %v1727 = vrot.slane %v1723, 1
        %v1728 = vsel %vm1130, %v1726, %v1727
        %v1731 = vadd.f32 %v1719, %v1728
        %v1732 = vadd.f32 %v1720, %v1727
        %v1733 = vstv %s693
        %v1734 = vmul.f32 %v1733, %v900
        %v1735 = vmul.f32 %v1733, %v903
        %v1738 = vrot.slane %v1734, 1
        %v1739 = vrot.slane %v1735, 1
        %v1740 = vsel %vm1130, %v1738, %v1739
        %v1743 = vadd.f32 %v1731, %v1740
        %v1744 = vadd.f32 %v1732, %v1739
        %v1745 = vstv %s694
        %v1746 = vmul.f32 %v1745, %v923
        %v1747 = vmul.f32 %v1745, %v926
        %v1750 = vrot.slane %v1746, 1
        %v1751 = vrot.slane %v1747, 1
        %v1752 = vsel %vm1130, %v1750, %v1751
        %v1755 = vadd.f32 %v1743, %v1752
        %v1756 = vadd.f32 %v1744, %v1751
        %v1757 = vstv %s647
        %v1758 = vmul.f32 %v1757, %v971
        %v1759 = vmul.f32 %v1757, %v974
        %v1760 = vadd.f32 %v1755, %v1758
        %v1761 = vadd.f32 %v1756, %v1759
        %v1762 = vstv %s648
        %v1763 = vmul.f32 %v1762, %v994
        %v1764 = vmul.f32 %v1762, %v997
        %v1765 = vadd.f32 %v1760, %v1763
        %v1766 = vadd.f32 %v1761, %v1764
        %v1767 = vstv %s649
        %v1768 = vmul.f32 %v1767, %v1017
        %v1769 = vmul.f32 %v1767, %v1020
        %v1770 = vadd.f32 %v1765, %v1768
        %v1771 = vadd.f32 %v1766, %v1769
        %v1772 = vstv %s695
        %v1773 = vmul.f32 %v1772, %v971
        %v1774 = vmul.f32 %v1772, %v974
        %v1777 = vrot.slane %v1773, 1
        %v1778 = vrot.slane %v1774, 1
        %v1779 = vsel %vm1130, %v1777, %v1778
        %v1782 = vadd.f32 %v1770, %v1779
        %v1783 = vadd.f32 %v1771, %v1778
        %v1784 = vstv %s696
        %v1785 = vmul.f32 %v1784, %v994
        %v1786 = vmul.f32 %v1784, %v997
        %v1789 = vrot.slane %v1785, 1
        %v1790 = vrot.slane %v1786, 1
        %v1791 = vsel %vm1130, %v1789, %v1790
        %v1794 = vadd.f32 %v1782, %v1791
        %v1795 = vadd.f32 %v1783, %v1790
        %v1796 = vstv %s697
        %v1797 = vmul.f32 %v1796, %v1017
        %v1798 = vmul.f32 %v1796, %v1020
        %v1801 = vrot.slane %v1797, 1
        %v1802 = vrot.slane %v1798, 1
        %v1803 = vsel %vm1130, %v1801, %v1802
        %v1806 = vadd.f32 %v1794, %v1803
        %v1807 = vadd.f32 %v1795, %v1802
        %v1808 = vstv %s650
        %v1809 = vmul.f32 %v1808, %v1065
        %v1810 = vmul.f32 %v1808, %v1068
        %v1811 = vadd.f32 %v1806, %v1809
        %v1812 = vadd.f32 %v1807, %v1810
        %v1813 = vstv %s651
        %v1814 = vmul.f32 %v1813, %v1088
        %v1815 = vmul.f32 %v1813, %v1091
        %v1816 = vadd.f32 %v1811, %v1814
        %v1817 = vadd.f32 %v1812, %v1815
        %v1818 = vstv %s652
        %v1819 = vmul.f32 %v1818, %v1111
        %v1820 = vmul.f32 %v1818, %v1114
        %v1821 = vadd.f32 %v1816, %v1819
        %v1822 = vadd.f32 %v1817, %v1820
        %v1823 = vstv %s698
        %v1824 = vmul.f32 %v1823, %v1065
        %v1825 = vmul.f32 %v1823, %v1068
        %v1828 = vrot.slane %v1824, 1
        %v1829 = vrot.slane %v1825, 1
        %v1830 = vsel %vm1130, %v1828, %v1829
        %v1833 = vadd.f32 %v1821, %v1830
        %v1834 = vadd.f32 %v1822, %v1829
        %v1835 = vstv %s699
        %v1836 = vmul.f32 %v1835, %v1088
        %v1837 = vmul.f32 %v1835, %v1091
        %v1840 = vrot.slane %v1836, 1
        %v1841 = vrot.slane %v1837, 1
        %v1842 = vsel %vm1130, %v1840, %v1841
        %v1845 = vadd.f32 %v1833, %v1842
        %v1846 = vadd.f32 %v1834, %v1841
        %v1847 = vstv %s700
        %v1848 = vmul.f32 %v1847, %v1111
        %v1849 = vmul.f32 %v1847, %v1114
        %v1852 = vrot.slane %v1848, 1
        %v1853 = vrot.slane %v1849, 1
        %v1854 = vsel %vm1130, %v1852, %v1853
        %v1857 = vadd.f32 %v1845, %v1854
        %v1858 = vadd.f32 %v1846, %v1853
        %v1859 = vadd.f32 %v1857, %v1651
        %v1860 = vadd.f32 %v1858, %v1651
        %1863 = vrot.lane.b32.xlu0 %v1859, 32
        %v1864 = vpop.permute.xlu0 %1863
        %1865 = vrot.lane.b32.xlu0 %v1860, 32
        %v1866 = vpop.permute.xlu0 %1865
        %1869 = vst.msk [vmem:[%s1653 - $0x1] sm:$0xfe] %vm1491, %v1864
        %1870 = vst.msk [vmem:[%s1653 + $0x7] sm:$0x1] %vm1493, %v1866
        %v1871 = vstv %s557
        %v1872 = vmul.f32 %v1871, %v783
        %v1873 = vadd.f32 %v1872, 0.0
        %v1874 = vstv %s558
        %v1875 = vmul.f32 %v1874, %v806
        %v1876 = vadd.f32 %v1873, %v1875
        %v1877 = vstv %s559
        %v1878 = vmul.f32 %v1877, %v829
        %v1879 = vadd.f32 %v1876, %v1878
        %v1880 = vstv %s605
        %v1881 = vmul.f32 %v1880, %v783
        %v1882 = vmul.f32 %v1880, %v786
        %v1885 = vrot.slane %v1881, 1
        %v1886 = vrot.slane %v1882, 1
        %v1887 = vsel %vm1130, %v1885, %v1886
        %v1889 = vadd.f32 %v1879, %v1887
        %v1890 = vstv %s606
        %v1891 = vmul.f32 %v1890, %v806
        %v1892 = vmul.f32 %v1890, %v809
        %v1895 = vrot.slane %v1891, 1
        %v1896 = vrot.slane %v1892, 1
        %v1897 = vsel %vm1130, %v1895, %v1896
        %v1899 = vadd.f32 %v1889, %v1897
        %v1900 = vstv %s607
        %v1901 = vmul.f32 %v1900, %v829
        %v1902 = vmul.f32 %v1900, %v832
        %v1905 = vrot.slane %v1901, 1
        %v1906 = vrot.slane %v1902, 1
        %v1907 = vsel %vm1130, %v1905, %v1906
        %v1909 = vadd.f32 %v1899, %v1907
        %v1910 = vstv %s560
        %v1911 = vmul.f32 %v1910, %v877
        %v1912 = vadd.f32 %v1909, %v1911
        %v1913 = vstv %s561
        %v1914 = vmul.f32 %v1913, %v900
        %v1915 = vadd.f32 %v1912, %v1914
        %v1916 = vstv %s562
        %v1917 = vmul.f32 %v1916, %v923
        %v1918 = vadd.f32 %v1915, %v1917
        %v1919 = vstv %s608
        %v1920 = vmul.f32 %v1919, %v877
        %v1921 = vmul.f32 %v1919, %v880
        %v1924 = vrot.slane %v1920, 1
        %v1925 = vrot.slane %v1921, 1
        %v1926 = vsel %vm1130, %v1924, %v1925
        %v1928 = vadd.f32 %v1918, %v1926
        %v1929 = vstv %s609
        %v1930 = vmul.f32 %v1929, %v900
        %v1931 = vmul.f32 %v1929, %v903
        %v1934 = vrot.slane %v1930, 1
        %v1935 = vrot.slane %v1931, 1
        %v1936 = vsel %vm1130, %v1934, %v1935
        %v1938 = vadd.f32 %v1928, %v1936
        %v1939 = vstv %s610
        %v1940 = vmul.f32 %v1939, %v923
        %v1941 = vmul.f32 %v1939, %v926
        %v1944 = vrot.slane %v1940, 1
        %v1945 = vrot.slane %v1941, 1
        %v1946 = vsel %vm1130, %v1944, %v1945
        %v1948 = vadd.f32 %v1938, %v1946
        %v1949 = vstv %s563
        %v1950 = vmul.f32 %v1949, %v971
        %v1951 = vadd.f32 %v1948, %v1950
        %v1952 = vstv %s564
        %v1953 = vmul.f32 %v1952, %v994
        %v1954 = vadd.f32 %v1951, %v1953
        %v1955 = vstv %s565
        %v1956 = vmul.f32 %v1955, %v1017
        %v1957 = vadd.f32 %v1954, %v1956
        %v1958 = vstv %s611
        %v1959 = vmul.f32 %v1958, %v971
        %v1960 = vmul.f32 %v1958, %v974
        %v1963 = vrot.slane %v1959, 1
        %v1964 = vrot.slane %v1960, 1
        %v1965 = vsel %vm1130, %v1963, %v1964
        %v1967 = vadd.f32 %v1957, %v1965
        %v1968 = vstv %s612
        %v1969 = vmul.f32 %v1968, %v994
        %v1970 = vmul.f32 %v1968, %v997
        %v1973 = vrot.slane %v1969, 1
        %v1974 = vrot.slane %v1970, 1
        %v1975 = vsel %vm1130, %v1973, %v1974
        %v1977 = vadd.f32 %v1967, %v1975
        %v1978 = vstv %s613
        %v1979 = vmul.f32 %v1978, %v1017
        %v1980 = vmul.f32 %v1978, %v1020
        %v1983 = vrot.slane %v1979, 1
        %v1984 = vrot.slane %v1980, 1
        %v1985 = vsel %vm1130, %v1983, %v1984
        %v1987 = vadd.f32 %v1977, %v1985
        %v1988 = vstv %s566
        %v1989 = vmul.f32 %v1988, %v1065
        %v1990 = vadd.f32 %v1987, %v1989
        %v1991 = vstv %s567
        %v1992 = vmul.f32 %v1991, %v1088
        %v1993 = vadd.f32 %v1990, %v1992
        %v1994 = vstv %s568
        %v1995 = vmul.f32 %v1994, %v1111
        %v1996 = vadd.f32 %v1993, %v1995
        %v1997 = vstv %s614
        %v1998 = vmul.f32 %v1997, %v1065
        %v1999 = vmul.f32 %v1997, %v1068
        %v2002 = vrot.slane %v1998, 1
        %v2003 = vrot.slane %v1999, 1
        %v2004 = vsel %vm1130, %v2002, %v2003
        %v2006 = vadd.f32 %v1996, %v2004
        %v2007 = vstv %s615
        %v2008 = vmul.f32 %v2007, %v1088
        %v2009 = vmul.f32 %v2007, %v1091
        %v2012 = vrot.slane %v2008, 1
        %v2013 = vrot.slane %v2009, 1
        %v2014 = vsel %vm1130, %v2012, %v2013
        %v2016 = vadd.f32 %v2006, %v2014
        %v2017 = vstv %s616
        %v2018 = vmul.f32 %v2017, %v1111
        %v2019 = vmul.f32 %v2017, %v1114
        %v2022 = vrot.slane %v2018, 1
        %v2023 = vrot.slane %v2019, 1
        %v2024 = vsel %vm1130, %v2022, %v2023
        %v2026 = vadd.f32 %v2016, %v2024
        %v2027 = vstv %s727
        %v2028 = vadd.f32 %v2026, %v2027
        %s2029 = scalar_lea.vmem %s524, 16 [#allocation17]
        %2030 = vst.msk [vmem:[%s2029] sm:$0xff] %vm1275, %v2028
        %v2031 = vstv %s653
        %v2032 = vmul.f32 %v2031, %v783
        %v2033 = vmul.f32 %v2031, %v786
        %v2034 = vadd.f32 %v2032, 0.0
        %v2035 = vadd.f32 %v2033, 0.0
        %v2036 = vstv %s654
        %v2037 = vmul.f32 %v2036, %v806
        %v2038 = vmul.f32 %v2036, %v809
        %v2039 = vadd.f32 %v2034, %v2037
        %v2040 = vadd.f32 %v2035, %v2038
        %v2041 = vstv %s655
        %v2042 = vmul.f32 %v2041, %v829
        %v2043 = vmul.f32 %v2041, %v832
        %v2044 = vadd.f32 %v2039, %v2042
        %v2045 = vadd.f32 %v2040, %v2043
        %v2046 = vstv %s701
        %v2047 = vmul.f32 %v2046, %v783
        %v2048 = vmul.f32 %v2046, %v786
        %v2051 = vrot.slane %v2047, 1
        %v2052 = vrot.slane %v2048, 1
        %v2053 = vsel %vm1130, %v2051, %v2052
        %v2056 = vadd.f32 %v2044, %v2053
        %v2057 = vadd.f32 %v2045, %v2052
        %v2058 = vstv %s702
        %v2059 = vmul.f32 %v2058, %v806
        %v2060 = vmul.f32 %v2058, %v809
        %v2063 = vrot.slane %v2059, 1
        %v2064 = vrot.slane %v2060, 1
        %v2065 = vsel %vm1130, %v2063, %v2064
        %v2068 = vadd.f32 %v2056, %v2065
        %v2069 = vadd.f32 %v2057, %v2064
        %v2070 = vstv %s703
        %v2071 = vmul.f32 %v2070, %v829
        %v2072 = vmul.f32 %v2070, %v832
        %v2075 = vrot.slane %v2071, 1
        %v2076 = vrot.slane %v2072, 1
        %v2077 = vsel %vm1130, %v2075, %v2076
        %v2080 = vadd.f32 %v2068, %v2077
        %v2081 = vadd.f32 %v2069, %v2076
        %v2082 = vstv %s656
        %v2083 = vmul.f32 %v2082, %v877
        %v2084 = vmul.f32 %v2082, %v880
        %v2085 = vadd.f32 %v2080, %v2083
        %v2086 = vadd.f32 %v2081, %v2084
        %v2087 = vstv %s657
        %v2088 = vmul.f32 %v2087, %v900
        %v2089 = vmul.f32 %v2087, %v903
        %v2090 = vadd.f32 %v2085, %v2088
        %v2091 = vadd.f32 %v2086, %v2089
        %v2092 = vstv %s658
        %v2093 = vmul.f32 %v2092, %v923
        %v2094 = vmul.f32 %v2092, %v926
        %v2095 = vadd.f32 %v2090, %v2093
        %v2096 = vadd.f32 %v2091, %v2094
        %v2097 = vstv %s704
        %v2098 = vmul.f32 %v2097, %v877
        %v2099 = vmul.f32 %v2097, %v880
        %v2102 = vrot.slane %v2098, 1
        %v2103 = vrot.slane %v2099, 1
        %v2104 = vsel %vm1130, %v2102, %v2103
        %v2107 = vadd.f32 %v2095, %v2104
        %v2108 = vadd.f32 %v2096, %v2103
        %v2109 = vstv %s705
        %v2110 = vmul.f32 %v2109, %v900
        %v2111 = vmul.f32 %v2109, %v903
        %v2114 = vrot.slane %v2110, 1
        %v2115 = vrot.slane %v2111, 1
        %v2116 = vsel %vm1130, %v2114, %v2115
        %v2119 = vadd.f32 %v2107, %v2116
        %v2120 = vadd.f32 %v2108, %v2115
        %v2121 = vstv %s706
        %v2122 = vmul.f32 %v2121, %v923
        %v2123 = vmul.f32 %v2121, %v926
        %v2126 = vrot.slane %v2122, 1
        %v2127 = vrot.slane %v2123, 1
        %v2128 = vsel %vm1130, %v2126, %v2127
        %v2131 = vadd.f32 %v2119, %v2128
        %v2132 = vadd.f32 %v2120, %v2127
        %v2133 = vstv %s659
        %v2134 = vmul.f32 %v2133, %v971
        %v2135 = vmul.f32 %v2133, %v974
        %v2136 = vadd.f32 %v2131, %v2134
        %v2137 = vadd.f32 %v2132, %v2135
        %v2138 = vstv %s660
        %v2139 = vmul.f32 %v2138, %v994
        %v2140 = vmul.f32 %v2138, %v997
        %v2141 = vadd.f32 %v2136, %v2139
        %v2142 = vadd.f32 %v2137, %v2140
        %v2143 = vstv %s661
        %v2144 = vmul.f32 %v2143, %v1017
        %v2145 = vmul.f32 %v2143, %v1020
        %v2146 = vadd.f32 %v2141, %v2144
        %v2147 = vadd.f32 %v2142, %v2145
        %v2148 = vstv %s707
        %v2149 = vmul.f32 %v2148, %v971
        %v2150 = vmul.f32 %v2148, %v974
        %v2153 = vrot.slane %v2149, 1
        %v2154 = vrot.slane %v2150, 1
        %v2155 = vsel %vm1130, %v2153, %v2154
        %v2158 = vadd.f32 %v2146, %v2155
        %v2159 = vadd.f32 %v2147, %v2154
        %v2160 = vstv %s708
        %v2161 = vmul.f32 %v2160, %v994
        %v2162 = vmul.f32 %v2160, %v997
        %v2165 = vrot.slane %v2161, 1
        %v2166 = vrot.slane %v2162, 1
        %v2167 = vsel %vm1130, %v2165, %v2166
        %v2170 = vadd.f32 %v2158, %v2167
        %v2171 = vadd.f32 %v2159, %v2166
        %v2172 = vstv %s709
        %v2173 = vmul.f32 %v2172, %v1017
        %v2174 = vmul.f32 %v2172, %v1020
        %v2177 = vrot.slane %v2173, 1
        %v2178 = vrot.slane %v2174, 1
        %v2179 = vsel %vm1130, %v2177, %v2178
        %v2182 = vadd.f32 %v2170, %v2179
        %v2183 = vadd.f32 %v2171, %v2178
        %v2184 = vstv %s662
        %v2185 = vmul.f32 %v2184, %v1065
        %v2186 = vmul.f32 %v2184, %v1068
        %v2187 = vadd.f32 %v2182, %v2185
        %v2188 = vadd.f32 %v2183, %v2186
        %v2189 = vstv %s663
        %v2190 = vmul.f32 %v2189, %v1088
        %v2191 = vmul.f32 %v2189, %v1091
        %v2192 = vadd.f32 %v2187, %v2190
        %v2193 = vadd.f32 %v2188, %v2191
        %v2194 = vstv %s664
        %v2195 = vmul.f32 %v2194, %v1111
        %v2196 = vmul.f32 %v2194, %v1114
        %v2197 = vadd.f32 %v2192, %v2195
        %v2198 = vadd.f32 %v2193, %v2196
        %v2199 = vstv %s710
        %v2200 = vmul.f32 %v2199, %v1065
        %v2201 = vmul.f32 %v2199, %v1068
        %v2204 = vrot.slane %v2200, 1
        %v2205 = vrot.slane %v2201, 1
        %v2206 = vsel %vm1130, %v2204, %v2205
        %v2209 = vadd.f32 %v2197, %v2206
        %v2210 = vadd.f32 %v2198, %v2205
        %v2211 = vstv %s711
        %v2212 = vmul.f32 %v2211, %v1088
        %v2213 = vmul.f32 %v2211, %v1091
        %v2216 = vrot.slane %v2212, 1
        %v2217 = vrot.slane %v2213, 1
        %v2218 = vsel %vm1130, %v2216, %v2217
        %v2221 = vadd.f32 %v2209, %v2218
        %v2222 = vadd.f32 %v2210, %v2217
        %v2223 = vstv %s712
        %v2224 = vmul.f32 %v2223, %v1111
        %v2225 = vmul.f32 %v2223, %v1114
        %v2228 = vrot.slane %v2224, 1
        %v2229 = vrot.slane %v2225, 1
        %v2230 = vsel %vm1130, %v2228, %v2229
        %v2233 = vadd.f32 %v2221, %v2230
        %v2234 = vadd.f32 %v2222, %v2229
        %v2235 = vadd.f32 %v2233, %v2027
        %v2236 = vadd.f32 %v2234, %v2027
        %2239 = vrot.lane.b32.xlu0 %v2235, 32
        %v2240 = vpop.permute.xlu0 %2239
        %2241 = vrot.lane.b32.xlu0 %v2236, 32
        %v2242 = vpop.permute.xlu0 %2241
        %2245 = vst.msk [vmem:[%s2029 - $0x1] sm:$0xfe] %vm1491, %v2240
        %2246 = vst.msk [vmem:[%s2029 + $0x7] sm:$0x1] %vm1493, %v2242
        %v2247 = vstv %s569
        %v2248 = vmul.f32 %v2247, %v783
        %v2249 = vadd.f32 %v2248, 0.0
        %v2250 = vstv %s570
        %v2251 = vmul.f32 %v2250, %v806
        %v2252 = vadd.f32 %v2249, %v2251
        %v2253 = vstv %s571
        %v2254 = vmul.f32 %v2253, %v829
        %v2255 = vadd.f32 %v2252, %v2254
        %v2256 = vstv %s617
        %v2257 = vmul.f32 %v2256, %v783
        %v2258 = vmul.f32 %v2256, %v786
        %v2261 = vrot.slane %v2257, 1
        %v2262 = vrot.slane %v2258, 1
        %v2263 = vsel %vm1130, %v2261, %v2262
        %v2265 = vadd.f32 %v2255, %v2263
        %v2266 = vstv %s618
        %v2267 = vmul.f32 %v2266, %v806
        %v2268 = vmul.f32 %v2266, %v809
        %v2271 = vrot.slane %v2267, 1
        %v2272 = vrot.slane %v2268, 1
        %v2273 = vsel %vm1130, %v2271, %v2272
        %v2275 = vadd.f32 %v2265, %v2273
        %v2276 = vstv %s619
        %v2277 = vmul.f32 %v2276, %v829
        %v2278 = vmul.f32 %v2276, %v832
        %v2281 = vrot.slane %v2277, 1
        %v2282 = vrot.slane %v2278, 1
        %v2283 = vsel %vm1130, %v2281, %v2282
        %v2285 = vadd.f32 %v2275, %v2283
        %v2286 = vstv %s572
        %v2287 = vmul.f32 %v2286, %v877
        %v2288 = vadd.f32 %v2285, %v2287
        %v2289 = vstv %s573
        %v2290 = vmul.f32 %v2289, %v900
        %v2291 = vadd.f32 %v2288, %v2290
        %v2292 = vstv %s574
        %v2293 = vmul.f32 %v2292, %v923
        %v2294 = vadd.f32 %v2291, %v2293
        %v2295 = vstv %s620
        %v2296 = vmul.f32 %v2295, %v877
        %v2297 = vmul.f32 %v2295, %v880
        %v2300 = vrot.slane %v2296, 1
        %v2301 = vrot.slane %v2297, 1
        %v2302 = vsel %vm1130, %v2300, %v2301
        %v2304 = vadd.f32 %v2294, %v2302
        %v2305 = vstv %s621
        %v2306 = vmul.f32 %v2305, %v900
        %v2307 = vmul.f32 %v2305, %v903
        %v2310 = vrot.slane %v2306, 1
        %v2311 = vrot.slane %v2307, 1
        %v2312 = vsel %vm1130, %v2310, %v2311
        %v2314 = vadd.f32 %v2304, %v2312
        %v2315 = vstv %s622
        %v2316 = vmul.f32 %v2315, %v923
        %v2317 = vmul.f32 %v2315, %v926
        %v2320 = vrot.slane %v2316, 1
        %v2321 = vrot.slane %v2317, 1
        %v2322 = vsel %vm1130, %v2320, %v2321
        %v2324 = vadd.f32 %v2314, %v2322
        %v2325 = vstv %s575
        %v2326 = vmul.f32 %v2325, %v971
        %v2327 = vadd.f32 %v2324, %v2326
        %v2328 = vstv %s576
        %v2329 = vmul.f32 %v2328, %v994
        %v2330 = vadd.f32 %v2327, %v2329
        %v2331 = vstv %s577
        %v2332 = vmul.f32 %v2331, %v1017
        %v2333 = vadd.f32 %v2330, %v2332
        %v2334 = vstv %s623
        %v2335 = vmul.f32 %v2334, %v971
        %v2336 = vmul.f32 %v2334, %v974
        %v2339 = vrot.slane %v2335, 1
        %v2340 = vrot.slane %v2336, 1
        %v2341 = vsel %vm1130, %v2339, %v2340
        %v2343 = vadd.f32 %v2333, %v2341
        %v2344 = vstv %s624
        %v2345 = vmul.f32 %v2344, %v994
        %v2346 = vmul.f32 %v2344, %v997
        %v2349 = vrot.slane %v2345, 1
        %v2350 = vrot.slane %v2346, 1
        %v2351 = vsel %vm1130, %v2349, %v2350
        %v2353 = vadd.f32 %v2343, %v2351
        %v2354 = vstv %s625
        %v2355 = vmul.f32 %v2354, %v1017
        %v2356 = vmul.f32 %v2354, %v1020
        %v2359 = vrot.slane %v2355, 1
        %v2360 = vrot.slane %v2356, 1
        %v2361 = vsel %vm1130, %v2359, %v2360
        %v2363 = vadd.f32 %v2353, %v2361
        %v2364 = vstv %s578
        %v2365 = vmul.f32 %v2364, %v1065
        %v2366 = vadd.f32 %v2363, %v2365
        %v2367 = vstv %s579
        %v2368 = vmul.f32 %v2367, %v1088
        %v2369 = vadd.f32 %v2366, %v2368
        %v2370 = vstv %s580
        %v2371 = vmul.f32 %v2370, %v1111
        %v2372 = vadd.f32 %v2369, %v2371
        %v2373 = vstv %s626
        %v2374 = vmul.f32 %v2373, %v1065
        %v2375 = vmul.f32 %v2373, %v1068
        %v2378 = vrot.slane %v2374, 1
        %v2379 = vrot.slane %v2375, 1
        %v2380 = vsel %vm1130, %v2378, %v2379
        %v2382 = vadd.f32 %v2372, %v2380
        %v2383 = vstv %s627
        %v2384 = vmul.f32 %v2383, %v1088
        %v2385 = vmul.f32 %v2383, %v1091
        %v2388 = vrot.slane %v2384, 1
        %v2389 = vrot.slane %v2385, 1
        %v2390 = vsel %vm1130, %v2388, %v2389
        %v2392 = vadd.f32 %v2382, %v2390
        %v2393 = vstv %s628
        %v2394 = vmul.f32 %v2393, %v1111
        %v2395 = vmul.f32 %v2393, %v1114
        %v2398 = vrot.slane %v2394, 1
        %v2399 = vrot.slane %v2395, 1
        %v2400 = vsel %vm1130, %v2398, %v2399
        %v2402 = vadd.f32 %v2392, %v2400
        %v2403 = vstv %s728
        %v2404 = vadd.f32 %v2402, %v2403
        %s2405 = scalar_lea.vmem %s524, 24 [#allocation17]
        %2406 = vst.msk [vmem:[%s2405] sm:$0xff] %vm1275, %v2404
        %v2407 = vstv %s665
        %v2408 = vmul.f32 %v2407, %v783
        %v2409 = vmul.f32 %v2407, %v786
        %v2410 = vadd.f32 %v2408, 0.0
        %v2411 = vadd.f32 %v2409, 0.0
        %v2412 = vstv %s666
        %v2413 = vmul.f32 %v2412, %v806
        %v2414 = vmul.f32 %v2412, %v809
        %v2415 = vadd.f32 %v2410, %v2413
        %v2416 = vadd.f32 %v2411, %v2414
        %v2417 = vstv %s667
        %v2418 = vmul.f32 %v2417, %v829
        %v2419 = vmul.f32 %v2417, %v832
        %v2420 = vadd.f32 %v2415, %v2418
        %v2421 = vadd.f32 %v2416, %v2419
        %v2422 = vstv %s713
        %v2423 = vmul.f32 %v2422, %v783
        %v2424 = vmul.f32 %v2422, %v786
        %v2427 = vrot.slane %v2423, 1
        %v2428 = vrot.slane %v2424, 1
        %v2429 = vsel %vm1130, %v2427, %v2428
        %v2432 = vadd.f32 %v2420, %v2429
        %v2433 = vadd.f32 %v2421, %v2428
        %v2434 = vstv %s714
        %v2435 = vmul.f32 %v2434, %v806
        %v2436 = vmul.f32 %v2434, %v809
        %v2439 = vrot.slane %v2435, 1
        %v2440 = vrot.slane %v2436, 1
        %v2441 = vsel %vm1130, %v2439, %v2440
        %v2444 = vadd.f32 %v2432, %v2441
        %v2445 = vadd.f32 %v2433, %v2440
        %v2446 = vstv %s715
        %v2447 = vmul.f32 %v2446, %v829
        %v2448 = vmul.f32 %v2446, %v832
        %v2451 = vrot.slane %v2447, 1
        %v2452 = vrot.slane %v2448, 1
        %v2453 = vsel %vm1130, %v2451, %v2452
        %v2456 = vadd.f32 %v2444, %v2453
        %v2457 = vadd.f32 %v2445, %v2452
        %v2458 = vstv %s668
        %v2459 = vmul.f32 %v2458, %v877
        %v2460 = vmul.f32 %v2458, %v880
        %v2461 = vadd.f32 %v2456, %v2459
        %v2462 = vadd.f32 %v2457, %v2460
        %v2463 = vstv %s669
        %v2464 = vmul.f32 %v2463, %v900
        %v2465 = vmul.f32 %v2463, %v903
        %v2466 = vadd.f32 %v2461, %v2464
        %v2467 = vadd.f32 %v2462, %v2465
        %v2468 = vstv %s670
        %v2469 = vmul.f32 %v2468, %v923
        %v2470 = vmul.f32 %v2468, %v926
        %v2471 = vadd.f32 %v2466, %v2469
        %v2472 = vadd.f32 %v2467, %v2470
        %v2473 = vstv %s716
        %v2474 = vmul.f32 %v2473, %v877
        %v2475 = vmul.f32 %v2473, %v880
        %v2478 = vrot.slane %v2474, 1
        %v2479 = vrot.slane %v2475, 1
        %v2480 = vsel %vm1130, %v2478, %v2479
        %v2483 = vadd.f32 %v2471, %v2480
        %v2484 = vadd.f32 %v2472, %v2479
        %v2485 = vstv %s717
        %v2486 = vmul.f32 %v2485, %v900
        %v2487 = vmul.f32 %v2485, %v903
        %v2490 = vrot.slane %v2486, 1
        %v2491 = vrot.slane %v2487, 1
        %v2492 = vsel %vm1130, %v2490, %v2491
        %v2495 = vadd.f32 %v2483, %v2492
        %v2496 = vadd.f32 %v2484, %v2491
        %v2497 = vstv %s718
        %v2498 = vmul.f32 %v2497, %v923
        %v2499 = vmul.f32 %v2497, %v926
        %v2502 = vrot.slane %v2498, 1
        %v2503 = vrot.slane %v2499, 1
        %v2504 = vsel %vm1130, %v2502, %v2503
        %v2507 = vadd.f32 %v2495, %v2504
        %v2508 = vadd.f32 %v2496, %v2503
        %v2509 = vstv %s671
        %v2510 = vmul.f32 %v2509, %v971
        %v2511 = vmul.f32 %v2509, %v974
        %v2512 = vadd.f32 %v2507, %v2510
        %v2513 = vadd.f32 %v2508, %v2511
        %v2514 = vstv %s672
        %v2515 = vmul.f32 %v2514, %v994
        %v2516 = vmul.f32 %v2514, %v997
        %v2517 = vadd.f32 %v2512, %v2515
        %v2518 = vadd.f32 %v2513, %v2516
        %v2519 = vstv %s673
        %v2520 = vmul.f32 %v2519, %v1017
        %v2521 = vmul.f32 %v2519, %v1020
        %v2522 = vadd.f32 %v2517, %v2520
        %v2523 = vadd.f32 %v2518, %v2521
        %v2524 = vstv %s719
        %v2525 = vmul.f32 %v2524, %v971
        %v2526 = vmul.f32 %v2524, %v974
        %v2529 = vrot.slane %v2525, 1
        %v2530 = vrot.slane %v2526, 1
        %v2531 = vsel %vm1130, %v2529, %v2530
        %v2534 = vadd.f32 %v2522, %v2531
        %v2535 = vadd.f32 %v2523, %v2530
        %v2536 = vstv %s720
        %v2537 = vmul.f32 %v2536, %v994
        %v2538 = vmul.f32 %v2536, %v997
        %v2541 = vrot.slane %v2537, 1
        %v2542 = vrot.slane %v2538, 1
        %v2543 = vsel %vm1130, %v2541, %v2542
        %v2546 = vadd.f32 %v2534, %v2543
        %v2547 = vadd.f32 %v2535, %v2542
        %v2548 = vstv %s721
        %v2549 = vmul.f32 %v2548, %v1017
        %v2550 = vmul.f32 %v2548, %v1020
        %v2553 = vrot.slane %v2549, 1
        %v2554 = vrot.slane %v2550, 1
        %v2555 = vsel %vm1130, %v2553, %v2554
        %v2558 = vadd.f32 %v2546, %v2555
        %v2559 = vadd.f32 %v2547, %v2554
        %v2560 = vstv %s674
        %v2561 = vmul.f32 %v2560, %v1065
        %v2562 = vmul.f32 %v2560, %v1068
        %v2563 = vadd.f32 %v2558, %v2561
        %v2564 = vadd.f32 %v2559, %v2562
        %v2565 = vstv %s675
        %v2566 = vmul.f32 %v2565, %v1088
        %v2567 = vmul.f32 %v2565, %v1091
        %v2568 = vadd.f32 %v2563, %v2566
        %v2569 = vadd.f32 %v2564, %v2567
        %v2570 = vstv %s676
        %v2571 = vmul.f32 %v2570, %v1111
        %v2572 = vmul.f32 %v2570, %v1114
        %v2573 = vadd.f32 %v2568, %v2571
        %v2574 = vadd.f32 %v2569, %v2572
        %v2575 = vstv %s722
        %v2576 = vmul.f32 %v2575, %v1065
        %v2577 = vmul.f32 %v2575, %v1068
        %v2580 = vrot.slane %v2576, 1
        %v2581 = vrot.slane %v2577, 1
        %v2582 = vsel %vm1130, %v2580, %v2581
        %v2585 = vadd.f32 %v2573, %v2582
        %v2586 = vadd.f32 %v2574, %v2581
        %v2587 = vstv %s723
        %v2588 = vmul.f32 %v2587, %v1088
        %v2589 = vmul.f32 %v2587, %v1091
        %v2592 = vrot.slane %v2588, 1
        %v2593 = vrot.slane %v2589, 1
        %v2594 = vsel %vm1130, %v2592, %v2593
        %v2597 = vadd.f32 %v2585, %v2594
        %v2598 = vadd.f32 %v2586, %v2593
        %v2599 = vstv %s724
        %v2600 = vmul.f32 %v2599, %v1111
        %v2601 = vmul.f32 %v2599, %v1114
        %v2604 = vrot.slane %v2600, 1
        %v2605 = vrot.slane %v2601, 1
        %v2606 = vsel %vm1130, %v2604, %v2605
        %v2609 = vadd.f32 %v2597, %v2606
        %v2610 = vadd.f32 %v2598, %v2605
        %v2611 = vadd.f32 %v2609, %v2403
        %v2612 = vadd.f32 %v2610, %v2403
        %2615 = vrot.lane.b32.xlu0 %v2611, 32
        %v2616 = vpop.permute.xlu0 %2615
        %2617 = vrot.lane.b32.xlu0 %v2612, 32
        %v2618 = vpop.permute.xlu0 %2617
        %2621 = vst.msk [vmem:[%s2405 - $0x1] sm:$0xfe] %vm1491, %v2616
        %2622 = vst.msk [vmem:[%s2405 + $0x7] sm:$0x1] %vm1493, %v2618
        %s2623 = sand.u32 %s255, 1
        %s2624 = scalar_lea.sflag [#allocation4], %s2623
        %s2625 = sand.u32 %s255, 1
        %s2626 = smul.addr %s2625, 32
        %s2627 = scalar_lea.vmem [#allocation17], %s2626
        // Predicated region
        $region85: #{tpu_custom_call.1} parent=51 // pred_check
          %p2628 = pneg %p265
        $region86: #{tpu_custom_call.1} parent=51 // pred_check_branch
          %2630 = sbr.rel (%p2628) target = $region88
        $region87: #{tpu_custom_call.1} parent=51 // pred_region
          %2632 = vsyncadd %s2624, 0
          %s2633 = smul.addr %s36, 8
          %s2634 = sadd.s32 %s37, %s2633
          %s2635 = smul.addr %s2634, 8
          %s2636 = scalar_lea.hbm %s8, %s2635
          %s2637 = sshll.u32 %s2627, 4
          %s2638 = int_to_ptr.vmem [resolvable:$true] %s2637
          %s2639 = sshll.u32 %s2636, 4
          %s2640 = int_to_ptr.hbm [resolvable:$true] %s2639
          %2645 = dma.vmem_to_hbm [thread:$0]  %s2638, 512, %s2640, %s2624, 128, 256, 8
        $region88: #{tpu_custom_call.1} parent=51 // pred_fallthru
          _
      $region52: #{tpu_custom_call.1} parent=5 // pred_fallthru
        _
      %p2646 = scmp.le.s32.totalorder 2, %s27
      // Predicated region
      $region89: #{tpu_custom_call.1} parent=5 // pred_check
        %p2647 = pneg %p2646
      $region90: #{tpu_custom_call.1} parent=5 // pred_check_branch
        %2649 = sbr.rel (%p2647) target = $region92
      $region91: #{tpu_custom_call.1} parent=5 // pred_region
        %s2650 = ssub.s32 %s27, 2
        // Predicated region
        $region93: #{tpu_custom_call.1} parent=91 // pred_check
          %p2651 = pneg %p271
        $region94: #{tpu_custom_call.1} parent=91 // pred_check_branch
          %2653 = sbr.rel (%p2651) target = $region96
        $region95: #{tpu_custom_call.1} parent=91 // pred_region
          %s2654 = sand.u32 %s256, 1
          %s2655 = scalar_lea.sflag [#allocation4], %s2654
          %s2656 = sand.u32 %s256, 1
          %s2657 = smul.addr %s2656, 32
          %s2658 = scalar_lea.vmem [#allocation17], %s2657
          %2660 = dma.done %s2655, 512
        $region96: #{tpu_custom_call.1} parent=91 // pred_fallthru
          _
      $region92: #{tpu_custom_call.1} parent=5 // pred_fallthru
        _
    $region6: #{tpu_custom_call.1} parent=1 // loop_footer
      %s31 = sadd.s32 1, %s27
    $region7: #{tpu_custom_call.1} parent=1 // loop_footer_branch
      %26 = sbr.rel target = $region3
    $region8: #{tpu_custom_call.1} parent=1 // loop_exit
      _
    %2661 = vsyncpa [#allocation3], 1
    %s2662 = scalar_lea.sflag [#allocation3], 1
    %2663 = vsyncpa %s2662, 1
    %2664 = vsyncpa [#allocation7], 1
    %s2665 = scalar_lea.sflag [#allocation7], 1
    %2666 = vsyncpa %s2665, 1
    %2667 = vsyncpa [#allocation10], 1
    %2668 = vsyncpa [#allocation13], 1
    %2669 = vsyncpa [#allocation4], 1
    %s2670 = scalar_lea.sflag [#allocation4], 1
    %2671 = vsyncpa %s2670, 1
    %2672 = vsyncpa [#allocation5], 1
    %s2673 = scalar_lea.sflag [#allocation5], 1
    %2674 = vsyncpa %s2673, 1
    %2675 = vsyncpa [#allocation16], 1

</llo_original>
